<compile_context>
chip_gen: v6e
topology: v6e:2x2x1
jax: 0.10.0
libtpu: 0.0.40
codegen_flags: <defaults>
</compile_context>

<pallas_src>
import functools

import jax
import jax.numpy as jnp
from jax import lax
from jax.experimental import pallas as pl
from jax.experimental.pallas import tpu as pltpu

TM = 1024          # lane tile for the tiled (deconv5) matmul grid
BN_EPS = 1e-5

# MXU operand dtype.  Flip to jnp.bfloat16 on v6e/v7x for native-rate MXU
# (accumulation stays f32 via preferred_element_type).  After the restructure
# every matmul operand is < 0.8 MB, so the bandwidth difference is negligible
# and f32 keeps maximum numerical headroom against the f32 reference.
MXU_DTYPE = jnp.float32


def _round_up(x, m):
    return (x + m - 1) // m * m


# ------------------------------ Pallas kernels ------------------------------

def conv_bn_relu_kernel(x_ref, w_ref, o_ref):
    # x: [K, M] im2col patches, w: [Cout, K]
    # o: [Cout, M] = relu(batchnorm(w @ x))   (training-mode BN, gamma=1 beta=0)
    y = jnp.dot(w_ref[...].astype(MXU_DTYPE), x_ref[...].astype(MXU_DTYPE),
                preferred_element_type=jnp.float32)
    mean = jnp.mean(y, axis=1, keepdims=True)
    var = jnp.mean(jnp.square(y - mean), axis=1, keepdims=True)
    o_ref[...] = jnp.maximum((y - mean) * lax.rsqrt(var + BN_EPS), 0.0)


def deconv_taps_kernel(x_ref, w_ref, o_ref, *, pre):
    # x: [Cin, TM] activations, w: [Cout*k^3, Cin]
    # o: [Cout*k^3, TM] per-tap contributions (parity col2im assembles them).
    x = x_ref[...].astype(jnp.float32)
    if pre == "bn_relu":            # fused BN+ReLU of the *previous* layer
        mean = jnp.mean(x, axis=1, keepdims=True)
        var = jnp.mean(jnp.square(x - mean), axis=1, keepdims=True)
        x = jnp.maximum((x - mean) * lax.rsqrt(var + BN_EPS), 0.0)
    elif pre == "relu":             # fused ReLU of the previous layer
        x = jnp.maximum(x, 0.0)
    o_ref[...] = jnp.dot(w_ref[...].astype(MXU_DTYPE), x.astype(MXU_DTYPE),
                         preferred_element_type=jnp.float32)


# ------------------------------ Pallas wrappers -----------------------------

def conv_bn_relu_pallas(x_ncdhw, w, *, stride=2, pad=1):
    """Conv3d(k=3) + training-mode BatchNorm3d + ReLU, fused in one kernel.

    Single grid step: the whole [K, M] patch tile is < 0.25 MB for this
    network, so BN batch statistics can be taken in-kernel over the full M.
    # TODO(synk): for much larger volumes, tile M and carry sum/sum-of-squares
    # across grid steps (P3) instead of the single-step assumption.
    """
    cout = w.shape[0]
    patches, dims = im2col_3d(x_ncdhw, k=3, stride=stride, pad=pad)   # [K, M]
    K, M = patches.shape
    out = pl.pallas_call(
        conv_bn_relu_kernel,
        out_shape=jax.ShapeDtypeStruct((cout, M), jnp.float32),
        grid=(1,),
        in_specs=[pl.BlockSpec((K, M), lambda i: (0, 0)),
                  pl.BlockSpec((cout, K), lambda i: (0, 0))],
        out_specs=pl.BlockSpec((cout, M), lambda i: (0, 0)),
        compiler_params=pltpu.CompilerParams(
            dimension_semantics=("arbitrary",)),
    )(patches, w.reshape(cout, K))
    return out, dims


def deconv_taps_pallas(x_cm, w_mat, *, pre):
    """taps[Cout*27, M] = w_mat @ pre(x_cm);  pre in {'none', 'relu', 'bn_relu'}."""
    cin, M = x_cm.shape
    R = w_mat.shape[0]
    # BN needs global batch stats -> that call stays a single grid step.
    tm = M if (pre == "bn_relu" or M <= TM) else TM
    Mp = _round_up(M, tm)
    xp = x_cm if Mp == M else jnp.pad(x_cm, ((0, 0), (0, Mp - M)))
    grid = Mp // tm
    out = pl.pallas_call(
        functools.partial(deconv_taps_kernel, pre=pre),
        out_shape=jax.ShapeDtypeStruct((R, Mp), jnp.float32),
        grid=(grid,),
        in_specs=[pl.BlockSpec((cin, tm), lambda i: (0, i)),
                  pl.BlockSpec((R, cin), lambda i: (0, 0))],
        out_specs=pl.BlockSpec((R, tm), lambda i: (0, i)),
        compiler_params=pltpu.CompilerParams(
            dimension_semantics=("parallel",)),
    )(xp, w_mat)
    return out[:, :M] if Mp != M else out


# ------------------------------ XLA glue ------------------------------------

def im2col_3d(x, k, stride, pad):
    """x: [N, C, D, H, W] -> patches [C*k^3, N*Do*Ho*Wo] (plus output dims)."""
    N, C, D, H, W = x.shape
    xp = jnp.pad(x, ((0, 0), (0, 0), (pad, pad), (pad, pad), (pad, pad)))
    Do = (D + 2 * pad - k) // stride + 1
    Ho = (H + 2 * pad - k) // stride + 1
    Wo = (W + 2 * pad - k) // stride + 1
    taps = []
    for kd in range(k):
        for kh in range(k):
            for kw in range(k):
                taps.append(xp[:, :,
                               kd:kd + Do * stride:stride,
                               kh:kh + Ho * stride:stride,
                               kw:kw + Wo * stride:stride])
    p = jnp.stack(taps, axis=2)                       # [N, C, k^3, Do, Ho, Wo]
    p = jnp.transpose(p, (1, 2, 0, 3, 4, 5))          # [C, k^3, N, Do, Ho, Wo]
    return p.reshape(C * k ** 3, N * Do * Ho * Wo), (N, Do, Ho, Wo)


def cm_to_ncdhw(y, dims):
    N, D, H, W = dims
    C = y.shape[0]
    return jnp.transpose(y.reshape(C, N, D, H, W), (1, 0, 2, 3, 4))


def ncdhw_to_cm(x):
    return jnp.transpose(x, (1, 0, 2, 3, 4)).reshape(x.shape[1], -1)


def deconv_weight_mat(w):
    """PyTorch ConvTranspose3d weight [Cin, Cout, k, k, k] -> [Cout*k^3, Cin]."""
    cin, cout, k = w.shape[0], w.shape[1], w.shape[2]
    return jnp.transpose(w, (1, 2, 3, 4, 0)).reshape(cout * k ** 3, cin)


def col2im_transpose3d(taps, dims_in, cout, k, stride, pad, bias=None):
    """Assemble a ConvTranspose3d output from per-tap channel-matmul results.

    taps: [Cout*k^3, N*Di*Hi*Wi], row index co*k^3 + (kd*k + kh)*k + kw.
    Output voxel od = stride*id + kd - pad.  Writing od = stride*q + r, tap kd
    contributes to output parity r iff (kd - pad - r) % stride == 0, at input
    index id = q + (pad + r - kd)//stride.  Per-parity blocks are accumulated
    with plain shifted slices and interleaved at the end, so there is no
    strided scatter_add and no zero-dilated tensor anywhere.
    """
    N, Di, Hi, Wi = dims_in
    Do = (Di - 1) * stride - 2 * pad + k
    Ho = (Hi - 1) * stride - 2 * pad + k
    Wo = (Wi - 1) * stride - 2 * pad + k
    t = taps.reshape(cout, k ** 3, N, Di, Hi, Wi)
    t = jnp.transpose(t, (1, 2, 0, 3, 4, 5))          # [k^3, N, Cout, Di, Hi, Wi]
    # 1-voxel zero halo so every shifted read below is a plain static slice.
    t = jnp.pad(t, ((0, 0), (0, 0), (0, 0), (1, 1), (1, 1), (1, 1)))

    q = (-(-Do // stride), -(-Ho // stride), -(-Wo // stride))
    blocks = []
    for rd in range(stride):
        for rh in range(stride):
            for rw in range(stride):
                acc = jnp.zeros((N, cout) + q, jnp.float32)
                for kd in range(k):
                    if (kd - pad - rd) % stride:
                        continue
                    sd = (pad + rd - kd) // stride
                    for kh in range(k):
                        if (kh - pad - rh) % stride:
                            continue
                        sh = (pad + rh - kh) // stride
                        for kw in range(k):
                            if (kw - pad - rw) % stride:
                                continue
                            sw = (pad + rw - kw) // stride
                            tap = (kd * k + kh) * k + kw
                            acc = acc + t[tap][:, :,
                                               1 + sd:1 + sd + q[0],
                                               1 + sh:1 + sh + q[1],
                                               1 + sw:1 + sw + q[2]]
                blocks.append(acc)
    s = stride
    out = jnp.stack(blocks).reshape((s, s, s, N, cout) + q)
    out = jnp.transpose(out, (3, 4, 5, 0, 6, 1, 7, 2))          # q-major, parity-minor
    out = out.reshape(N, cout, s * q[0], s * q[1], s * q[2])
    out = out[:, :, :Do, :Ho, :Wo]
    if bias is not None:
        out = out + bias.reshape(1, cout, 1, 1, 1)
    return out


# ------------------------------ full forward --------------------------------

def encoder_decoder_forward_pallas(x, params):
    N = x.shape[0]

    # conv1 + bn1 + relu   (conv bias dropped: cancelled exactly by batch mean)
    y1, d1 = conv_bn_relu_pallas(x, params["conv1_w"])
    x1 = cm_to_ncdhw(y1, d1)                                     # [N,16,8,8,8]

    # conv2 + bn2 + relu
    y2, d2 = conv_bn_relu_pallas(x1, params["conv2_w"])          # [32, N*4^3]

    # deconv3 (bias dropped: cancelled by bn3); bn3 + relu are fused into the
    # deconv4 kernel prologue.
    t3 = deconv_taps_pallas(y2, deconv_weight_mat(params["deconv3_w"]),
                            pre="none")
    x3 = col2im_transpose3d(t3, d2, 16, 3, 2, 1)                 # [N,16,7,7,7]

    # deconv4: bn3+relu (prologue) -> taps -> col2im (+bias4); relu4 is fused
    # into the deconv5 kernel prologue.
    t4 = deconv_taps_pallas(ncdhw_to_cm(x3),
                            deconv_weight_mat(params["deconv4_w"]),
                            pre="bn_relu")
    x4 = col2im_transpose3d(t4, (N,) + x3.shape[2:], 8, 3, 2, 0,
                            bias=params["deconv4_b"])            # [N,8,15,15,15]

    # deconv5: relu(x4) (prologue) -> taps (tiled over M, parallel) -> col2im.
    t5 = deconv_taps_pallas(ncdhw_to_cm(x4),
                            deconv_weight_mat(params["deconv5_w"]),
                            pre="relu")
    out = col2im_transpose3d(t5, (N,) + x4.shape[2:], 1, 3, 2, 0,
                             bias=params["deconv5_b"])           # [N,1,31,31,31]
    return out


# ------------------------ pure-JAX reference path ---------------------------

def encoder_decoder_forward_ref(x, params, eps=BN_EPS):
    """Independent XLA reference with PyTorch semantics (f32, HIGHEST precision)."""
    dn = ("NCDHW", "OIDHW", "NCDHW")

    def bn_relu(y):
        mean = jnp.mean(y, axis=(0, 2, 3, 4), keepdims=True)
        var = jnp.mean(jnp.square(y - mean), axis=(0, 2, 3, 4), keepdims=True)
        return jnp.maximum((y - mean) / jnp.sqrt(var + eps), 0.0)

    def conv(x, w, b, stride, pad):
        y = lax.conv_general_dilated(
            x, w, (stride,) * 3, [(pad, pad)] * 3, dimension_numbers=dn,
            precision=lax.Precision.HIGHEST)
        return y + b.reshape(1, -1, 1, 1, 1)

    def deconv(x, w, b, stride, pad):
        # ConvTranspose3d == lhs-dilated conv with flipped, in/out-swapped weights.
        wf = jnp.transpose(jnp.flip(w, axis=(2, 3, 4)), (1, 0, 2, 3, 4))
        y = lax.conv_general_dilated(
            x, wf, (1,) * 3, [(2 - pad, 2 - pad)] * 3,
            lhs_dilation=(stride,) * 3, dimension_numbers=dn,
            precision=lax.Precision.HIGHEST)
        return y + b.reshape(1, -1, 1, 1, 1)

    x = bn_relu(conv(x, params["conv1_w"], params["conv1_b"], 2, 1))
    x = bn_relu(conv(x, params["conv2_w"], params["conv2_b"], 2, 1))
    x = bn_relu(deconv(x, params["deconv3_w"], params["deconv3_b"], 2, 1))
    x = jnp.maximum(deconv(x, params["deconv4_w"], params["deconv4_b"], 2, 0), 0.0)
    return deconv(x, params["deconv5_w"], params["deconv5_b"], 2, 0)


# --------------------------------- main --------------------------------------

def init_params(key):
    def w(key, shape, scale=0.1):
        return scale * jax.random.normal(key, shape, jnp.float32)

    ks = jax.random.split(key, 10)
    return {
        # Conv3d weights: [Cout, Cin, 3, 3, 3]
        "conv1_w": w(ks[0], (16, 1, 3, 3, 3)),  "conv1_b": w(ks[1], (16,), 0.01),
        "conv2_w": w(ks[2], (32, 16, 3, 3, 3)), "conv2_b": w(ks[3], (32,), 0.01),
        # ConvTranspose3d weights: [Cin, Cout, 3, 3, 3]
        "deconv3_w": w(ks[4], (32, 16, 3, 3, 3)), "deconv3_b": w(ks[5], (16,), 0.01),
        "deconv4_w": w(ks[6], (16, 8, 3, 3, 3)),  "deconv4_b": w(ks[7], (8,), 0.01),
        "deconv5_w": w(ks[8], (8, 1, 3, 3, 3)),   "deconv5_b": w(ks[9], (1,), 0.01),
    }


if __name__ == "__main__":
    key = jax.random.PRNGKey(0)
    kx, kp = jax.random.split(key)
    x = jax.random.normal(kx, (2, 1, 16, 16, 16), jnp.float32)   # NCDHW
    params = init_params(kp)

    out = jax.jit(encoder_decoder_forward_pallas)(x, params)
    out = jax.block_until_ready(out)
    assert out.shape == (2, 1, 31, 31, 31), out.shape

    ref = jax.block_until_ready(encoder_decoder_forward_ref(x, params))
    err = float(jnp.max(jnp.abs(out - ref)) / (jnp.max(jnp.abs(ref)) + 1e-8))
    assert err < 1e-2, f"relative error too large: {err}"

    print("KERNEL_OK")
</pallas_src>

<mosaic_0001>
module attributes {stable_mosaic.version = 11 : i64} {
  func.func @conv_bn_relu_kernel(%arg0: i32, %arg1: memref<27x1024xf32, #tpu.memory_space<vmem>>, %arg2: memref<16x27xf32, #tpu.memory_space<vmem>>, %arg3: memref<16x1024xf32, #tpu.memory_space<vmem>>) attributes {dimension_semantics = [#tpu.dimension_semantics<arbitrary>], iteration_bounds = array<i64: 1>, scalar_prefetch = 0 : i64, scratch_operands = 0 : i64, tpu.core_type = #tpu.core_type<tc>, window_params = [{pipeline_mode = #tpu.pipeline_mode<synchronous>, transform_indices = @transform_0, window_bounds = array<i64: 27, 1024>}, {pipeline_mode = #tpu.pipeline_mode<synchronous>, transform_indices = @transform_1, window_bounds = array<i64: 16, 27>}, {pipeline_mode = #tpu.pipeline_mode<synchronous>, transform_indices = @transform_2, window_bounds = array<i64: 16, 1024>}]} {
    %c0 = arith.constant 0 : index
    %c0_0 = arith.constant 0 : index
    %0 = vector.load %arg2[%c0, %c0_0] : memref<16x27xf32, #tpu.memory_space<vmem>>, vector<16x27xf32>
    %c0_1 = arith.constant 0 : index
    %c0_2 = arith.constant 0 : index
    %1 = vector.load %arg1[%c0_1, %c0_2] : memref<27x1024xf32, #tpu.memory_space<vmem>>, vector<27x1024xf32>
    %cst = arith.constant dense<0.000000e+00> : vector<16x1024xf32>
    %2 = tpu.matmul %0, %1, %cst {dimension_numbers = #tpu.dot_dimension_numbers<[1], [0], [0], [1], [0, 0, 1, 1], [], []>} : vector<16x27xf32>, vector<27x1024xf32>, vector<16x1024xf32> -> vector<16x1024xf32>
    %cst_3 = arith.constant dense<0.000000e+00> : vector<16xf32>
    %3 = vector.multi_reduction <add>, %2, %cst_3 [1] : vector<16x1024xf32> to vector<16xf32>
    %4 = vector.shape_cast %3 : vector<16xf32> to vector<16x1xf32>
    %cst_4 = arith.constant 1.024000e+03 : f32
    %5 = vector.broadcast %cst_4 : f32 to vector<16x1xf32>
    %6 = arith.divf %4, %5 : vector<16x1xf32>
    %7 = vector.broadcast %6 : vector<16x1xf32> to vector<16x1024xf32>
    %8 = arith.subf %2, %7 : vector<16x1024xf32>
    %9 = arith.mulf %8, %8 : vector<16x1024xf32>
    %cst_5 = arith.constant dense<0.000000e+00> : vector<16xf32>
    %10 = vector.multi_reduction <add>, %9, %cst_5 [1] : vector<16x1024xf32> to vector<16xf32>
    %11 = vector.shape_cast %10 : vector<16xf32> to vector<16x1xf32>
    %cst_6 = arith.constant 1.024000e+03 : f32
    %12 = vector.broadcast %cst_6 : f32 to vector<16x1xf32>
    %13 = arith.divf %11, %12 : vector<16x1xf32>
    %14 = vector.broadcast %6 : vector<16x1xf32> to vector<16x1024xf32>
    %15 = arith.subf %2, %14 : vector<16x1024xf32>
    %cst_7 = arith.constant 9.99999974E-6 : f32
    %16 = vector.broadcast %cst_7 : f32 to vector<16x1xf32>
    %17 = arith.addf %13, %16 : vector<16x1xf32>
    %18 = math.rsqrt %17 : vector<16x1xf32>
    %19 = vector.broadcast %18 : vector<16x1xf32> to vector<16x1024xf32>
    %20 = arith.mulf %15, %19 : vector<16x1024xf32>
    %cst_8 = arith.constant 0.000000e+00 : f32
    %21 = vector.broadcast %cst_8 : f32 to vector<16x1024xf32>
    %22 = arith.maximumf %20, %21 : vector<16x1024xf32>
    %c0_9 = arith.constant 0 : index
    %c0_10 = arith.constant 0 : index
    %23 = vector.load %arg3[%c0_9, %c0_10] : memref<16x1024xf32, #tpu.memory_space<vmem>>, vector<16x1024xf32>
    tpu.vector_store %arg3[%c0_9, %c0_10], %22 {strides = array<i32>} : memref<16x1024xf32, #tpu.memory_space<vmem>>, vector<16x1024xf32>,
    return
  }
  func.func @transform_0(%arg0: i32) -> (i32, i32) {
    %c0_i32 = arith.constant 0 : i32
    %c0_i32_0 = arith.constant 0 : i32
    %c0_i32_1 = arith.constant 0 : i32
    return %c0_i32, %c0_i32_0 : i32, i32
  }
  func.func @transform_1(%arg0: i32) -> (i32, i32) {
    %c0_i32 = arith.constant 0 : i32
    %c0_i32_0 = arith.constant 0 : i32
    %c0_i32_1 = arith.constant 0 : i32
    return %c0_i32, %c0_i32_0 : i32, i32
  }
  func.func @transform_2(%arg0: i32) -> (i32, i32) {
    %c0_i32 = arith.constant 0 : i32
    %c0_i32_0 = arith.constant 0 : i32
    %c0_i32_1 = arith.constant 0 : i32
    return %c0_i32, %c0_i32_0 : i32, i32
  }
}

module attributes {stable_mosaic.version = 11 : i64} {
  func.func @conv_bn_relu_kernel(%arg0: i32, %arg1: memref<432x128xf32, #tpu.memory_space<vmem>>, %arg2: memref<32x432xf32, #tpu.memory_space<vmem>>, %arg3: memref<32x128xf32, #tpu.memory_space<vmem>>) attributes {dimension_semantics = [#tpu.dimension_semantics<arbitrary>], iteration_bounds = array<i64: 1>, scalar_prefetch = 0 : i64, scratch_operands = 0 : i64, tpu.core_type = #tpu.core_type<tc>, window_params = [{pipeline_mode = #tpu.pipeline_mode<synchronous>, transform_indices = @transform_0, window_bounds = array<i64: 432, 128>}, {pipeline_mode = #tpu.pipeline_mode<synchronous>, transform_indices = @transform_1, window_bounds = array<i64: 32, 432>}, {pipeline_mode = #tpu.pipeline_mode<synchronous>, transform_indices = @transform_2, window_bounds = array<i64: 32, 128>}]} {
    %c0 = arith.constant 0 : index
    %c0_0 = arith.constant 0 : index
    %0 = vector.load %arg2[%c0, %c0_0] : memref<32x432xf32, #tpu.memory_space<vmem>>, vector<32x432xf32>
    %c0_1 = arith.constant 0 : index
    %c0_2 = arith.constant 0 : index
    %1 = vector.load %arg1[%c0_1, %c0_2] : memref<432x128xf32, #tpu.memory_space<vmem>>, vector<432x128xf32>
    %cst = arith.constant dense<0.000000e+00> : vector<32x128xf32>
    %2 = tpu.matmul %0, %1, %cst {dimension_numbers = #tpu.dot_dimension_numbers<[1], [0], [0], [1], [0, 0, 1, 1], [], []>} : vector<32x432xf32>, vector<432x128xf32>, vector<32x128xf32> -> vector<32x128xf32>
    %cst_3 = arith.constant dense<0.000000e+00> : vector<32xf32>
    %3 = vector.multi_reduction <add>, %2, %cst_3 [1] : vector<32x128xf32> to vector<32xf32>
    %4 = vector.shape_cast %3 : vector<32xf32> to vector<32x1xf32>
    %cst_4 = arith.constant 1.280000e+02 : f32
    %5 = vector.broadcast %cst_4 : f32 to vector<32x1xf32>
    %6 = arith.divf %4, %5 : vector<32x1xf32>
    %7 = vector.broadcast %6 : vector<32x1xf32> to vector<32x128xf32>
    %8 = arith.subf %2, %7 : vector<32x128xf32>
    %9 = arith.mulf %8, %8 : vector<32x128xf32>
    %cst_5 = arith.constant dense<0.000000e+00> : vector<32xf32>
    %10 = vector.multi_reduction <add>, %9, %cst_5 [1] : vector<32x128xf32> to vector<32xf32>
    %11 = vector.shape_cast %10 : vector<32xf32> to vector<32x1xf32>
    %cst_6 = arith.constant 1.280000e+02 : f32
    %12 = vector.broadcast %cst_6 : f32 to vector<32x1xf32>
    %13 = arith.divf %11, %12 : vector<32x1xf32>
    %14 = vector.broadcast %6 : vector<32x1xf32> to vector<32x128xf32>
    %15 = arith.subf %2, %14 : vector<32x128xf32>
    %cst_7 = arith.constant 9.99999974E-6 : f32
    %16 = vector.broadcast %cst_7 : f32 to vector<32x1xf32>
    %17 = arith.addf %13, %16 : vector<32x1xf32>
    %18 = math.rsqrt %17 : vector<32x1xf32>
    %19 = vector.broadcast %18 : vector<32x1xf32> to vector<32x128xf32>
    %20 = arith.mulf %15, %19 : vector<32x128xf32>
    %cst_8 = arith.constant 0.000000e+00 : f32
    %21 = vector.broadcast %cst_8 : f32 to vector<32x128xf32>
    %22 = arith.maximumf %20, %21 : vector<32x128xf32>
    %c0_9 = arith.constant 0 : index
    %c0_10 = arith.constant 0 : index
    %23 = vector.load %arg3[%c0_9, %c0_10] : memref<32x128xf32, #tpu.memory_space<vmem>>, vector<32x128xf32>
    tpu.vector_store %arg3[%c0_9, %c0_10], %22 {strides = array<i32>} : memref<32x128xf32, #tpu.memory_space<vmem>>, vector<32x128xf32>,
    return
  }
  func.func @transform_0(%arg0: i32) -> (i32, i32) {
    %c0_i32 = arith.constant 0 : i32
    %c0_i32_0 = arith.constant 0 : i32
    %c0_i32_1 = arith.constant 0 : i32
    return %c0_i32, %c0_i32_0 : i32, i32
  }
  func.func @transform_1(%arg0: i32) -> (i32, i32) {
    %c0_i32 = arith.constant 0 : i32
    %c0_i32_0 = arith.constant 0 : i32
    %c0_i32_1 = arith.constant 0 : i32
    return %c0_i32, %c0_i32_0 : i32, i32
  }
  func.func @transform_2(%arg0: i32) -> (i32, i32) {
    %c0_i32 = arith.constant 0 : i32
    %c0_i32_0 = arith.constant 0 : i32
    %c0_i32_1 = arith.constant 0 : i32
    return %c0_i32, %c0_i32_0 : i32, i32
  }
}

module attributes {stable_mosaic.version = 11 : i64} {
  func.func @deconv_taps_kernel(%arg0: i32, %arg1: memref<32x128xf32, #tpu.memory_space<vmem>>, %arg2: memref<432x32xf32, #tpu.memory_space<vmem>>, %arg3: memref<432x128xf32, #tpu.memory_space<vmem>>) attributes {dimension_semantics = [#tpu.dimension_semantics<parallel>], iteration_bounds = array<i64: 1>, scalar_prefetch = 0 : i64, scratch_operands = 0 : i64, tpu.core_type = #tpu.core_type<tc>, window_params = [{transform_indices = @transform_0, window_bounds = array<i64: 32, 128>}, {pipeline_mode = #tpu.pipeline_mode<synchronous>, transform_indices = @transform_1, window_bounds = array<i64: 432, 32>}, {transform_indices = @transform_2, window_bounds = array<i64: 432, 128>}]} {
    %c0 = arith.constant 0 : index
    %c0_0 = arith.constant 0 : index
    %0 = vector.load %arg1[%c0, %c0_0] : memref<32x128xf32, #tpu.memory_space<vmem>>, vector<32x128xf32>
    %c0_1 = arith.constant 0 : index
    %c0_2 = arith.constant 0 : index
    %1 = vector.load %arg2[%c0_1, %c0_2] : memref<432x32xf32, #tpu.memory_space<vmem>>, vector<432x32xf32>
    %cst = arith.constant dense<0.000000e+00> : vector<432x128xf32>
    %2 = tpu.matmul %1, %0, %cst {dimension_numbers = #tpu.dot_dimension_numbers<[1], [0], [0], [1], [0, 0, 1, 1], [], []>} : vector<432x32xf32>, vector<32x128xf32>, vector<432x128xf32> -> vector<432x128xf32>
    %c0_3 = arith.constant 0 : index
    %c0_4 = arith.constant 0 : index
    %3 = vector.load %arg3[%c0_3, %c0_4] : memref<432x128xf32, #tpu.memory_space<vmem>>, vector<432x128xf32>
    tpu.vector_store %arg3[%c0_3, %c0_4], %2 {strides = array<i32>} : memref<432x128xf32, #tpu.memory_space<vmem>>, vector<432x128xf32>,
    return
  }
  func.func @transform_0(%arg0: i32) -> (i32, i32) {
    %c0_i32 = arith.constant 0 : i32
    %c0_i32_0 = arith.constant 0 : i32
    return %c0_i32, %arg0 : i32, i32
  }
  func.func @transform_1(%arg0: i32) -> (i32, i32) {
    %c0_i32 = arith.constant 0 : i32
    %c0_i32_0 = arith.constant 0 : i32
    %c0_i32_1 = arith.constant 0 : i32
    return %c0_i32, %c0_i32_0 : i32, i32
  }
  func.func @transform_2(%arg0: i32) -> (i32, i32) {
    %c0_i32 = arith.constant 0 : i32
    %c0_i32_0 = arith.constant 0 : i32
    return %c0_i32, %arg0 : i32, i32
  }
}

module attributes {stable_mosaic.version = 11 : i64} {
  func.func @deconv_taps_kernel(%arg0: i32, %arg1: memref<16x686xf32, #tpu.memory_space<vmem>>, %arg2: memref<216x16xf32, #tpu.memory_space<vmem>>, %arg3: memref<216x686xf32, #tpu.memory_space<vmem>>) attributes {dimension_semantics = [#tpu.dimension_semantics<parallel>], iteration_bounds = array<i64: 1>, scalar_prefetch = 0 : i64, scratch_operands = 0 : i64, tpu.core_type = #tpu.core_type<tc>, window_params = [{transform_indices = @transform_0, window_bounds = array<i64: 16, 686>}, {pipeline_mode = #tpu.pipeline_mode<synchronous>, transform_indices = @transform_1, window_bounds = array<i64: 216, 16>}, {transform_indices = @transform_2, window_bounds = array<i64: 216, 686>}]} {
    %c0 = arith.constant 0 : index
    %c0_0 = arith.constant 0 : index
    %0 = vector.load %arg1[%c0, %c0_0] : memref<16x686xf32, #tpu.memory_space<vmem>>, vector<16x686xf32>
    %cst = arith.constant dense<0.000000e+00> : vector<16xf32>
    %1 = vector.multi_reduction <add>, %0, %cst [1] : vector<16x686xf32> to vector<16xf32>
    %2 = vector.shape_cast %1 : vector<16xf32> to vector<16x1xf32>
    %cst_1 = arith.constant 6.860000e+02 : f32
    %3 = vector.broadcast %cst_1 : f32 to vector<16x1xf32>
    %4 = arith.divf %2, %3 : vector<16x1xf32>
    %5 = vector.broadcast %4 : vector<16x1xf32> to vector<16x686xf32>
    %6 = arith.subf %0, %5 : vector<16x686xf32>
    %7 = arith.mulf %6, %6 : vector<16x686xf32>
    %cst_2 = arith.constant dense<0.000000e+00> : vector<16xf32>
    %8 = vector.multi_reduction <add>, %7, %cst_2 [1] : vector<16x686xf32> to vector<16xf32>
    %9 = vector.shape_cast %8 : vector<16xf32> to vector<16x1xf32>
    %cst_3 = arith.constant 6.860000e+02 : f32
    %10 = vector.broadcast %cst_3 : f32 to vector<16x1xf32>
    %11 = arith.divf %9, %10 : vector<16x1xf32>
    %12 = vector.broadcast %4 : vector<16x1xf32> to vector<16x686xf32>
    %13 = arith.subf %0, %12 : vector<16x686xf32>
    %cst_4 = arith.constant 9.99999974E-6 : f32
    %14 = vector.broadcast %cst_4 : f32 to vector<16x1xf32>
    %15 = arith.addf %11, %14 : vector<16x1xf32>
    %16 = math.rsqrt %15 : vector<16x1xf32>
    %17 = vector.broadcast %16 : vector<16x1xf32> to vector<16x686xf32>
    %18 = arith.mulf %13, %17 : vector<16x686xf32>
    %cst_5 = arith.constant 0.000000e+00 : f32
    %19 = vector.broadcast %cst_5 : f32 to vector<16x686xf32>
    %20 = arith.maximumf %18, %19 : vector<16x686xf32>
    %c0_6 = arith.constant 0 : index
    %c0_7 = arith.constant 0 : index
    %21 = vector.load %arg2[%c0_6, %c0_7] : memref<216x16xf32, #tpu.memory_space<vmem>>, vector<216x16xf32>
    %cst_8 = arith.constant dense<0.000000e+00> : vector<216x686xf32>
    %22 = tpu.matmul %21, %20, %cst_8 {dimension_numbers = #tpu.dot_dimension_numbers<[1], [0], [0], [1], [0, 0, 1, 1], [], []>} : vector<216x16xf32>, vector<16x686xf32>, vector<216x686xf32> -> vector<216x686xf32>
    %c0_9 = arith.constant 0 : index
    %c0_10 = arith.constant 0 : index
    %23 = vector.load %arg3[%c0_9, %c0_10] : memref<216x686xf32, #tpu.memory_space<vmem>>, vector<216x686xf32>
    tpu.vector_store %arg3[%c0_9, %c0_10], %22 {strides = array<i32>} : memref<216x686xf32, #tpu.memory_space<vmem>>, vector<216x686xf32>,
    return
  }
  func.func @transform_0(%arg0: i32) -> (i32, i32) {
    %c0_i32 = arith.constant 0 : i32
    %c0_i32_0 = arith.constant 0 : i32
    return %c0_i32, %arg0 : i32, i32
  }
  func.func @transform_1(%arg0: i32) -> (i32, i32) {
    %c0_i32 = arith.constant 0 : i32
    %c0_i32_0 = arith.constant 0 : i32
    %c0_i32_1 = arith.constant 0 : i32
    return %c0_i32, %c0_i32_0 : i32, i32
  }
  func.func @transform_2(%arg0: i32) -> (i32, i32) {
    %c0_i32 = arith.constant 0 : i32
    %c0_i32_0 = arith.constant 0 : i32
    return %c0_i32, %arg0 : i32, i32
  }
}

module attributes {stable_mosaic.version = 11 : i64} {
  func.func @deconv_taps_kernel(%arg0: i32, %arg1: memref<8x1024xf32, #tpu.memory_space<vmem>>, %arg2: memref<27x8xf32, #tpu.memory_space<vmem>>, %arg3: memref<27x1024xf32, #tpu.memory_space<vmem>>) attributes {dimension_semantics = [#tpu.dimension_semantics<parallel>], iteration_bounds = array<i64: 7>, scalar_prefetch = 0 : i64, scratch_operands = 0 : i64, tpu.core_type = #tpu.core_type<tc>, window_params = [{transform_indices = @transform_0, window_bounds = array<i64: 8, 1024>}, {pipeline_mode = #tpu.pipeline_mode<synchronous>, transform_indices = @transform_1, window_bounds = array<i64: 27, 8>}, {transform_indices = @transform_2, window_bounds = array<i64: 27, 1024>}]} {
    %c0 = arith.constant 0 : index
    %c0_0 = arith.constant 0 : index
    %0 = vector.load %arg1[%c0, %c0_0] : memref<8x1024xf32, #tpu.memory_space<vmem>>, vector<8x1024xf32>
    %cst = arith.constant 0.000000e+00 : f32
    %1 = vector.broadcast %cst : f32 to vector<8x1024xf32>
    %2 = arith.maximumf %0, %1 : vector<8x1024xf32>
    %c0_1 = arith.constant 0 : index
    %c0_2 = arith.constant 0 : index
    %3 = vector.load %arg2[%c0_1, %c0_2] : memref<27x8xf32, #tpu.memory_space<vmem>>, vector<27x8xf32>
    %cst_3 = arith.constant dense<0.000000e+00> : vector<27x1024xf32>
    %4 = tpu.matmul %3, %2, %cst_3 {dimension_numbers = #tpu.dot_dimension_numbers<[1], [0], [0], [1], [0, 0, 1, 1], [], []>} : vector<27x8xf32>, vector<8x1024xf32>, vector<27x1024xf32> -> vector<27x1024xf32>
    %c0_4 = arith.constant 0 : index
    %c0_5 = arith.constant 0 : index
    %5 = vector.load %arg3[%c0_4, %c0_5] : memref<27x1024xf32, #tpu.memory_space<vmem>>, vector<27x1024xf32>
    tpu.vector_store %arg3[%c0_4, %c0_5], %4 {strides = array<i32>} : memref<27x1024xf32, #tpu.memory_space<vmem>>, vector<27x1024xf32>,
    return
  }
  func.func @transform_0(%arg0: i32) -> (i32, i32) {
    %c0_i32 = arith.constant 0 : i32
    %c0_i32_0 = arith.constant 0 : i32
    return %c0_i32, %arg0 : i32, i32
  }
  func.func @transform_1(%arg0: i32) -> (i32, i32) {
    %c0_i32 = arith.constant 0 : i32
    %c0_i32_0 = arith.constant 0 : i32
    %c0_i32_1 = arith.constant 0 : i32
    return %c0_i32, %c0_i32_0 : i32, i32
  }
  func.func @transform_2(%arg0: i32) -> (i32, i32) {
    %c0_i32 = arith.constant 0 : i32
    %c0_i32_0 = arith.constant 0 : i32
    return %c0_i32, %arg0 : i32, i32
  }
}

</mosaic_0001>

<llo_original>
// kernel: encoder_decoder_forward_pallas.5
$region0: #{encoder_decoder_forward_pallas.5}
  #allocation0 [shape = 'u32[]', space=smem, size = 0x4, offset = 0x4, fixed_abs, tag = 'smem constant byte address 0x4 - core index']
  #allocation1 [shape = 'u32[144,128]{1,0:T(1,128)}', space=vmem, size = 0x12000, scoped, tag = 'internal scratch']
  %s0 = inlined_call_operand.vmem [shape: f32[27,1024], index: 0, kind: input, shape index: {}]
  %s1 = inlined_call_operand.vmem [shape: f32[16,27], index: 1, kind: input, shape index: {}]
  %s2 = inlined_call_operand.vmem [shape: f32[16,1024], index: 2, kind: output, shape index: {}]
  %s3 = sld [smem:[#allocation0]]
  $region18: #{encoder_decoder_forward_pallas.5} parent=0
    _
  %s5 = ssub.s32 1, %s3
  %s6 = scalar_select 0, %s5, %s3
  // Predicated region
  $region2: #{encoder_decoder_forward_pallas.5} parent=0 // pred_check
    _
  $region3: #{encoder_decoder_forward_pallas.5} parent=0 // pred_check_branch
    %8 = sbr.rel (0) target = $region5
  $region4: #{encoder_decoder_forward_pallas.5} parent=0 // pred_region
    _
  $region5: #{encoder_decoder_forward_pallas.5} parent=0 // pred_fallthru
    _
  // Predicated region
  $region6: #{encoder_decoder_forward_pallas.5} parent=0 // pred_check
    _
  $region7: #{encoder_decoder_forward_pallas.5} parent=0 // pred_check_branch
    %10 = sbr.rel (0) target = $region9
  $region8: #{encoder_decoder_forward_pallas.5} parent=0 // pred_region
    _
  $region9: #{encoder_decoder_forward_pallas.5} parent=0 // pred_fallthru
    _
  %v11 = vld [vmem:[%s1] sm:$0xff]
  %v12 = vld [vmem:[%s1 + $0x8] sm:$0xff]
  %v13 = vld [vmem:[%s0] sm:$0xff]
  %v14 = vld [vmem:[%s0 + $0x8] sm:$0xff]
  %v15 = vld [vmem:[%s0 + $0x10] sm:$0xff]
  %v16 = vld [vmem:[%s0 + $0x18] sm:$0xff]
  %v17 = vld [vmem:[%s0 + $0x20] sm:$0xff]
  %v18 = vld [vmem:[%s0 + $0x28] sm:$0xff]
  %v19 = vld [vmem:[%s0 + $0x30] sm:$0xff]
  %v20 = vld [vmem:[%s0 + $0x38] sm:$0xff]
  %v21 = vld [vmem:[%s0 + $0x40] sm:$0xff]
  %v22 = vld [vmem:[%s0 + $0x48] sm:$0xff]
  %v23 = vld [vmem:[%s0 + $0x50] sm:$0xff]
  %v24 = vld [vmem:[%s0 + $0x58] sm:$0xff]
  %v25 = vld [vmem:[%s0 + $0x60] sm:$0xff]
  %v26 = vld [vmem:[%s0 + $0x68] sm:$0xff]
  %v27 = vld [vmem:[%s0 + $0x70] sm:$0xff]
  %v28 = vld [vmem:[%s0 + $0x78] sm:$0xff]
  %v29 = vld [vmem:[%s0 + $0x80] sm:$0xff]
  %v30 = vld [vmem:[%s0 + $0x88] sm:$0xff]
  %v31 = vld [vmem:[%s0 + $0x90] sm:$0xff]
  %v32 = vld [vmem:[%s0 + $0x98] sm:$0xff]
  %v33 = vld [vmem:[%s0 + $0xa0] sm:$0xff]
  %v34 = vld [vmem:[%s0 + $0xa8] sm:$0xff]
  %v35 = vld [vmem:[%s0 + $0xb0] sm:$0xff]
  %v36 = vld [vmem:[%s0 + $0xb8] sm:$0xff]
  %v37 = vld [vmem:[%s0 + $0xc0] sm:$0x7]
  %v38 = vld [vmem:[%s0 + $0xc8] sm:$0x7]
  %v39 = vld [vmem:[%s0 + $0xd0] sm:$0x7]
  %v40 = vld [vmem:[%s0 + $0xd8] sm:$0x7]
  %v41 = vld [vmem:[%s0 + $0xe0] sm:$0x7]
  %v42 = vld [vmem:[%s0 + $0xe8] sm:$0x7]
  %v43 = vld [vmem:[%s0 + $0xf0] sm:$0x7]
  %v44 = vld [vmem:[%s0 + $0xf8] sm:$0x7]
  %vm45 = vcmask 220160
  %v47 = vsel %vm45, %v11, 0
  %v50 = vsel %vm45, %v12, 0
  %vm52 = vcmask 1042432
  %v54 = vsel %vm52, %v37, 0
  %v57 = vsel %vm52, %v38, 0
  %v60 = vsel %vm52, %v39, 0
  %v63 = vsel %vm52, %v40, 0
  %v66 = vsel %vm52, %v41, 0
  %v69 = vsel %vm52, %v42, 0
  %v72 = vsel %vm52, %v43, 0
  %v75 = vsel %vm52, %v44, 0
  %77 = vmatprep.subr.mxu0 0.0
  %78 = vmatpush1.msra.mxu0 0.0
  %79 = vmatprep.subr.mxu0 0.0
  %80 = vmatpush1.msra.mxu0 0.0
  %81 = vmatprep.subr.mxu0 0.0
  %82 = vmatpush1.msra.mxu0 0.0
  %83 = vmatprep.subr.mxu0 0.0
  %84 = vmatpush1.msra.mxu0 0.0
  %85 = vmatprep.subr.mxu0 0.0
  %86 = vmatpush1.msra.mxu0 0.0
  %87 = vmatprep.subr.mxu0 0.0
  %88 = vmatpush1.msra.mxu0 0.0
  %89 = vmatprep.subr.mxu0 0.0
  %90 = vmatpush1.msra.mxu0 0.0
  %91 = vmatprep.subr.mxu0 0.0
  %92 = vmatpush1.msra.mxu0 0.0
  %93 = vmatprep.subr.mxu0 0.0
  %94 = vmatpush1.msra.mxu0 0.0
  %95 = vmatprep.subr.mxu0 0.0
  %96 = vmatpush1.msra.mxu0 0.0
  %97 = vmatprep.subr.mxu0 0.0
  %98 = vmatpush1.msra.mxu0 0.0
  %99 = vmatprep.subr.mxu0 0.0
  %100 = vmatpush1.msra.mxu0 0.0
  %101 = vmatprep.subr.mxu0 %v57
  %102 = vmatpush1.msra.mxu0 %v54
  %103 = vmatprep.subr.mxu0 %v30
  %104 = vmatpush1.msra.mxu0 %v29
  %105 = vmatprep.subr.mxu0 %v22
  %106 = vmatpush1.msra.mxu0 %v21
  %107 = vmatprep.subr.mxu0 %v14
  %108 = vmatpush1.msra.mxu0 %v13
  %109 = vmatprep.subr.mxu0 0.0
  %110 = vmatpush2.msra.mxu0 0.0
  %111 = vmatprep.subr.mxu0 0.0
  %112 = vmatpush2.msra.mxu0 0.0
  %113 = vmatprep.subr.mxu0 0.0
  %114 = vmatpush2.msra.mxu0 0.0
  %115 = vmatprep.subr.mxu0 0.0
  %116 = vmatpush2.msra.mxu0 0.0
  %117 = vmatprep.subr.mxu0 0.0
  %118 = vmatpush2.msra.mxu0 0.0
  %119 = vmatprep.subr.mxu0 0.0
  %120 = vmatpush2.msra.mxu0 0.0
  %121 = vmatprep.subr.mxu0 0.0
  %122 = vmatpush2.msra.mxu0 0.0
  %123 = vmatprep.subr.mxu0 0.0
  %124 = vmatpush2.msra.mxu0 0.0
  %125 = vmatprep.subr.mxu0 0.0
  %126 = vmatpush2.msra.mxu0 0.0
  %127 = vmatprep.subr.mxu0 0.0
  %128 = vmatpush2.msra.mxu0 0.0
  %129 = vmatprep.subr.mxu0 0.0
  %130 = vmatpush2.msra.mxu0 0.0
  %131 = vmatprep.subr.mxu0 0.0
  %132 = vmatpush2.msra.mxu0 0.0
  %133 = vmatprep.subr.mxu0 0.0
  %134 = vmatpush2.msra.mxu0 0.0
  %135 = vmatprep.subr.mxu0 0.0
  %136 = vmatpush2.msra.mxu0 0.0
  %137 = vmatprep.subr.mxu0 0.0
  %138 = vmatpush2.msra.mxu0 0.0
  %139 = vmatprep.subr.mxu0 0.0
  %140 = vmatpush2.msra.mxu0 0.0
  %141 = vmatprep.mubr.f32.mxu0 0.0
  %142 = vmatmul.mubr.f32.gmra.mxu0 %v47
  %v143 = vpop.f32.mrf.mxu0
  %v144 = vadd.f32 0.0, %v143
  %v145 = vpop.f32.mrf.mxu0
  %v146 = vadd.f32 0.0, %v145
  %147 = vmatprep.mubr.f32.mxu0 0.0
  %148 = vmatmul.mubr.f32.gmra.mxu0 %v50
  %v149 = vpop.f32.mrf.mxu0
  %v150 = vadd.f32 0.0, %v149
  %v151 = vpop.f32.mrf.mxu0
  %v152 = vadd.f32 0.0, %v151
  %153 = vdwg.mxu0
  %154 = vmatprep.subr.mxu0 0.0
  %155 = vmatpush1.msra.mxu0 0.0
  %156 = vmatprep.subr.mxu0 0.0
  %157 = vmatpush1.msra.mxu0 0.0
  %158 = vmatprep.subr.mxu0 0.0
  %159 = vmatpush1.msra.mxu0 0.0
  %160 = vmatprep.subr.mxu0 0.0
  %161 = vmatpush1.msra.mxu0 0.0
  %162 = vmatprep.subr.mxu0 0.0
  %163 = vmatpush1.msra.mxu0 0.0
  %164 = vmatprep.subr.mxu0 0.0
  %165 = vmatpush1.msra.mxu0 0.0
  %166 = vmatprep.subr.mxu0 0.0
  %167 = vmatpush1.msra.mxu0 0.0
  %168 = vmatprep.subr.mxu0 0.0
  %169 = vmatpush1.msra.mxu0 0.0
  %170 = vmatprep.subr.mxu0 0.0
  %171 = vmatpush1.msra.mxu0 0.0
  %172 = vmatprep.subr.mxu0 0.0
  %173 = vmatpush1.msra.mxu0 0.0
  %174 = vmatprep.subr.mxu0 0.0
  %175 = vmatpush1.msra.mxu0 0.0
  %176 = vmatprep.subr.mxu0 0.0
  %177 = vmatpush1.msra.mxu0 0.0
  %178 = vmatprep.subr.mxu0 %v63
  %179 = vmatpush1.msra.mxu0 %v60
  %180 = vmatprep.subr.mxu0 %v32
  %181 = vmatpush1.msra.mxu0 %v31
  %182 = vmatprep.subr.mxu0 %v24
  %183 = vmatpush1.msra.mxu0 %v23
  %184 = vmatprep.subr.mxu0 %v16
  %185 = vmatpush1.msra.mxu0 %v15
  %186 = vmatprep.subr.mxu0 0.0
  %187 = vmatpush2.msra.mxu0 0.0
  %188 = vmatprep.subr.mxu0 0.0
  %189 = vmatpush2.msra.mxu0 0.0
  %190 = vmatprep.subr.mxu0 0.0
  %191 = vmatpush2.msra.mxu0 0.0
  %192 = vmatprep.subr.mxu0 0.0
  %193 = vmatpush2.msra.mxu0 0.0
  %194 = vmatprep.subr.mxu0 0.0
  %195 = vmatpush2.msra.mxu0 0.0
  %196 = vmatprep.subr.mxu0 0.0
  %197 = vmatpush2.msra.mxu0 0.0
  %198 = vmatprep.subr.mxu0 0.0
  %199 = vmatpush2.msra.mxu0 0.0
  %200 = vmatprep.subr.mxu0 0.0
  %201 = vmatpush2.msra.mxu0 0.0
  %202 = vmatprep.subr.mxu0 0.0
  %203 = vmatpush2.msra.mxu0 0.0
  %204 = vmatprep.subr.mxu0 0.0
  %205 = vmatpush2.msra.mxu0 0.0
  %206 = vmatprep.subr.mxu0 0.0
  %207 = vmatpush2.msra.mxu0 0.0
  %208 = vmatprep.subr.mxu0 0.0
  %209 = vmatpush2.msra.mxu0 0.0
  %210 = vmatprep.subr.mxu0 0.0
  %211 = vmatpush2.msra.mxu0 0.0
  %212 = vmatprep.subr.mxu0 0.0
  %213 = vmatpush2.msra.mxu0 0.0
  %214 = vmatprep.subr.mxu0 0.0
  %215 = vmatpush2.msra.mxu0 0.0
  %216 = vmatprep.subr.mxu0 0.0
  %217 = vmatpush2.msra.mxu0 0.0
  %218 = vmatprep.mubr.f32.mxu0 0.0
  %219 = vmatmul.mubr.f32.gmra.mxu0 %v47
  %v220 = vpop.f32.mrf.mxu0
  %v221 = vadd.f32 0.0, %v220
  %v222 = vpop.f32.mrf.mxu0
  %v223 = vadd.f32 0.0, %v222
  %224 = vmatprep.mubr.f32.mxu0 0.0
  %225 = vmatmul.mubr.f32.gmra.mxu0 %v50
  %v226 = vpop.f32.mrf.mxu0
  %v227 = vadd.f32 0.0, %v226
  %v228 = vpop.f32.mrf.mxu0
  %v229 = vadd.f32 0.0, %v228
  %230 = vdwg.mxu0
  %231 = vmatprep.subr.mxu0 0.0
  %232 = vmatpush1.msra.mxu0 0.0
  %233 = vmatprep.subr.mxu0 0.0
  %234 = vmatpush1.msra.mxu0 0.0
  %235 = vmatprep.subr.mxu0 0.0
  %236 = vmatpush1.msra.mxu0 0.0
  %237 = vmatprep.subr.mxu0 0.0
  %238 = vmatpush1.msra.mxu0 0.0
  %239 = vmatprep.subr.mxu0 0.0
  %240 = vmatpush1.msra.mxu0 0.0
  %241 = vmatprep.subr.mxu0 0.0
  %242 = vmatpush1.msra.mxu0 0.0
  %243 = vmatprep.subr.mxu0 0.0
  %244 = vmatpush1.msra.mxu0 0.0
  %245 = vmatprep.subr.mxu0 0.0
  %246 = vmatpush1.msra.mxu0 0.0
  %247 = vmatprep.subr.mxu0 0.0
  %248 = vmatpush1.msra.mxu0 0.0
  %249 = vmatprep.subr.mxu0 0.0
  %250 = vmatpush1.msra.mxu0 0.0
  %251 = vmatprep.subr.mxu0 0.0
  %252 = vmatpush1.msra.mxu0 0.0
  %253 = vmatprep.subr.mxu0 0.0
  %254 = vmatpush1.msra.mxu0 0.0
  %255 = vmatprep.subr.mxu0 %v69
  %256 = vmatpush1.msra.mxu0 %v66
  %257 = vmatprep.subr.mxu0 %v34
  %258 = vmatpush1.msra.mxu0 %v33
  %259 = vmatprep.subr.mxu0 %v26
  %260 = vmatpush1.msra.mxu0 %v25
  %261 = vmatprep.subr.mxu0 %v18
  %262 = vmatpush1.msra.mxu0 %v17
  %263 = vmatprep.subr.mxu0 0.0
  %264 = vmatpush2.msra.mxu0 0.0
  %265 = vmatprep.subr.mxu0 0.0
  %266 = vmatpush2.msra.mxu0 0.0
  %267 = vmatprep.subr.mxu0 0.0
  %268 = vmatpush2.msra.mxu0 0.0
  %269 = vmatprep.subr.mxu0 0.0
  %270 = vmatpush2.msra.mxu0 0.0
  %271 = vmatprep.subr.mxu0 0.0
  %272 = vmatpush2.msra.mxu0 0.0
  %273 = vmatprep.subr.mxu0 0.0
  %274 = vmatpush2.msra.mxu0 0.0
  %275 = vmatprep.subr.mxu0 0.0
  %276 = vmatpush2.msra.mxu0 0.0
  %277 = vmatprep.subr.mxu0 0.0
  %278 = vmatpush2.msra.mxu0 0.0
  %279 = vmatprep.subr.mxu0 0.0
  %280 = vmatpush2.msra.mxu0 0.0
  %281 = vmatprep.subr.mxu0 0.0
  %282 = vmatpush2.msra.mxu0 0.0
  %283 = vmatprep.subr.mxu0 0.0
  %284 = vmatpush2.msra.mxu0 0.0
  %285 = vmatprep.subr.mxu0 0.0
  %286 = vmatpush2.msra.mxu0 0.0
  %287 = vmatprep.subr.mxu0 0.0
  %288 = vmatpush2.msra.mxu0 0.0
  %289 = vmatprep.subr.mxu0 0.0
  %290 = vmatpush2.msra.mxu0 0.0
  %291 = vmatprep.subr.mxu0 0.0
  %292 = vmatpush2.msra.mxu0 0.0
  %293 = vmatprep.subr.mxu0 0.0
  %294 = vmatpush2.msra.mxu0 0.0
  %295 = vmatprep.mubr.f32.mxu0 0.0
  %296 = vmatmul.mubr.f32.gmra.mxu0 %v47
  %v297 = vpop.f32.mrf.mxu0
  %v298 = vadd.f32 0.0, %v297
  %v299 = vpop.f32.mrf.mxu0
  %v300 = vadd.f32 0.0, %v299
  %301 = vmatprep.mubr.f32.mxu0 0.0
  %302 = vmatmul.mubr.f32.gmra.mxu0 %v50
  %v303 = vpop.f32.mrf.mxu0
  %v304 = vadd.f32 0.0, %v303
  %v305 = vpop.f32.mrf.mxu0
  %v306 = vadd.f32 0.0, %v305
  %307 = vdwg.mxu0
  %308 = vmatprep.subr.mxu0 0.0
  %309 = vmatpush1.msra.mxu0 0.0
  %310 = vmatprep.subr.mxu0 0.0
  %311 = vmatpush1.msra.mxu0 0.0
  %312 = vmatprep.subr.mxu0 0.0
  %313 = vmatpush1.msra.mxu0 0.0
  %314 = vmatprep.subr.mxu0 0.0
  %315 = vmatpush1.msra.mxu0 0.0
  %316 = vmatprep.subr.mxu0 0.0
  %317 = vmatpush1.msra.mxu0 0.0
  %318 = vmatprep.subr.mxu0 0.0
  %319 = vmatpush1.msra.mxu0 0.0
  %320 = vmatprep.subr.mxu0 0.0
  %321 = vmatpush1.msra.mxu0 0.0
  %322 = vmatprep.subr.mxu0 0.0
  %323 = vmatpush1.msra.mxu0 0.0
  %324 = vmatprep.subr.mxu0 0.0
  %325 = vmatpush1.msra.mxu0 0.0
  %326 = vmatprep.subr.mxu0 0.0
  %327 = vmatpush1.msra.mxu0 0.0
  %328 = vmatprep.subr.mxu0 0.0
  %329 = vmatpush1.msra.mxu0 0.0
  %330 = vmatprep.subr.mxu0 0.0
  %331 = vmatpush1.msra.mxu0 0.0
  %332 = vmatprep.subr.mxu0 %v75
  %333 = vmatpush1.msra.mxu0 %v72
  %334 = vmatprep.subr.mxu0 %v36
  %335 = vmatpush1.msra.mxu0 %v35
  %336 = vmatprep.subr.mxu0 %v28
  %337 = vmatpush1.msra.mxu0 %v27
  %338 = vmatprep.subr.mxu0 %v20
  %339 = vmatpush1.msra.mxu0 %v19
  %340 = vmatprep.subr.mxu0 0.0
  %341 = vmatpush2.msra.mxu0 0.0
  %342 = vmatprep.subr.mxu0 0.0
  %343 = vmatpush2.msra.mxu0 0.0
  %344 = vmatprep.subr.mxu0 0.0
  %345 = vmatpush2.msra.mxu0 0.0
  %346 = vmatprep.subr.mxu0 0.0
  %347 = vmatpush2.msra.mxu0 0.0
  %348 = vmatprep.subr.mxu0 0.0
  %349 = vmatpush2.msra.mxu0 0.0
  %350 = vmatprep.subr.mxu0 0.0
  %351 = vmatpush2.msra.mxu0 0.0
  %352 = vmatprep.subr.mxu0 0.0
  %353 = vmatpush2.msra.mxu0 0.0
  %354 = vmatprep.subr.mxu0 0.0
  %355 = vmatpush2.msra.mxu0 0.0
  %356 = vmatprep.subr.mxu0 0.0
  %357 = vmatpush2.msra.mxu0 0.0
  %358 = vmatprep.subr.mxu0 0.0
  %359 = vmatpush2.msra.mxu0 0.0
  %360 = vmatprep.subr.mxu0 0.0
  %361 = vmatpush2.msra.mxu0 0.0
  %362 = vmatprep.subr.mxu0 0.0
  %363 = vmatpush2.msra.mxu0 0.0
  %364 = vmatprep.subr.mxu0 0.0
  %365 = vmatpush2.msra.mxu0 0.0
  %366 = vmatprep.subr.mxu0 0.0
  %367 = vmatpush2.msra.mxu0 0.0
  %368 = vmatprep.subr.mxu0 0.0
  %369 = vmatpush2.msra.mxu0 0.0
  %370 = vmatprep.subr.mxu0 0.0
  %371 = vmatpush2.msra.mxu0 0.0
  %372 = vmatprep.mubr.f32.mxu0 0.0
  %373 = vmatmul.mubr.f32.gmra.mxu0 %v47
  %v374 = vpop.f32.mrf.mxu0
  %v375 = vadd.f32 0.0, %v374
  %v376 = vpop.f32.mrf.mxu0
  %v377 = vadd.f32 0.0, %v376
  %378 = vmatprep.mubr.f32.mxu0 0.0
  %379 = vmatmul.mubr.f32.gmra.mxu0 %v50
  %v380 = vpop.f32.mrf.mxu0
  %v381 = vadd.f32 0.0, %v380
  %v382 = vpop.f32.mrf.mxu0
  %v383 = vadd.f32 0.0, %v382
  %384 = vdwg.mxu0
  %v385 = vadd.f32 %v144, %v146
  %v386 = vadd.f32 %v385, %v221
  %v387 = vadd.f32 %v386, %v223
  %v388 = vadd.f32 %v387, %v298
  %v389 = vadd.f32 %v388, %v300
  %v390 = vadd.f32 %v389, %v375
  %v391 = vadd.f32 %v390, %v377
  %392 = vadd.xlane.f32.xlu0 %v391
  %v393 = vpop.xlane.xlu0 %392
  %v394 = vadd.f32 %v150, %v152
  %v395 = vadd.f32 %v394, %v227
  %v396 = vadd.f32 %v395, %v229
  %v397 = vadd.f32 %v396, %v304
  %v398 = vadd.f32 %v397, %v306
  %v399 = vadd.f32 %v398, %v381
  %v400 = vadd.f32 %v399, %v383
  %401 = vadd.xlane.f32.xlu0 %v400
  %v402 = vpop.xlane.xlu0 %401
  %v403 = vrcp.pop 1024.0
  %v404 = vmul.f32 %v393, %v403
  %v405 = vmul.f32 %v402, %v403
  %v406 = vsub.f32 %v144, %v404
  %v407 = vsub.f32 %v146, %v404
  %v408 = vsub.f32 %v221, %v404
  %v409 = vsub.f32 %v223, %v404
  %v410 = vsub.f32 %v298, %v404
  %v411 = vsub.f32 %v300, %v404
  %v412 = vsub.f32 %v375, %v404
  %v413 = vsub.f32 %v377, %v404
  %v414 = vsub.f32 %v150, %v405
  %v415 = vsub.f32 %v152, %v405
  %v416 = vsub.f32 %v227, %v405
  %v417 = vsub.f32 %v229, %v405
  %v418 = vsub.f32 %v304, %v405
  %v419 = vsub.f32 %v306, %v405
  %v420 = vsub.f32 %v381, %v405
  %v421 = vsub.f32 %v383, %v405
  %v422 = vmul.f32 %v406, %v406
  %v423 = vmul.f32 %v407, %v407
  %v424 = vmul.f32 %v408, %v408
  %v425 = vmul.f32 %v409, %v409
  %v426 = vmul.f32 %v410, %v410
  %v427 = vmul.f32 %v411, %v411
  %v428 = vmul.f32 %v412, %v412
  %v429 = vmul.f32 %v413, %v413
  %v430 = vmul.f32 %v414, %v414
  %v431 = vmul.f32 %v415, %v415
  %v432 = vmul.f32 %v416, %v416
  %v433 = vmul.f32 %v417, %v417
  %v434 = vmul.f32 %v418, %v418
  %v435 = vmul.f32 %v419, %v419
  %v436 = vmul.f32 %v420, %v420
  %v437 = vmul.f32 %v421, %v421
  %v438 = vadd.f32 %v422, %v423
  %v439 = vadd.f32 %v438, %v424
  %v440 = vadd.f32 %v439, %v425
  %v441 = vadd.f32 %v440, %v426
  %v442 = vadd.f32 %v441, %v427
  %v443 = vadd.f32 %v442, %v428
  %v444 = vadd.f32 %v443, %v429
  %445 = vadd.xlane.f32.xlu0 %v444
  %v446 = vpop.xlane.xlu0 %445
  %v447 = vadd.f32 %v430, %v431
  %v448 = vadd.f32 %v447, %v432
  %v449 = vadd.f32 %v448, %v433
  %v450 = vadd.f32 %v449, %v434
  %v451 = vadd.f32 %v450, %v435
  %v452 = vadd.f32 %v451, %v436
  %v453 = vadd.f32 %v452, %v437
  %454 = vadd.xlane.f32.xlu0 %v453
  %v455 = vpop.xlane.xlu0 %454
  %v456 = vmul.f32 %v446, %v403
  %v457 = vmul.f32 %v455, %v403
  %v458 = vadd.f32 %v456, 1e-05
  %v459 = vadd.f32 %v457, 1e-05
  %v460 = vrsqrt.pop %v458
  %v461 = vrsqrt.pop %v459
  %v462 = vmul.f32 %v406, %v460
  %v463 = vmul.f32 %v407, %v460
  %v464 = vmul.f32 %v408, %v460
  %v465 = vmul.f32 %v409, %v460
  %v466 = vmul.f32 %v410, %v460
  %v467 = vmul.f32 %v411, %v460
  %v468 = vmul.f32 %v412, %v460
  %v469 = vmul.f32 %v413, %v460
  %v470 = vmul.f32 %v414, %v461
  %v471 = vmul.f32 %v415, %v461
  %v472 = vmul.f32 %v416, %v461
  %v473 = vmul.f32 %v417, %v461
  %v474 = vmul.f32 %v418, %v461
  %v475 = vmul.f32 %v419, %v461
  %v476 = vmul.f32 %v420, %v461
  %v477 = vmul.f32 %v421, %v461
  %v478 = vmax.f32 %v462, 0.0
  %v479 = vmax.f32 %v463, 0.0
  %v480 = vmax.f32 %v464, 0.0
  %v481 = vmax.f32 %v465, 0.0
  %v482 = vmax.f32 %v466, 0.0
  %v483 = vmax.f32 %v467, 0.0
  %v484 = vmax.f32 %v468, 0.0
  %v485 = vmax.f32 %v469, 0.0
  %v486 = vmax.f32 %v470, 0.0
  %v487 = vmax.f32 %v471, 0.0
  %v488 = vmax.f32 %v472, 0.0
  %v489 = vmax.f32 %v473, 0.0
  %v490 = vmax.f32 %v474, 0.0
  %v491 = vmax.f32 %v475, 0.0
  %v492 = vmax.f32 %v476, 0.0
  %v493 = vmax.f32 %v477, 0.0
  %494 = vst [vmem:[%s2] sm:$0xff] %v478
  %495 = vst [vmem:[%s2 + $0x8] sm:$0xff] %v479
  %496 = vst [vmem:[%s2 + $0x10] sm:$0xff] %v480
  %497 = vst [vmem:[%s2 + $0x18] sm:$0xff] %v481
  %498 = vst [vmem:[%s2 + $0x20] sm:$0xff] %v482
  %499 = vst [vmem:[%s2 + $0x28] sm:$0xff] %v483
  %500 = vst [vmem:[%s2 + $0x30] sm:$0xff] %v484
  %501 = vst [vmem:[%s2 + $0x38] sm:$0xff] %v485
  %502 = vst [vmem:[%s2 + $0x40] sm:$0xff] %v486
  %503 = vst [vmem:[%s2 + $0x48] sm:$0xff] %v487
  %504 = vst [vmem:[%s2 + $0x50] sm:$0xff] %v488
  %505 = vst [vmem:[%s2 + $0x58] sm:$0xff] %v489
  %506 = vst [vmem:[%s2 + $0x60] sm:$0xff] %v490
  %507 = vst [vmem:[%s2 + $0x68] sm:$0xff] %v491
  %508 = vst [vmem:[%s2 + $0x70] sm:$0xff] %v492
  %509 = vst [vmem:[%s2 + $0x78] sm:$0xff] %v493
  // Predicated region
  $region10: #{encoder_decoder_forward_pallas.5} parent=0 // pred_check
    _
  $region11: #{encoder_decoder_forward_pallas.5} parent=0 // pred_check_branch
    %511 = sbr.rel (0) target = $region13
  $region12: #{encoder_decoder_forward_pallas.5} parent=0 // pred_region
    _
  $region13: #{encoder_decoder_forward_pallas.5} parent=0 // pred_fallthru
    _
  // Predicated region
  $region14: #{encoder_decoder_forward_pallas.5} parent=0 // pred_check
    _
  $region15: #{encoder_decoder_forward_pallas.5} parent=0 // pred_check_branch
    %513 = sbr.rel (0) target = $region17
  $region16: #{encoder_decoder_forward_pallas.5} parent=0 // pred_region
    _
  $region17: #{encoder_decoder_forward_pallas.5} parent=0 // pred_fallthru
    _

// kernel: encoder_decoder_forward_pallas.6
$region0: #{encoder_decoder_forward_pallas.6}
  #allocation0 [shape = 'u32[]', space=smem, size = 0x4, offset = 0x4, fixed_abs, tag = 'smem constant byte address 0x4 - core index']
  #allocation1 [shape = 'u32[144,128]{1,0:T(1,128)}', space=vmem, size = 0x12000, scoped, tag = 'internal scratch']
  %s0 = inlined_call_operand.vmem [shape: f32[432,128], index: 0, kind: input, shape index: {}]
  %s1 = inlined_call_operand.vmem [shape: f32[32,432], index: 1, kind: input, shape index: {}]
  %s2 = inlined_call_operand.vmem [shape: f32[32,128], index: 2, kind: output, shape index: {}]
  %s3 = sld [smem:[#allocation0]]
  $region18: #{encoder_decoder_forward_pallas.6} parent=0
    _
  %s5 = ssub.s32 1, %s3
  %s6 = scalar_select 0, %s5, %s3
  // Predicated region
  $region2: #{encoder_decoder_forward_pallas.6} parent=0 // pred_check
    _
  $region3: #{encoder_decoder_forward_pallas.6} parent=0 // pred_check_branch
    %8 = sbr.rel (0) target = $region5
  $region4: #{encoder_decoder_forward_pallas.6} parent=0 // pred_region
    _
  $region5: #{encoder_decoder_forward_pallas.6} parent=0 // pred_fallthru
    _
  // Predicated region
  $region6: #{encoder_decoder_forward_pallas.6} parent=0 // pred_check
    _
  $region7: #{encoder_decoder_forward_pallas.6} parent=0 // pred_check_branch
    %10 = sbr.rel (0) target = $region9
  $region8: #{encoder_decoder_forward_pallas.6} parent=0 // pred_region
    _
  $region9: #{encoder_decoder_forward_pallas.6} parent=0 // pred_fallthru
    _
  %v11 = vld [vmem:[%s1] sm:$0xff]
  %v12 = vld [vmem:[%s1 + $0x8] sm:$0xff]
  %v13 = vld [vmem:[%s1 + $0x10] sm:$0xff]
  %v14 = vld [vmem:[%s1 + $0x18] sm:$0xff]
  %v15 = vld [vmem:[%s1 + $0x20] sm:$0xff]
  %v16 = vld [vmem:[%s1 + $0x28] sm:$0xff]
  %v17 = vld [vmem:[%s1 + $0x30] sm:$0xff]
  %v18 = vld [vmem:[%s1 + $0x38] sm:$0xff]
  %v19 = vld [vmem:[%s1 + $0x40] sm:$0xff]
  %v20 = vld [vmem:[%s1 + $0x48] sm:$0xff]
  %v21 = vld [vmem:[%s1 + $0x50] sm:$0xff]
  %v22 = vld [vmem:[%s1 + $0x58] sm:$0xff]
  %v23 = vld [vmem:[%s1 + $0x60] sm:$0xff]
  %v24 = vld [vmem:[%s1 + $0x68] sm:$0xff]
  %v25 = vld [vmem:[%s1 + $0x70] sm:$0xff]
  %v26 = vld [vmem:[%s1 + $0x78] sm:$0xff]
  %v27 = vld [vmem:[%s0] sm:$0xff]
  %v28 = vld [vmem:[%s0 + $0x8] sm:$0xff]
  %v29 = vld [vmem:[%s0 + $0x10] sm:$0xff]
  %v30 = vld [vmem:[%s0 + $0x18] sm:$0xff]
  %v31 = vld [vmem:[%s0 + $0x20] sm:$0xff]
  %v32 = vld [vmem:[%s0 + $0x28] sm:$0xff]
  %v33 = vld [vmem:[%s0 + $0x30] sm:$0xff]
  %v34 = vld [vmem:[%s0 + $0x38] sm:$0xff]
  %v35 = vld [vmem:[%s0 + $0x40] sm:$0xff]
  %v36 = vld [vmem:[%s0 + $0x48] sm:$0xff]
  %v37 = vld [vmem:[%s0 + $0x50] sm:$0xff]
  %v38 = vld [vmem:[%s0 + $0x58] sm:$0xff]
  %v39 = vld [vmem:[%s0 + $0x60] sm:$0xff]
  %v40 = vld [vmem:[%s0 + $0x68] sm:$0xff]
  %v41 = vld [vmem:[%s0 + $0x70] sm:$0xff]
  %v42 = vld [vmem:[%s0 + $0x78] sm:$0xff]
  %v43 = vld [vmem:[%s0 + $0x80] sm:$0xff]
  %v44 = vld [vmem:[%s0 + $0x88] sm:$0xff]
  %v45 = vld [vmem:[%s0 + $0x90] sm:$0xff]
  %v46 = vld [vmem:[%s0 + $0x98] sm:$0xff]
  %v47 = vld [vmem:[%s0 + $0xa0] sm:$0xff]
  %v48 = vld [vmem:[%s0 + $0xa8] sm:$0xff]
  %v49 = vld [vmem:[%s0 + $0xb0] sm:$0xff]
  %v50 = vld [vmem:[%s0 + $0xb8] sm:$0xff]
  %v51 = vld [vmem:[%s0 + $0xc0] sm:$0xff]
  %v52 = vld [vmem:[%s0 + $0xc8] sm:$0xff]
  %v53 = vld [vmem:[%s0 + $0xd0] sm:$0xff]
  %v54 = vld [vmem:[%s0 + $0xd8] sm:$0xff]
  %v55 = vld [vmem:[%s0 + $0xe0] sm:$0xff]
  %v56 = vld [vmem:[%s0 + $0xe8] sm:$0xff]
  %v57 = vld [vmem:[%s0 + $0xf0] sm:$0xff]
  %v58 = vld [vmem:[%s0 + $0xf8] sm:$0xff]
  %v59 = vld [vmem:[%s0 + $0x100] sm:$0xff]
  %v60 = vld [vmem:[%s0 + $0x108] sm:$0xff]
  %v61 = vld [vmem:[%s0 + $0x110] sm:$0xff]
  %v62 = vld [vmem:[%s0 + $0x118] sm:$0xff]
  %v63 = vld [vmem:[%s0 + $0x120] sm:$0xff]
  %v64 = vld [vmem:[%s0 + $0x128] sm:$0xff]
  %v65 = vld [vmem:[%s0 + $0x130] sm:$0xff]
  %v66 = vld [vmem:[%s0 + $0x138] sm:$0xff]
  %v67 = vld [vmem:[%s0 + $0x140] sm:$0xff]
  %v68 = vld [vmem:[%s0 + $0x148] sm:$0xff]
  %v69 = vld [vmem:[%s0 + $0x150] sm:$0xff]
  %v70 = vld [vmem:[%s0 + $0x158] sm:$0xff]
  %v71 = vld [vmem:[%s0 + $0x160] sm:$0xff]
  %v72 = vld [vmem:[%s0 + $0x168] sm:$0xff]
  %v73 = vld [vmem:[%s0 + $0x170] sm:$0xff]
  %v74 = vld [vmem:[%s0 + $0x178] sm:$0xff]
  %v75 = vld [vmem:[%s0 + $0x180] sm:$0xff]
  %v76 = vld [vmem:[%s0 + $0x188] sm:$0xff]
  %v77 = vld [vmem:[%s0 + $0x190] sm:$0xff]
  %v78 = vld [vmem:[%s0 + $0x198] sm:$0xff]
  %v79 = vld [vmem:[%s0 + $0x1a0] sm:$0xff]
  %v80 = vld [vmem:[%s0 + $0x1a8] sm:$0xff]
  %vm81 = vcmask 392192
  %v83 = vsel %vm81, %v14, 0
  %v86 = vsel %vm81, %v18, 0
  %v89 = vsel %vm81, %v22, 0
  %v92 = vsel %vm81, %v26, 0
  %94 = vmatprep.subr.mxu0 0.0
  %95 = vmatpush1.msra.mxu0 %v42
  %96 = vmatprep.subr.mxu0 0.0
  %97 = vmatpush1.msra.mxu0 %v41
  %98 = vmatprep.subr.mxu0 0.0
  %99 = vmatpush1.msra.mxu0 %v40
  %100 = vmatprep.subr.mxu0 0.0
  %101 = vmatpush1.msra.mxu0 %v39
  %102 = vmatprep.subr.mxu0 0.0
  %103 = vmatpush1.msra.mxu0 %v38
  %104 = vmatprep.subr.mxu0 0.0
  %105 = vmatpush1.msra.mxu0 %v37
  %106 = vmatprep.subr.mxu0 0.0
  %107 = vmatpush1.msra.mxu0 %v36
  %108 = vmatprep.subr.mxu0 0.0
  %109 = vmatpush1.msra.mxu0 %v35
  %110 = vmatprep.subr.mxu0 0.0
  %111 = vmatpush1.msra.mxu0 %v34
  %112 = vmatprep.subr.mxu0 0.0
  %113 = vmatpush1.msra.mxu0 %v33
  %114 = vmatprep.subr.mxu0 0.0
  %115 = vmatpush1.msra.mxu0 %v32
  %116 = vmatprep.subr.mxu0 0.0
  %117 = vmatpush1.msra.mxu0 %v31
  %118 = vmatprep.subr.mxu0 0.0
  %119 = vmatpush1.msra.mxu0 %v30
  %120 = vmatprep.subr.mxu0 0.0
  %121 = vmatpush1.msra.mxu0 %v29
  %122 = vmatprep.subr.mxu0 0.0
  %123 = vmatpush1.msra.mxu0 %v28
  %124 = vmatprep.subr.mxu0 0.0
  %125 = vmatpush1.msra.mxu0 %v27
  %126 = vmatprep.subr.mxu0 0.0
  %127 = vmatpush2.msra.mxu0 %v58
  %128 = vmatprep.subr.mxu0 0.0
  %129 = vmatpush2.msra.mxu0 %v57
  %130 = vmatprep.subr.mxu0 0.0
  %131 = vmatpush2.msra.mxu0 %v56
  %132 = vmatprep.subr.mxu0 0.0
  %133 = vmatpush2.msra.mxu0 %v55
  %134 = vmatprep.subr.mxu0 0.0
  %135 = vmatpush2.msra.mxu0 %v54
  %136 = vmatprep.subr.mxu0 0.0
  %137 = vmatpush2.msra.mxu0 %v53
  %138 = vmatprep.subr.mxu0 0.0
  %139 = vmatpush2.msra.mxu0 %v52
  %140 = vmatprep.subr.mxu0 0.0
  %141 = vmatpush2.msra.mxu0 %v51
  %142 = vmatprep.subr.mxu0 0.0
  %143 = vmatpush2.msra.mxu0 %v50
  %144 = vmatprep.subr.mxu0 0.0
  %145 = vmatpush2.msra.mxu0 %v49
  %146 = vmatprep.subr.mxu0 0.0
  %147 = vmatpush2.msra.mxu0 %v48
  %148 = vmatprep.subr.mxu0 0.0
  %149 = vmatpush2.msra.mxu0 %v47
  %150 = vmatprep.subr.mxu0 0.0
  %151 = vmatpush2.msra.mxu0 %v46
  %152 = vmatprep.subr.mxu0 0.0
  %153 = vmatpush2.msra.mxu0 %v45
  %154 = vmatprep.subr.mxu0 0.0
  %155 = vmatpush2.msra.mxu0 %v44
  %156 = vmatprep.subr.mxu0 0.0
  %157 = vmatpush2.msra.mxu0 %v43
  %158 = vmatprep.mubr.f32.mxu0 %v12
  %159 = vmatmul.mubr.f32.gmra.mxu0 %v11
  %v160 = vpop.f32.mrf.mxu0
  %v161 = vadd.f32 0.0, %v160
  %v162 = vpop.f32.mrf.mxu0
  %163 = vmatprep.mubr.f32.mxu0 %v16
  %164 = vmatmul.mubr.f32.gmra.mxu0 %v15
  %v165 = vpop.f32.mrf.mxu0
  %v166 = vadd.f32 0.0, %v165
  %v167 = vpop.f32.mrf.mxu0
  %168 = vmatprep.mubr.f32.mxu0 %v20
  %169 = vmatmul.mubr.f32.gmra.mxu0 %v19
  %v170 = vpop.f32.mrf.mxu0
  %v171 = vadd.f32 0.0, %v170
  %v172 = vpop.f32.mrf.mxu0
  %173 = vmatprep.mubr.f32.mxu0 %v24
  %174 = vmatmul.mubr.f32.gmra.mxu0 %v23
  %v175 = vpop.f32.mrf.mxu0
  %v176 = vadd.f32 0.0, %v175
  %v177 = vpop.f32.mrf.mxu0
  %178 = vdwg.mxu0
  %179 = vmatprep.subr.mxu0 0.0
  %180 = vmatpush1.msra.mxu0 %v74
  %181 = vmatprep.subr.mxu0 0.0
  %182 = vmatpush1.msra.mxu0 %v73
  %183 = vmatprep.subr.mxu0 0.0
  %184 = vmatpush1.msra.mxu0 %v72
  %185 = vmatprep.subr.mxu0 0.0
  %186 = vmatpush1.msra.mxu0 %v71
  %187 = vmatprep.subr.mxu0 0.0
  %188 = vmatpush1.msra.mxu0 %v70
  %189 = vmatprep.subr.mxu0 0.0
  %190 = vmatpush1.msra.mxu0 %v69
  %191 = vmatprep.subr.mxu0 0.0
  %192 = vmatpush1.msra.mxu0 %v68
  %193 = vmatprep.subr.mxu0 0.0
  %194 = vmatpush1.msra.mxu0 %v67
  %195 = vmatprep.subr.mxu0 0.0
  %196 = vmatpush1.msra.mxu0 %v66
  %197 = vmatprep.subr.mxu0 0.0
  %198 = vmatpush1.msra.mxu0 %v65
  %199 = vmatprep.subr.mxu0 0.0
  %200 = vmatpush1.msra.mxu0 %v64
  %201 = vmatprep.subr.mxu0 0.0
  %202 = vmatpush1.msra.mxu0 %v63
  %203 = vmatprep.subr.mxu0 0.0
  %204 = vmatpush1.msra.mxu0 %v62
  %205 = vmatprep.subr.mxu0 0.0
  %206 = vmatpush1.msra.mxu0 %v61
  %207 = vmatprep.subr.mxu0 0.0
  %208 = vmatpush1.msra.mxu0 %v60
  %209 = vmatprep.subr.mxu0 0.0
  %210 = vmatpush1.msra.mxu0 %v59
  %211 = vmatprep.subr.mxu0 0.0
  %212 = vmatpush2.msra.mxu0 0.0
  %213 = vmatprep.subr.mxu0 0.0
  %214 = vmatpush2.msra.mxu0 0.0
  %215 = vmatprep.subr.mxu0 0.0
  %216 = vmatpush2.msra.mxu0 0.0
  %217 = vmatprep.subr.mxu0 0.0
  %218 = vmatpush2.msra.mxu0 0.0
  %219 = vmatprep.subr.mxu0 0.0
  %220 = vmatpush2.msra.mxu0 0.0
  %221 = vmatprep.subr.mxu0 0.0
  %222 = vmatpush2.msra.mxu0 0.0
  %223 = vmatprep.subr.mxu0 0.0
  %224 = vmatpush2.msra.mxu0 0.0
  %225 = vmatprep.subr.mxu0 0.0
  %226 = vmatpush2.msra.mxu0 0.0
  %227 = vmatprep.subr.mxu0 0.0
  %228 = vmatpush2.msra.mxu0 0.0
  %229 = vmatprep.subr.mxu0 0.0
  %230 = vmatpush2.msra.mxu0 0.0
  %231 = vmatprep.subr.mxu0 0.0
  %232 = vmatpush2.msra.mxu0 %v80
  %233 = vmatprep.subr.mxu0 0.0
  %234 = vmatpush2.msra.mxu0 %v79
  %235 = vmatprep.subr.mxu0 0.0
  %236 = vmatpush2.msra.mxu0 %v78
  %237 = vmatprep.subr.mxu0 0.0
  %238 = vmatpush2.msra.mxu0 %v77
  %239 = vmatprep.subr.mxu0 0.0
  %240 = vmatpush2.msra.mxu0 %v76
  %241 = vmatprep.subr.mxu0 0.0
  %242 = vmatpush2.msra.mxu0 %v75
  %243 = vmatprep.mubr.f32.mxu0 %v83
  %244 = vmatmul.mubr.f32.gmra.mxu0 %v13
  %v245 = vpop.f32.mrf.mxu0
  %v246 = vadd.f32 %v161, %v245
  %v247 = vpop.f32.mrf.mxu0
  %248 = vmatprep.mubr.f32.mxu0 %v86
  %249 = vmatmul.mubr.f32.gmra.mxu0 %v17
  %v250 = vpop.f32.mrf.mxu0
  %v251 = vadd.f32 %v166, %v250
  %v252 = vpop.f32.mrf.mxu0
  %253 = vmatprep.mubr.f32.mxu0 %v89
  %254 = vmatmul.mubr.f32.gmra.mxu0 %v21
  %v255 = vpop.f32.mrf.mxu0
  %v256 = vadd.f32 %v171, %v255
  %v257 = vpop.f32.mrf.mxu0
  %258 = vmatprep.mubr.f32.mxu0 %v92
  %259 = vmatmul.mubr.f32.gmra.mxu0 %v25
  %v260 = vpop.f32.mrf.mxu0
  %v261 = vadd.f32 %v176, %v260
  %v262 = vpop.f32.mrf.mxu0
  %263 = vdwg.mxu0
  %264 = vadd.xlane.f32.xlu0 %v246
  %v265 = vpop.xlane.xlu0 %264
  %266 = vadd.xlane.f32.xlu0 %v251
  %v267 = vpop.xlane.xlu0 %266
  %268 = vadd.xlane.f32.xlu0 %v256
  %v269 = vpop.xlane.xlu0 %268
  %270 = vadd.xlane.f32.xlu0 %v261
  %v271 = vpop.xlane.xlu0 %270
  %v272 = vrcp.pop 128.0
  %v273 = vmul.f32 %v265, %v272
  %v274 = vmul.f32 %v267, %v272
  %v275 = vmul.f32 %v269, %v272
  %v276 = vmul.f32 %v271, %v272
  %v277 = vsub.f32 %v246, %v273
  %v278 = vsub.f32 %v251, %v274
  %v279 = vsub.f32 %v256, %v275
  %v280 = vsub.f32 %v261, %v276
  %v281 = vmul.f32 %v277, %v277
  %v282 = vmul.f32 %v278, %v278
  %v283 = vmul.f32 %v279, %v279
  %v284 = vmul.f32 %v280, %v280
  %285 = vadd.xlane.f32.xlu0 %v281
  %v286 = vpop.xlane.xlu0 %285
  %287 = vadd.xlane.f32.xlu0 %v282
  %v288 = vpop.xlane.xlu0 %287
  %289 = vadd.xlane.f32.xlu0 %v283
  %v290 = vpop.xlane.xlu0 %289
  %291 = vadd.xlane.f32.xlu0 %v284
  %v292 = vpop.xlane.xlu0 %291
  %v293 = vmul.f32 %v286, %v272
  %v294 = vmul.f32 %v288, %v272
  %v295 = vmul.f32 %v290, %v272
  %v296 = vmul.f32 %v292, %v272
  %v297 = vadd.f32 %v293, 1e-05
  %v298 = vadd.f32 %v294, 1e-05
  %v299 = vadd.f32 %v295, 1e-05
  %v300 = vadd.f32 %v296, 1e-05
  %v301 = vrsqrt.pop %v297
  %v302 = vrsqrt.pop %v298
  %v303 = vrsqrt.pop %v299
  %v304 = vrsqrt.pop %v300
  %v305 = vmul.f32 %v277, %v301
  %v306 = vmul.f32 %v278, %v302
  %v307 = vmul.f32 %v279, %v303
  %v308 = vmul.f32 %v280, %v304
  %v309 = vmax.f32 %v305, 0.0
  %v310 = vmax.f32 %v306, 0.0
  %v311 = vmax.f32 %v307, 0.0
  %v312 = vmax.f32 %v308, 0.0
  %313 = vst [vmem:[%s2] sm:$0xff] %v309
  %314 = vst [vmem:[%s2 + $0x8] sm:$0xff] %v310
  %315 = vst [vmem:[%s2 + $0x10] sm:$0xff] %v311
  %316 = vst [vmem:[%s2 + $0x18] sm:$0xff] %v312
  // Predicated region
  $region10: #{encoder_decoder_forward_pallas.6} parent=0 // pred_check
    _
  $region11: #{encoder_decoder_forward_pallas.6} parent=0 // pred_check_branch
    %318 = sbr.rel (0) target = $region13
  $region12: #{encoder_decoder_forward_pallas.6} parent=0 // pred_region
    _
  $region13: #{encoder_decoder_forward_pallas.6} parent=0 // pred_fallthru
    _
  // Predicated region
  $region14: #{encoder_decoder_forward_pallas.6} parent=0 // pred_check
    _
  $region15: #{encoder_decoder_forward_pallas.6} parent=0 // pred_check_branch
    %320 = sbr.rel (0) target = $region17
  $region16: #{encoder_decoder_forward_pallas.6} parent=0 // pred_region
    _
  $region17: #{encoder_decoder_forward_pallas.6} parent=0 // pred_fallthru
    _

// kernel: encoder_decoder_forward_pallas.7
$region0: #{encoder_decoder_forward_pallas.7}
  #allocation0 [shape = 'u32[]', space=smem, size = 0x4, offset = 0x4, fixed_abs, tag = 'smem constant byte address 0x4 - core index']
  #allocation1 [shape = 'u32[144,128]{1,0:T(1,128)}', space=vmem, size = 0x12000, scoped, tag = 'internal scratch']
  %s0 = inlined_call_operand.vmem [shape: f32[32,128], index: 0, kind: input, shape index: {}]
  %s1 = inlined_call_operand.vmem [shape: f32[432,32], index: 1, kind: input, shape index: {}]
  %s2 = inlined_call_operand.vmem [shape: f32[432,128], index: 2, kind: output, shape index: {}]
  %s3 = sld [smem:[#allocation0]]
  $region18: #{encoder_decoder_forward_pallas.7} parent=0
    _
  %s5 = ssub.s32 1, %s3
  %s6 = scalar_select 0, %s5, %s3
  // Predicated region
  $region2: #{encoder_decoder_forward_pallas.7} parent=0 // pred_check
    _
  $region3: #{encoder_decoder_forward_pallas.7} parent=0 // pred_check_branch
    %8 = sbr.rel (0) target = $region5
  $region4: #{encoder_decoder_forward_pallas.7} parent=0 // pred_region
    _
  $region5: #{encoder_decoder_forward_pallas.7} parent=0 // pred_fallthru
    _
  // Predicated region
  $region6: #{encoder_decoder_forward_pallas.7} parent=0 // pred_check
    _
  $region7: #{encoder_decoder_forward_pallas.7} parent=0 // pred_check_branch
    %10 = sbr.rel (0) target = $region9
  $region8: #{encoder_decoder_forward_pallas.7} parent=0 // pred_region
    _
  $region9: #{encoder_decoder_forward_pallas.7} parent=0 // pred_fallthru
    _
  %v11 = vld [vmem:[%s0] sm:$0xff]
  %v12 = vld [vmem:[%s0 + $0x8] sm:$0xff]
  %v13 = vld [vmem:[%s0 + $0x10] sm:$0xff]
  %v14 = vld [vmem:[%s0 + $0x18] sm:$0xff]
  %v15 = vld [vmem:[%s1] sm:$0xff]
  %v16 = vld [vmem:[%s1 + $0x8] sm:$0xff]
  %v17 = vld [vmem:[%s1 + $0x10] sm:$0xff]
  %v18 = vld [vmem:[%s1 + $0x18] sm:$0xff]
  %v19 = vld [vmem:[%s1 + $0x20] sm:$0xff]
  %v20 = vld [vmem:[%s1 + $0x28] sm:$0xff]
  %v21 = vld [vmem:[%s1 + $0x30] sm:$0xff]
  %v22 = vld [vmem:[%s1 + $0x38] sm:$0xff]
  %v23 = vld [vmem:[%s1 + $0x40] sm:$0xff]
  %v24 = vld [vmem:[%s1 + $0x48] sm:$0xff]
  %v25 = vld [vmem:[%s1 + $0x50] sm:$0xff]
  %v26 = vld [vmem:[%s1 + $0x58] sm:$0xff]
  %v27 = vld [vmem:[%s1 + $0x60] sm:$0xff]
  %v28 = vld [vmem:[%s1 + $0x68] sm:$0xff]
  %v29 = vld [vmem:[%s1 + $0x70] sm:$0xff]
  %v30 = vld [vmem:[%s1 + $0x78] sm:$0xff]
  %v31 = vld [vmem:[%s1 + $0x80] sm:$0xff]
  %v32 = vld [vmem:[%s1 + $0x88] sm:$0xff]
  %v33 = vld [vmem:[%s1 + $0x90] sm:$0xff]
  %v34 = vld [vmem:[%s1 + $0x98] sm:$0xff]
  %v35 = vld [vmem:[%s1 + $0xa0] sm:$0xff]
  %v36 = vld [vmem:[%s1 + $0xa8] sm:$0xff]
  %v37 = vld [vmem:[%s1 + $0xb0] sm:$0xff]
  %v38 = vld [vmem:[%s1 + $0xb8] sm:$0xff]
  %v39 = vld [vmem:[%s1 + $0xc0] sm:$0xff]
  %v40 = vld [vmem:[%s1 + $0xc8] sm:$0xff]
  %v41 = vld [vmem:[%s1 + $0xd0] sm:$0xff]
  %v42 = vld [vmem:[%s1 + $0xd8] sm:$0xff]
  %v43 = vld [vmem:[%s1 + $0xe0] sm:$0xff]
  %v44 = vld [vmem:[%s1 + $0xe8] sm:$0xff]
  %v45 = vld [vmem:[%s1 + $0xf0] sm:$0xff]
  %v46 = vld [vmem:[%s1 + $0xf8] sm:$0xff]
  %v47 = vld [vmem:[%s1 + $0x100] sm:$0xff]
  %v48 = vld [vmem:[%s1 + $0x108] sm:$0xff]
  %v49 = vld [vmem:[%s1 + $0x110] sm:$0xff]
  %v50 = vld [vmem:[%s1 + $0x118] sm:$0xff]
  %v51 = vld [vmem:[%s1 + $0x120] sm:$0xff]
  %v52 = vld [vmem:[%s1 + $0x128] sm:$0xff]
  %v53 = vld [vmem:[%s1 + $0x130] sm:$0xff]
  %v54 = vld [vmem:[%s1 + $0x138] sm:$0xff]
  %v55 = vld [vmem:[%s1 + $0x140] sm:$0xff]
  %v56 = vld [vmem:[%s1 + $0x148] sm:$0xff]
  %v57 = vld [vmem:[%s1 + $0x150] sm:$0xff]
  %v58 = vld [vmem:[%s1 + $0x158] sm:$0xff]
  %v59 = vld [vmem:[%s1 + $0x160] sm:$0xff]
  %v60 = vld [vmem:[%s1 + $0x168] sm:$0xff]
  %v61 = vld [vmem:[%s1 + $0x170] sm:$0xff]
  %v62 = vld [vmem:[%s1 + $0x178] sm:$0xff]
  %v63 = vld [vmem:[%s1 + $0x180] sm:$0xff]
  %v64 = vld [vmem:[%s1 + $0x188] sm:$0xff]
  %v65 = vld [vmem:[%s1 + $0x190] sm:$0xff]
  %v66 = vld [vmem:[%s1 + $0x198] sm:$0xff]
  %v67 = vld [vmem:[%s1 + $0x1a0] sm:$0xff]
  %v68 = vld [vmem:[%s1 + $0x1a8] sm:$0xff]
  %vm69 = vcmask 261120
  %v71 = vsel %vm69, %v15, 0
  %v74 = vsel %vm69, %v16, 0
  %v77 = vsel %vm69, %v17, 0
  %v80 = vsel %vm69, %v18, 0
  %v83 = vsel %vm69, %v19, 0
  %v86 = vsel %vm69, %v20, 0
  %v89 = vsel %vm69, %v21, 0
  %v92 = vsel %vm69, %v22, 0
  %v95 = vsel %vm69, %v23, 0
  %v98 = vsel %vm69, %v24, 0
  %v101 = vsel %vm69, %v25, 0
  %v104 = vsel %vm69, %v26, 0
  %v107 = vsel %vm69, %v27, 0
  %v110 = vsel %vm69, %v28, 0
  %v113 = vsel %vm69, %v29, 0
  %v116 = vsel %vm69, %v30, 0
  %v119 = vsel %vm69, %v31, 0
  %v122 = vsel %vm69, %v32, 0
  %v125 = vsel %vm69, %v33, 0
  %v128 = vsel %vm69, %v34, 0
  %v131 = vsel %vm69, %v35, 0
  %v134 = vsel %vm69, %v36, 0
  %v137 = vsel %vm69, %v37, 0
  %v140 = vsel %vm69, %v38, 0
  %v143 = vsel %vm69, %v39, 0
  %v146 = vsel %vm69, %v40, 0
  %v149 = vsel %vm69, %v41, 0
  %v152 = vsel %vm69, %v42, 0
  %v155 = vsel %vm69, %v43, 0
  %v158 = vsel %vm69, %v44, 0
  %v161 = vsel %vm69, %v45, 0
  %v164 = vsel %vm69, %v46, 0
  %v167 = vsel %vm69, %v47, 0
  %v170 = vsel %vm69, %v48, 0
  %v173 = vsel %vm69, %v49, 0
  %v176 = vsel %vm69, %v50, 0
  %v179 = vsel %vm69, %v51, 0
  %v182 = vsel %vm69, %v52, 0
  %v185 = vsel %vm69, %v53, 0
  %v188 = vsel %vm69, %v54, 0
  %v191 = vsel %vm69, %v55, 0
  %v194 = vsel %vm69, %v56, 0
  %v197 = vsel %vm69, %v57, 0
  %v200 = vsel %vm69, %v58, 0
  %v203 = vsel %vm69, %v59, 0
  %v206 = vsel %vm69, %v60, 0
  %v209 = vsel %vm69, %v61, 0
  %v212 = vsel %vm69, %v62, 0
  %v215 = vsel %vm69, %v63, 0
  %v218 = vsel %vm69, %v64, 0
  %v221 = vsel %vm69, %v65, 0
  %v224 = vsel %vm69, %v66, 0
  %v227 = vsel %vm69, %v67, 0
  %v230 = vsel %vm69, %v68, 0
  %232 = vmatprep.subr.mxu0 0.0
  %233 = vmatpush1.msra.mxu0 0.0
  %234 = vmatprep.subr.mxu0 0.0
  %235 = vmatpush1.msra.mxu0 0.0
  %236 = vmatprep.subr.mxu0 0.0
  %237 = vmatpush1.msra.mxu0 0.0
  %238 = vmatprep.subr.mxu0 0.0
  %239 = vmatpush1.msra.mxu0 0.0
  %240 = vmatprep.subr.mxu0 0.0
  %241 = vmatpush1.msra.mxu0 0.0
  %242 = vmatprep.subr.mxu0 0.0
  %243 = vmatpush1.msra.mxu0 0.0
  %244 = vmatprep.subr.mxu0 0.0
  %245 = vmatpush1.msra.mxu0 0.0
  %246 = vmatprep.subr.mxu0 0.0
  %247 = vmatpush1.msra.mxu0 0.0
  %248 = vmatprep.subr.mxu0 0.0
  %249 = vmatpush1.msra.mxu0 0.0
  %250 = vmatprep.subr.mxu0 0.0
  %251 = vmatpush1.msra.mxu0 0.0
  %252 = vmatprep.subr.mxu0 0.0
  %253 = vmatpush1.msra.mxu0 0.0
  %254 = vmatprep.subr.mxu0 0.0
  %255 = vmatpush1.msra.mxu0 0.0
  %256 = vmatprep.subr.mxu0 0.0
  %257 = vmatpush1.msra.mxu0 %v14
  %258 = vmatprep.subr.mxu0 0.0
  %259 = vmatpush1.msra.mxu0 %v13
  %260 = vmatprep.subr.mxu0 0.0
  %261 = vmatpush1.msra.mxu0 %v12
  %262 = vmatprep.subr.mxu0 0.0
  %263 = vmatpush1.msra.mxu0 %v11
  %264 = vmatprep.subr.mxu0 0.0
  %265 = vmatpush2.msra.mxu0 0.0
  %266 = vmatprep.subr.mxu0 0.0
  %267 = vmatpush2.msra.mxu0 0.0
  %268 = vmatprep.subr.mxu0 0.0
  %269 = vmatpush2.msra.mxu0 0.0
  %270 = vmatprep.subr.mxu0 0.0
  %271 = vmatpush2.msra.mxu0 0.0
  %272 = vmatprep.subr.mxu0 0.0
  %273 = vmatpush2.msra.mxu0 0.0
  %274 = vmatprep.subr.mxu0 0.0
  %275 = vmatpush2.msra.mxu0 0.0
  %276 = vmatprep.subr.mxu0 0.0
  %277 = vmatpush2.msra.mxu0 0.0
  %278 = vmatprep.subr.mxu0 0.0
  %279 = vmatpush2.msra.mxu0 0.0
  %280 = vmatprep.subr.mxu0 0.0
  %281 = vmatpush2.msra.mxu0 0.0
  %282 = vmatprep.subr.mxu0 0.0
  %283 = vmatpush2.msra.mxu0 0.0
  %284 = vmatprep.subr.mxu0 0.0
  %285 = vmatpush2.msra.mxu0 0.0
  %286 = vmatprep.subr.mxu0 0.0
  %287 = vmatpush2.msra.mxu0 0.0
  %288 = vmatprep.subr.mxu0 0.0
  %289 = vmatpush2.msra.mxu0 0.0
  %290 = vmatprep.subr.mxu0 0.0
  %291 = vmatpush2.msra.mxu0 0.0
  %292 = vmatprep.subr.mxu0 0.0
  %293 = vmatpush2.msra.mxu0 0.0
  %294 = vmatprep.subr.mxu0 0.0
  %295 = vmatpush2.msra.mxu0 0.0
  %296 = vmatprep.mubr.f32.mxu0 0.0
  %297 = vmatmul.mubr.f32.gmra.mxu0 %v71
  %v298 = vpop.f32.mrf.mxu0
  %v299 = vadd.f32 0.0, %v298
  %v300 = vpop.f32.mrf.mxu0
  %301 = vmatprep.mubr.f32.mxu0 0.0
  %302 = vmatmul.mubr.f32.gmra.mxu0 %v74
  %v303 = vpop.f32.mrf.mxu0
  %v304 = vadd.f32 0.0, %v303
  %v305 = vpop.f32.mrf.mxu0
  %306 = vmatprep.mubr.f32.mxu0 0.0
  %307 = vmatmul.mubr.f32.gmra.mxu0 %v77
  %v308 = vpop.f32.mrf.mxu0
  %v309 = vadd.f32 0.0, %v308
  %v310 = vpop.f32.mrf.mxu0
  %311 = vmatprep.mubr.f32.mxu0 0.0
  %312 = vmatmul.mubr.f32.gmra.mxu0 %v80
  %v313 = vpop.f32.mrf.mxu0
  %v314 = vadd.f32 0.0, %v313
  %v315 = vpop.f32.mrf.mxu0
  %316 = vmatprep.mubr.f32.mxu0 0.0
  %317 = vmatmul.mubr.f32.gmra.mxu0 %v83
  %v318 = vpop.f32.mrf.mxu0
  %v319 = vadd.f32 0.0, %v318
  %v320 = vpop.f32.mrf.mxu0
  %321 = vmatprep.mubr.f32.mxu0 0.0
  %322 = vmatmul.mubr.f32.gmra.mxu0 %v86
  %v323 = vpop.f32.mrf.mxu0
  %v324 = vadd.f32 0.0, %v323
  %v325 = vpop.f32.mrf.mxu0
  %326 = vmatprep.mubr.f32.mxu0 0.0
  %327 = vmatmul.mubr.f32.gmra.mxu0 %v89
  %v328 = vpop.f32.mrf.mxu0
  %v329 = vadd.f32 0.0, %v328
  %v330 = vpop.f32.mrf.mxu0
  %331 = vmatprep.mubr.f32.mxu0 0.0
  %332 = vmatmul.mubr.f32.gmra.mxu0 %v92
  %v333 = vpop.f32.mrf.mxu0
  %v334 = vadd.f32 0.0, %v333
  %v335 = vpop.f32.mrf.mxu0
  %336 = vmatprep.mubr.f32.mxu0 0.0
  %337 = vmatmul.mubr.f32.gmra.mxu0 %v95
  %v338 = vpop.f32.mrf.mxu0
  %v339 = vadd.f32 0.0, %v338
  %v340 = vpop.f32.mrf.mxu0
  %341 = vmatprep.mubr.f32.mxu0 0.0
  %342 = vmatmul.mubr.f32.gmra.mxu0 %v98
  %v343 = vpop.f32.mrf.mxu0
  %v344 = vadd.f32 0.0, %v343
  %v345 = vpop.f32.mrf.mxu0
  %346 = vmatprep.mubr.f32.mxu0 0.0
  %347 = vmatmul.mubr.f32.gmra.mxu0 %v101
  %v348 = vpop.f32.mrf.mxu0
  %v349 = vadd.f32 0.0, %v348
  %v350 = vpop.f32.mrf.mxu0
  %351 = vmatprep.mubr.f32.mxu0 0.0
  %352 = vmatmul.mubr.f32.gmra.mxu0 %v104
  %v353 = vpop.f32.mrf.mxu0
  %v354 = vadd.f32 0.0, %v353
  %v355 = vpop.f32.mrf.mxu0
  %356 = vmatprep.mubr.f32.mxu0 0.0
  %357 = vmatmul.mubr.f32.gmra.mxu0 %v107
  %v358 = vpop.f32.mrf.mxu0
  %v359 = vadd.f32 0.0, %v358
  %v360 = vpop.f32.mrf.mxu0
  %361 = vmatprep.mubr.f32.mxu0 0.0
  %362 = vmatmul.mubr.f32.gmra.mxu0 %v110
  %v363 = vpop.f32.mrf.mxu0
  %v364 = vadd.f32 0.0, %v363
  %v365 = vpop.f32.mrf.mxu0
  %366 = vmatprep.mubr.f32.mxu0 0.0
  %367 = vmatmul.mubr.f32.gmra.mxu0 %v113
  %v368 = vpop.f32.mrf.mxu0
  %v369 = vadd.f32 0.0, %v368
  %v370 = vpop.f32.mrf.mxu0
  %371 = vmatprep.mubr.f32.mxu0 0.0
  %372 = vmatmul.mubr.f32.gmra.mxu0 %v116
  %v373 = vpop.f32.mrf.mxu0
  %v374 = vadd.f32 0.0, %v373
  %v375 = vpop.f32.mrf.mxu0
  %376 = vmatprep.mubr.f32.mxu0 0.0
  %377 = vmatmul.mubr.f32.gmra.mxu0 %v119
  %v378 = vpop.f32.mrf.mxu0
  %v379 = vadd.f32 0.0, %v378
  %v380 = vpop.f32.mrf.mxu0
  %381 = vmatprep.mubr.f32.mxu0 0.0
  %382 = vmatmul.mubr.f32.gmra.mxu0 %v122
  %v383 = vpop.f32.mrf.mxu0
  %v384 = vadd.f32 0.0, %v383
  %v385 = vpop.f32.mrf.mxu0
  %386 = vmatprep.mubr.f32.mxu0 0.0
  %387 = vmatmul.mubr.f32.gmra.mxu0 %v125
  %v388 = vpop.f32.mrf.mxu0
  %v389 = vadd.f32 0.0, %v388
  %v390 = vpop.f32.mrf.mxu0
  %391 = vmatprep.mubr.f32.mxu0 0.0
  %392 = vmatmul.mubr.f32.gmra.mxu0 %v128
  %v393 = vpop.f32.mrf.mxu0
  %v394 = vadd.f32 0.0, %v393
  %v395 = vpop.f32.mrf.mxu0
  %396 = vmatprep.mubr.f32.mxu0 0.0
  %397 = vmatmul.mubr.f32.gmra.mxu0 %v131
  %v398 = vpop.f32.mrf.mxu0
  %v399 = vadd.f32 0.0, %v398
  %v400 = vpop.f32.mrf.mxu0
  %401 = vmatprep.mubr.f32.mxu0 0.0
  %402 = vmatmul.mubr.f32.gmra.mxu0 %v134
  %v403 = vpop.f32.mrf.mxu0
  %v404 = vadd.f32 0.0, %v403
  %v405 = vpop.f32.mrf.mxu0
  %406 = vmatprep.mubr.f32.mxu0 0.0
  %407 = vmatmul.mubr.f32.gmra.mxu0 %v137
  %v408 = vpop.f32.mrf.mxu0
  %v409 = vadd.f32 0.0, %v408
  %v410 = vpop.f32.mrf.mxu0
  %411 = vmatprep.mubr.f32.mxu0 0.0
  %412 = vmatmul.mubr.f32.gmra.mxu0 %v140
  %v413 = vpop.f32.mrf.mxu0
  %v414 = vadd.f32 0.0, %v413
  %v415 = vpop.f32.mrf.mxu0
  %416 = vmatprep.mubr.f32.mxu0 0.0
  %417 = vmatmul.mubr.f32.gmra.mxu0 %v143
  %v418 = vpop.f32.mrf.mxu0
  %v419 = vadd.f32 0.0, %v418
  %v420 = vpop.f32.mrf.mxu0
  %421 = vmatprep.mubr.f32.mxu0 0.0
  %422 = vmatmul.mubr.f32.gmra.mxu0 %v146
  %v423 = vpop.f32.mrf.mxu0
  %v424 = vadd.f32 0.0, %v423
  %v425 = vpop.f32.mrf.mxu0
  %426 = vmatprep.mubr.f32.mxu0 0.0
  %427 = vmatmul.mubr.f32.gmra.mxu0 %v149
  %v428 = vpop.f32.mrf.mxu0
  %v429 = vadd.f32 0.0, %v428
  %v430 = vpop.f32.mrf.mxu0
  %431 = vmatprep.mubr.f32.mxu0 0.0
  %432 = vmatmul.mubr.f32.gmra.mxu0 %v152
  %v433 = vpop.f32.mrf.mxu0
  %v434 = vadd.f32 0.0, %v433
  %v435 = vpop.f32.mrf.mxu0
  %436 = vmatprep.mubr.f32.mxu0 0.0
  %437 = vmatmul.mubr.f32.gmra.mxu0 %v155
  %v438 = vpop.f32.mrf.mxu0
  %v439 = vadd.f32 0.0, %v438
  %v440 = vpop.f32.mrf.mxu0
  %441 = vmatprep.mubr.f32.mxu0 0.0
  %442 = vmatmul.mubr.f32.gmra.mxu0 %v158
  %v443 = vpop.f32.mrf.mxu0
  %v444 = vadd.f32 0.0, %v443
  %v445 = vpop.f32.mrf.mxu0
  %446 = vmatprep.mubr.f32.mxu0 0.0
  %447 = vmatmul.mubr.f32.gmra.mxu0 %v161
  %v448 = vpop.f32.mrf.mxu0
  %v449 = vadd.f32 0.0, %v448
  %v450 = vpop.f32.mrf.mxu0
  %451 = vmatprep.mubr.f32.mxu0 0.0
  %452 = vmatmul.mubr.f32.gmra.mxu0 %v164
  %v453 = vpop.f32.mrf.mxu0
  %v454 = vadd.f32 0.0, %v453
  %v455 = vpop.f32.mrf.mxu0
  %456 = vmatprep.mubr.f32.mxu0 0.0
  %457 = vmatmul.mubr.f32.gmra.mxu0 %v167
  %v458 = vpop.f32.mrf.mxu0
  %v459 = vadd.f32 0.0, %v458
  %v460 = vpop.f32.mrf.mxu0
  %461 = vmatprep.mubr.f32.mxu0 0.0
  %462 = vmatmul.mubr.f32.gmra.mxu0 %v170
  %v463 = vpop.f32.mrf.mxu0
  %v464 = vadd.f32 0.0, %v463
  %v465 = vpop.f32.mrf.mxu0
  %466 = vmatprep.mubr.f32.mxu0 0.0
  %467 = vmatmul.mubr.f32.gmra.mxu0 %v173
  %v468 = vpop.f32.mrf.mxu0
  %v469 = vadd.f32 0.0, %v468
  %v470 = vpop.f32.mrf.mxu0
  %471 = vmatprep.mubr.f32.mxu0 0.0
  %472 = vmatmul.mubr.f32.gmra.mxu0 %v176
  %v473 = vpop.f32.mrf.mxu0
  %v474 = vadd.f32 0.0, %v473
  %v475 = vpop.f32.mrf.mxu0
  %476 = vmatprep.mubr.f32.mxu0 0.0
  %477 = vmatmul.mubr.f32.gmra.mxu0 %v179
  %v478 = vpop.f32.mrf.mxu0
  %v479 = vadd.f32 0.0, %v478
  %v480 = vpop.f32.mrf.mxu0
  %481 = vmatprep.mubr.f32.mxu0 0.0
  %482 = vmatmul.mubr.f32.gmra.mxu0 %v182
  %v483 = vpop.f32.mrf.mxu0
  %v484 = vadd.f32 0.0, %v483
  %v485 = vpop.f32.mrf.mxu0
  %486 = vmatprep.mubr.f32.mxu0 0.0
  %487 = vmatmul.mubr.f32.gmra.mxu0 %v185
  %v488 = vpop.f32.mrf.mxu0
  %v489 = vadd.f32 0.0, %v488
  %v490 = vpop.f32.mrf.mxu0
  %491 = vmatprep.mubr.f32.mxu0 0.0
  %492 = vmatmul.mubr.f32.gmra.mxu0 %v188
  %v493 = vpop.f32.mrf.mxu0
  %v494 = vadd.f32 0.0, %v493
  %v495 = vpop.f32.mrf.mxu0
  %496 = vmatprep.mubr.f32.mxu0 0.0
  %497 = vmatmul.mubr.f32.gmra.mxu0 %v191
  %v498 = vpop.f32.mrf.mxu0
  %v499 = vadd.f32 0.0, %v498
  %v500 = vpop.f32.mrf.mxu0
  %501 = vmatprep.mubr.f32.mxu0 0.0
  %502 = vmatmul.mubr.f32.gmra.mxu0 %v194
  %v503 = vpop.f32.mrf.mxu0
  %v504 = vadd.f32 0.0, %v503
  %v505 = vpop.f32.mrf.mxu0
  %506 = vmatprep.mubr.f32.mxu0 0.0
  %507 = vmatmul.mubr.f32.gmra.mxu0 %v197
  %v508 = vpop.f32.mrf.mxu0
  %v509 = vadd.f32 0.0, %v508
  %v510 = vpop.f32.mrf.mxu0
  %511 = vmatprep.mubr.f32.mxu0 0.0
  %512 = vmatmul.mubr.f32.gmra.mxu0 %v200
  %v513 = vpop.f32.mrf.mxu0
  %v514 = vadd.f32 0.0, %v513
  %v515 = vpop.f32.mrf.mxu0
  %516 = vmatprep.mubr.f32.mxu0 0.0
  %517 = vmatmul.mubr.f32.gmra.mxu0 %v203
  %v518 = vpop.f32.mrf.mxu0
  %v519 = vadd.f32 0.0, %v518
  %v520 = vpop.f32.mrf.mxu0
  %521 = vmatprep.mubr.f32.mxu0 0.0
  %522 = vmatmul.mubr.f32.gmra.mxu0 %v206
  %v523 = vpop.f32.mrf.mxu0
  %v524 = vadd.f32 0.0, %v523
  %v525 = vpop.f32.mrf.mxu0
  %526 = vmatprep.mubr.f32.mxu0 0.0
  %527 = vmatmul.mubr.f32.gmra.mxu0 %v209
  %v528 = vpop.f32.mrf.mxu0
  %v529 = vadd.f32 0.0, %v528
  %v530 = vpop.f32.mrf.mxu0
  %531 = vmatprep.mubr.f32.mxu0 0.0
  %532 = vmatmul.mubr.f32.gmra.mxu0 %v212
  %v533 = vpop.f32.mrf.mxu0
  %v534 = vadd.f32 0.0, %v533
  %v535 = vpop.f32.mrf.mxu0
  %536 = vmatprep.mubr.f32.mxu0 0.0
  %537 = vmatmul.mubr.f32.gmra.mxu0 %v215
  %v538 = vpop.f32.mrf.mxu0
  %v539 = vadd.f32 0.0, %v538
  %v540 = vpop.f32.mrf.mxu0
  %541 = vmatprep.mubr.f32.mxu0 0.0
  %542 = vmatmul.mubr.f32.gmra.mxu0 %v218
  %v543 = vpop.f32.mrf.mxu0
  %v544 = vadd.f32 0.0, %v543
  %v545 = vpop.f32.mrf.mxu0
  %546 = vmatprep.mubr.f32.mxu0 0.0
  %547 = vmatmul.mubr.f32.gmra.mxu0 %v221
  %v548 = vpop.f32.mrf.mxu0
  %v549 = vadd.f32 0.0, %v548
  %v550 = vpop.f32.mrf.mxu0
  %551 = vmatprep.mubr.f32.mxu0 0.0
  %552 = vmatmul.mubr.f32.gmra.mxu0 %v224
  %v553 = vpop.f32.mrf.mxu0
  %v554 = vadd.f32 0.0, %v553
  %v555 = vpop.f32.mrf.mxu0
  %556 = vmatprep.mubr.f32.mxu0 0.0
  %557 = vmatmul.mubr.f32.gmra.mxu0 %v227
  %v558 = vpop.f32.mrf.mxu0
  %v559 = vadd.f32 0.0, %v558
  %v560 = vpop.f32.mrf.mxu0
  %561 = vmatprep.mubr.f32.mxu0 0.0
  %562 = vmatmul.mubr.f32.gmra.mxu0 %v230
  %v563 = vpop.f32.mrf.mxu0
  %v564 = vadd.f32 0.0, %v563
  %v565 = vpop.f32.mrf.mxu0
  %566 = vdwg.mxu0
  %567 = vst [vmem:[%s2] sm:$0xff] %v299
  %568 = vst [vmem:[%s2 + $0x8] sm:$0xff] %v304
  %569 = vst [vmem:[%s2 + $0x10] sm:$0xff] %v309
  %570 = vst [vmem:[%s2 + $0x18] sm:$0xff] %v314
  %571 = vst [vmem:[%s2 + $0x20] sm:$0xff] %v319
  %572 = vst [vmem:[%s2 + $0x28] sm:$0xff] %v324
  %573 = vst [vmem:[%s2 + $0x30] sm:$0xff] %v329
  %574 = vst [vmem:[%s2 + $0x38] sm:$0xff] %v334
  %575 = vst [vmem:[%s2 + $0x40] sm:$0xff] %v339
  %576 = vst [vmem:[%s2 + $0x48] sm:$0xff] %v344
  %577 = vst [vmem:[%s2 + $0x50] sm:$0xff] %v349
  %578 = vst [vmem:[%s2 + $0x58] sm:$0xff] %v354
  %579 = vst [vmem:[%s2 + $0x60] sm:$0xff] %v359
  %580 = vst [vmem:[%s2 + $0x68] sm:$0xff] %v364
  %581 = vst [vmem:[%s2 + $0x70] sm:$0xff] %v369
  %582 = vst [vmem:[%s2 + $0x78] sm:$0xff] %v374
  %583 = vst [vmem:[%s2 + $0x80] sm:$0xff] %v379
  %584 = vst [vmem:[%s2 + $0x88] sm:$0xff] %v384
  %585 = vst [vmem:[%s2 + $0x90] sm:$0xff] %v389
  %586 = vst [vmem:[%s2 + $0x98] sm:$0xff] %v394
  %587 = vst [vmem:[%s2 + $0xa0] sm:$0xff] %v399
  %588 = vst [vmem:[%s2 + $0xa8] sm:$0xff] %v404
  %589 = vst [vmem:[%s2 + $0xb0] sm:$0xff] %v409
  %590 = vst [vmem:[%s2 + $0xb8] sm:$0xff] %v414
  %591 = vst [vmem:[%s2 + $0xc0] sm:$0xff] %v419
  %592 = vst [vmem:[%s2 + $0xc8] sm:$0xff] %v424
  %593 = vst [vmem:[%s2 + $0xd0] sm:$0xff] %v429
  %594 = vst [vmem:[%s2 + $0xd8] sm:$0xff] %v434
  %595 = vst [vmem:[%s2 + $0xe0] sm:$0xff] %v439
  %596 = vst [vmem:[%s2 + $0xe8] sm:$0xff] %v444
  %597 = vst [vmem:[%s2 + $0xf0] sm:$0xff] %v449
  %598 = vst [vmem:[%s2 + $0xf8] sm:$0xff] %v454
  %599 = vst [vmem:[%s2 + $0x100] sm:$0xff] %v459
  %600 = vst [vmem:[%s2 + $0x108] sm:$0xff] %v464
  %601 = vst [vmem:[%s2 + $0x110] sm:$0xff] %v469
  %602 = vst [vmem:[%s2 + $0x118] sm:$0xff] %v474
  %603 = vst [vmem:[%s2 + $0x120] sm:$0xff] %v479
  %604 = vst [vmem:[%s2 + $0x128] sm:$0xff] %v484
  %605 = vst [vmem:[%s2 + $0x130] sm:$0xff] %v489
  %606 = vst [vmem:[%s2 + $0x138] sm:$0xff] %v494
  %607 = vst [vmem:[%s2 + $0x140] sm:$0xff] %v499
  %608 = vst [vmem:[%s2 + $0x148] sm:$0xff] %v504
  %609 = vst [vmem:[%s2 + $0x150] sm:$0xff] %v509
  %610 = vst [vmem:[%s2 + $0x158] sm:$0xff] %v514
  %611 = vst [vmem:[%s2 + $0x160] sm:$0xff] %v519
  %612 = vst [vmem:[%s2 + $0x168] sm:$0xff] %v524
  %613 = vst [vmem:[%s2 + $0x170] sm:$0xff] %v529
  %614 = vst [vmem:[%s2 + $0x178] sm:$0xff] %v534
  %615 = vst [vmem:[%s2 + $0x180] sm:$0xff] %v539
  %616 = vst [vmem:[%s2 + $0x188] sm:$0xff] %v544
  %617 = vst [vmem:[%s2 + $0x190] sm:$0xff] %v549
  %618 = vst [vmem:[%s2 + $0x198] sm:$0xff] %v554
  %619 = vst [vmem:[%s2 + $0x1a0] sm:$0xff] %v559
  %620 = vst [vmem:[%s2 + $0x1a8] sm:$0xff] %v564
  // Predicated region
  $region10: #{encoder_decoder_forward_pallas.7} parent=0 // pred_check
    _
  $region11: #{encoder_decoder_forward_pallas.7} parent=0 // pred_check_branch
    %622 = sbr.rel (0) target = $region13
  $region12: #{encoder_decoder_forward_pallas.7} parent=0 // pred_region
    _
  $region13: #{encoder_decoder_forward_pallas.7} parent=0 // pred_fallthru
    _
  // Predicated region
  $region14: #{encoder_decoder_forward_pallas.7} parent=0 // pred_check
    _
  $region15: #{encoder_decoder_forward_pallas.7} parent=0 // pred_check_branch
    %624 = sbr.rel (0) target = $region17
  $region16: #{encoder_decoder_forward_pallas.7} parent=0 // pred_region
    _
  $region17: #{encoder_decoder_forward_pallas.7} parent=0 // pred_fallthru
    _

// kernel: encoder_decoder_forward_pallas.8
$region0: #{encoder_decoder_forward_pallas.8}
  #allocation0 [shape = 'u32[]', space=smem, size = 0x4, offset = 0x4, fixed_abs, tag = 'smem constant byte address 0x4 - core index']
  #allocation1 [shape = 'u32[144,128]{1,0:T(1,128)}', space=vmem, size = 0x12000, scoped, tag = 'internal scratch']
  %s0 = inlined_call_operand.vmem [shape: f32[16,686], index: 0, kind: input, shape index: {}]
  %s1 = inlined_call_operand.vmem [shape: f32[216,16], index: 1, kind: input, shape index: {}]
  %s2 = inlined_call_operand.vmem [shape: f32[216,686], index: 2, kind: output, shape index: {}]
  %s3 = sld [smem:[#allocation0]]
  $region18: #{encoder_decoder_forward_pallas.8} parent=0
    _
  %s5 = ssub.s32 1, %s3
  %s6 = scalar_select 0, %s5, %s3
  // Predicated region
  $region2: #{encoder_decoder_forward_pallas.8} parent=0 // pred_check
    _
  $region3: #{encoder_decoder_forward_pallas.8} parent=0 // pred_check_branch
    %8 = sbr.rel (0) target = $region5
  $region4: #{encoder_decoder_forward_pallas.8} parent=0 // pred_region
    _
  $region5: #{encoder_decoder_forward_pallas.8} parent=0 // pred_fallthru
    _
  // Predicated region
  $region6: #{encoder_decoder_forward_pallas.8} parent=0 // pred_check
    _
  $region7: #{encoder_decoder_forward_pallas.8} parent=0 // pred_check_branch
    %10 = sbr.rel (0) target = $region9
  $region8: #{encoder_decoder_forward_pallas.8} parent=0 // pred_region
    _
  $region9: #{encoder_decoder_forward_pallas.8} parent=0 // pred_fallthru
    _
  %v11 = vld [vmem:[%s0] sm:$0xff]
  %v12 = vld [vmem:[%s0 + $0x8] sm:$0xff]
  %v13 = vld [vmem:[%s0 + $0x10] sm:$0xff]
  %v14 = vld [vmem:[%s0 + $0x18] sm:$0xff]
  %v15 = vld [vmem:[%s0 + $0x20] sm:$0xff]
  %v16 = vld [vmem:[%s0 + $0x28] sm:$0xff]
  %v17 = vld [vmem:[%s0 + $0x30] sm:$0xff]
  %v18 = vld [vmem:[%s0 + $0x38] sm:$0xff]
  %v19 = vld [vmem:[%s0 + $0x40] sm:$0xff]
  %v20 = vld [vmem:[%s0 + $0x48] sm:$0xff]
  %v21 = vld [vmem:[%s0 + $0x50] sm:$0xff]
  %v22 = vld [vmem:[%s0 + $0x58] sm:$0xff]
  %v23 = vadd.f32 %v11, %v12
  %v24 = vadd.f32 %v23, %v13
  %v25 = vadd.f32 %v24, %v14
  %v26 = vadd.f32 %v25, %v15
  %vm27 = vcmask 375808
  %v28 = vsel %vm27, %v16, 0.0
  %v29 = vadd.f32 %v26, %v28
  %30 = vadd.xlane.f32.xlu0 %v29
  %v31 = vpop.xlane.xlu0 %30
  %v32 = vadd.f32 %v17, %v18
  %v33 = vadd.f32 %v32, %v19
  %v34 = vadd.f32 %v33, %v20
  %v35 = vadd.f32 %v34, %v21
  %v36 = vsel %vm27, %v22, 0.0
  %v37 = vadd.f32 %v35, %v36
  %38 = vadd.xlane.f32.xlu0 %v37
  %v39 = vpop.xlane.xlu0 %38
  %v40 = vrcp.pop 686.0
  %v41 = vmul.f32 %v31, %v40
  %v42 = vmul.f32 %v39, %v40
  %v43 = vsub.f32 %v11, %v41
  %v44 = vsub.f32 %v12, %v41
  %v45 = vsub.f32 %v13, %v41
  %v46 = vsub.f32 %v14, %v41
  %v47 = vsub.f32 %v15, %v41
  %v48 = vsub.f32 %v16, %v41
  %v49 = vsub.f32 %v17, %v42
  %v50 = vsub.f32 %v18, %v42
  %v51 = vsub.f32 %v19, %v42
  %v52 = vsub.f32 %v20, %v42
  %v53 = vsub.f32 %v21, %v42
  %v54 = vsub.f32 %v22, %v42
  %v55 = vmul.f32 %v43, %v43
  %v56 = vmul.f32 %v44, %v44
  %v57 = vmul.f32 %v45, %v45
  %v58 = vmul.f32 %v46, %v46
  %v59 = vmul.f32 %v47, %v47
  %v60 = vmul.f32 %v48, %v48
  %v61 = vmul.f32 %v49, %v49
  %v62 = vmul.f32 %v50, %v50
  %v63 = vmul.f32 %v51, %v51
  %v64 = vmul.f32 %v52, %v52
  %v65 = vmul.f32 %v53, %v53
  %v66 = vmul.f32 %v54, %v54
  %v67 = vadd.f32 %v55, %v56
  %v68 = vadd.f32 %v67, %v57
  %v69 = vadd.f32 %v68, %v58
  %v70 = vadd.f32 %v69, %v59
  %v71 = vsel %vm27, %v60, 0.0
  %v72 = vadd.f32 %v70, %v71
  %73 = vadd.xlane.f32.xlu0 %v72
  %v74 = vpop.xlane.xlu0 %73
  %v75 = vadd.f32 %v61, %v62
  %v76 = vadd.f32 %v75, %v63
  %v77 = vadd.f32 %v76, %v64
  %v78 = vadd.f32 %v77, %v65
  %v79 = vsel %vm27, %v66, 0.0
  %v80 = vadd.f32 %v78, %v79
  %81 = vadd.xlane.f32.xlu0 %v80
  %v82 = vpop.xlane.xlu0 %81
  %v83 = vmul.f32 %v74, %v40
  %v84 = vmul.f32 %v82, %v40
  %v85 = vadd.f32 %v83, 1e-05
  %v86 = vadd.f32 %v84, 1e-05
  %v87 = vrsqrt.pop %v85
  %v88 = vrsqrt.pop %v86
  %v89 = vmul.f32 %v43, %v87
  %v90 = vmul.f32 %v44, %v87
  %v91 = vmul.f32 %v45, %v87
  %v92 = vmul.f32 %v46, %v87
  %v93 = vmul.f32 %v47, %v87
  %v94 = vmul.f32 %v48, %v87
  %v95 = vmul.f32 %v49, %v88
  %v96 = vmul.f32 %v50, %v88
  %v97 = vmul.f32 %v51, %v88
  %v98 = vmul.f32 %v52, %v88
  %v99 = vmul.f32 %v53, %v88
  %v100 = vmul.f32 %v54, %v88
  %v101 = vmax.f32 %v89, 0.0
  %v102 = vmax.f32 %v90, 0.0
  %v103 = vmax.f32 %v91, 0.0
  %v104 = vmax.f32 %v92, 0.0
  %v105 = vmax.f32 %v93, 0.0
  %v106 = vmax.f32 %v94, 0.0
  %v107 = vmax.f32 %v95, 0.0
  %v108 = vmax.f32 %v96, 0.0
  %v109 = vmax.f32 %v97, 0.0
  %v110 = vmax.f32 %v98, 0.0
  %v111 = vmax.f32 %v99, 0.0
  %v112 = vmax.f32 %v100, 0.0
  %v113 = vld [vmem:[%s1] sm:$0xff]
  %v114 = vld [vmem:[%s1 + $0x8] sm:$0xff]
  %v115 = vld [vmem:[%s1 + $0x10] sm:$0xff]
  %v116 = vld [vmem:[%s1 + $0x18] sm:$0xff]
  %v117 = vld [vmem:[%s1 + $0x20] sm:$0xff]
  %v118 = vld [vmem:[%s1 + $0x28] sm:$0xff]
  %v119 = vld [vmem:[%s1 + $0x30] sm:$0xff]
  %v120 = vld [vmem:[%s1 + $0x38] sm:$0xff]
  %v121 = vld [vmem:[%s1 + $0x40] sm:$0xff]
  %v122 = vld [vmem:[%s1 + $0x48] sm:$0xff]
  %v123 = vld [vmem:[%s1 + $0x50] sm:$0xff]
  %v124 = vld [vmem:[%s1 + $0x58] sm:$0xff]
  %v125 = vld [vmem:[%s1 + $0x60] sm:$0xff]
  %v126 = vld [vmem:[%s1 + $0x68] sm:$0xff]
  %v127 = vld [vmem:[%s1 + $0x70] sm:$0xff]
  %v128 = vld [vmem:[%s1 + $0x78] sm:$0xff]
  %v129 = vld [vmem:[%s1 + $0x80] sm:$0xff]
  %v130 = vld [vmem:[%s1 + $0x88] sm:$0xff]
  %v131 = vld [vmem:[%s1 + $0x90] sm:$0xff]
  %v132 = vld [vmem:[%s1 + $0x98] sm:$0xff]
  %v133 = vld [vmem:[%s1 + $0xa0] sm:$0xff]
  %v134 = vld [vmem:[%s1 + $0xa8] sm:$0xff]
  %v135 = vld [vmem:[%s1 + $0xb0] sm:$0xff]
  %v136 = vld [vmem:[%s1 + $0xb8] sm:$0xff]
  %v137 = vld [vmem:[%s1 + $0xc0] sm:$0xff]
  %v138 = vld [vmem:[%s1 + $0xc8] sm:$0xff]
  %v139 = vld [vmem:[%s1 + $0xd0] sm:$0xff]
  %vm140 = vcmask 130048
  %v142 = vsel %vm140, %v113, 0
  %v145 = vsel %vm140, %v114, 0
  %v148 = vsel %vm140, %v115, 0
  %v151 = vsel %vm140, %v116, 0
  %v154 = vsel %vm140, %v117, 0
  %v157 = vsel %vm140, %v118, 0
  %v160 = vsel %vm140, %v119, 0
  %v163 = vsel %vm140, %v120, 0
  %v166 = vsel %vm140, %v121, 0
  %v169 = vsel %vm140, %v122, 0
  %v172 = vsel %vm140, %v123, 0
  %v175 = vsel %vm140, %v124, 0
  %v178 = vsel %vm140, %v125, 0
  %v181 = vsel %vm140, %v126, 0
  %v184 = vsel %vm140, %v127, 0
  %v187 = vsel %vm140, %v128, 0
  %v190 = vsel %vm140, %v129, 0
  %v193 = vsel %vm140, %v130, 0
  %v196 = vsel %vm140, %v131, 0
  %v199 = vsel %vm140, %v132, 0
  %v202 = vsel %vm140, %v133, 0
  %v205 = vsel %vm140, %v134, 0
  %v208 = vsel %vm140, %v135, 0
  %v211 = vsel %vm140, %v136, 0
  %v214 = vsel %vm140, %v137, 0
  %v217 = vsel %vm140, %v138, 0
  %v220 = vsel %vm140, %v139, 0
  %222 = vmatprep.subr.mxu0 0.0
  %223 = vmatpush1.msra.mxu0 0.0
  %224 = vmatprep.subr.mxu0 0.0
  %225 = vmatpush1.msra.mxu0 0.0
  %226 = vmatprep.subr.mxu0 0.0
  %227 = vmatpush1.msra.mxu0 0.0
  %228 = vmatprep.subr.mxu0 0.0
  %229 = vmatpush1.msra.mxu0 0.0
  %230 = vmatprep.subr.mxu0 0.0
  %231 = vmatpush1.msra.mxu0 0.0
  %232 = vmatprep.subr.mxu0 0.0
  %233 = vmatpush1.msra.mxu0 0.0
  %234 = vmatprep.subr.mxu0 0.0
  %235 = vmatpush1.msra.mxu0 0.0
  %236 = vmatprep.subr.mxu0 0.0
  %237 = vmatpush1.msra.mxu0 0.0
  %238 = vmatprep.subr.mxu0 0.0
  %239 = vmatpush1.msra.mxu0 0.0
  %240 = vmatprep.subr.mxu0 0.0
  %241 = vmatpush1.msra.mxu0 0.0
  %242 = vmatprep.subr.mxu0 0.0
  %243 = vmatpush1.msra.mxu0 0.0
  %244 = vmatprep.subr.mxu0 0.0
  %245 = vmatpush1.msra.mxu0 0.0
  %246 = vmatprep.subr.mxu0 0.0
  %247 = vmatpush1.msra.mxu0 0.0
  %248 = vmatprep.subr.mxu0 0.0
  %249 = vmatpush1.msra.mxu0 0.0
  %250 = vmatprep.subr.mxu0 %v108
  %251 = vmatpush1.msra.mxu0 %v107
  %252 = vmatprep.subr.mxu0 %v102
  %253 = vmatpush1.msra.mxu0 %v101
  %254 = vmatprep.subr.mxu0 0.0
  %255 = vmatpush2.msra.mxu0 0.0
  %256 = vmatprep.subr.mxu0 0.0
  %257 = vmatpush2.msra.mxu0 0.0
  %258 = vmatprep.subr.mxu0 0.0
  %259 = vmatpush2.msra.mxu0 0.0
  %260 = vmatprep.subr.mxu0 0.0
  %261 = vmatpush2.msra.mxu0 0.0
  %262 = vmatprep.subr.mxu0 0.0
  %263 = vmatpush2.msra.mxu0 0.0
  %264 = vmatprep.subr.mxu0 0.0
  %265 = vmatpush2.msra.mxu0 0.0
  %266 = vmatprep.subr.mxu0 0.0
  %267 = vmatpush2.msra.mxu0 0.0
  %268 = vmatprep.subr.mxu0 0.0
  %269 = vmatpush2.msra.mxu0 0.0
  %270 = vmatprep.subr.mxu0 0.0
  %271 = vmatpush2.msra.mxu0 0.0
  %272 = vmatprep.subr.mxu0 0.0
  %273 = vmatpush2.msra.mxu0 0.0
  %274 = vmatprep.subr.mxu0 0.0
  %275 = vmatpush2.msra.mxu0 0.0
  %276 = vmatprep.subr.mxu0 0.0
  %277 = vmatpush2.msra.mxu0 0.0
  %278 = vmatprep.subr.mxu0 0.0
  %279 = vmatpush2.msra.mxu0 0.0
  %280 = vmatprep.subr.mxu0 0.0
  %281 = vmatpush2.msra.mxu0 0.0
  %282 = vmatprep.subr.mxu0 0.0
  %283 = vmatpush2.msra.mxu0 0.0
  %284 = vmatprep.subr.mxu0 0.0
  %285 = vmatpush2.msra.mxu0 0.0
  %286 = vmatprep.mubr.f32.mxu0 0.0
  %287 = vmatmul.mubr.f32.gmra.mxu0 %v142
  %v288 = vpop.f32.mrf.mxu0
  %v289 = vadd.f32 0.0, %v288
  %v290 = vpop.f32.mrf.mxu0
  %v291 = vadd.f32 0.0, %v290
  %292 = vmatprep.mubr.f32.mxu0 0.0
  %293 = vmatmul.mubr.f32.gmra.mxu0 %v145
  %v294 = vpop.f32.mrf.mxu0
  %v295 = vadd.f32 0.0, %v294
  %v296 = vpop.f32.mrf.mxu0
  %v297 = vadd.f32 0.0, %v296
  %298 = vmatprep.mubr.f32.mxu0 0.0
  %299 = vmatmul.mubr.f32.gmra.mxu0 %v148
  %v300 = vpop.f32.mrf.mxu0
  %v301 = vadd.f32 0.0, %v300
  %v302 = vpop.f32.mrf.mxu0
  %v303 = vadd.f32 0.0, %v302
  %304 = vmatprep.mubr.f32.mxu0 0.0
  %305 = vmatmul.mubr.f32.gmra.mxu0 %v151
  %v306 = vpop.f32.mrf.mxu0
  %v307 = vadd.f32 0.0, %v306
  %v308 = vpop.f32.mrf.mxu0
  %v309 = vadd.f32 0.0, %v308
  %310 = vmatprep.mubr.f32.mxu0 0.0
  %311 = vmatmul.mubr.f32.gmra.mxu0 %v154
  %v312 = vpop.f32.mrf.mxu0
  %v313 = vadd.f32 0.0, %v312
  %v314 = vpop.f32.mrf.mxu0
  %v315 = vadd.f32 0.0, %v314
  %316 = vmatprep.mubr.f32.mxu0 0.0
  %317 = vmatmul.mubr.f32.gmra.mxu0 %v157
  %v318 = vpop.f32.mrf.mxu0
  %v319 = vadd.f32 0.0, %v318
  %v320 = vpop.f32.mrf.mxu0
  %v321 = vadd.f32 0.0, %v320
  %322 = vmatprep.mubr.f32.mxu0 0.0
  %323 = vmatmul.mubr.f32.gmra.mxu0 %v160
  %v324 = vpop.f32.mrf.mxu0
  %v325 = vadd.f32 0.0, %v324
  %v326 = vpop.f32.mrf.mxu0
  %v327 = vadd.f32 0.0, %v326
  %328 = vmatprep.mubr.f32.mxu0 0.0
  %329 = vmatmul.mubr.f32.gmra.mxu0 %v163
  %v330 = vpop.f32.mrf.mxu0
  %v331 = vadd.f32 0.0, %v330
  %v332 = vpop.f32.mrf.mxu0
  %v333 = vadd.f32 0.0, %v332
  %334 = vmatprep.mubr.f32.mxu0 0.0
  %335 = vmatmul.mubr.f32.gmra.mxu0 %v166
  %v336 = vpop.f32.mrf.mxu0
  %v337 = vadd.f32 0.0, %v336
  %v338 = vpop.f32.mrf.mxu0
  %v339 = vadd.f32 0.0, %v338
  %340 = vmatprep.mubr.f32.mxu0 0.0
  %341 = vmatmul.mubr.f32.gmra.mxu0 %v169
  %v342 = vpop.f32.mrf.mxu0
  %v343 = vadd.f32 0.0, %v342
  %v344 = vpop.f32.mrf.mxu0
  %v345 = vadd.f32 0.0, %v344
  %346 = vmatprep.mubr.f32.mxu0 0.0
  %347 = vmatmul.mubr.f32.gmra.mxu0 %v172
  %v348 = vpop.f32.mrf.mxu0
  %v349 = vadd.f32 0.0, %v348
  %v350 = vpop.f32.mrf.mxu0
  %v351 = vadd.f32 0.0, %v350
  %352 = vmatprep.mubr.f32.mxu0 0.0
  %353 = vmatmul.mubr.f32.gmra.mxu0 %v175
  %v354 = vpop.f32.mrf.mxu0
  %v355 = vadd.f32 0.0, %v354
  %v356 = vpop.f32.mrf.mxu0
  %v357 = vadd.f32 0.0, %v356
  %358 = vmatprep.mubr.f32.mxu0 0.0
  %359 = vmatmul.mubr.f32.gmra.mxu0 %v178
  %v360 = vpop.f32.mrf.mxu0
  %v361 = vadd.f32 0.0, %v360
  %v362 = vpop.f32.mrf.mxu0
  %v363 = vadd.f32 0.0, %v362
  %364 = vmatprep.mubr.f32.mxu0 0.0
  %365 = vmatmul.mubr.f32.gmra.mxu0 %v181
  %v366 = vpop.f32.mrf.mxu0
  %v367 = vadd.f32 0.0, %v366
  %v368 = vpop.f32.mrf.mxu0
  %v369 = vadd.f32 0.0, %v368
  %370 = vmatprep.mubr.f32.mxu0 0.0
  %371 = vmatmul.mubr.f32.gmra.mxu0 %v184
  %v372 = vpop.f32.mrf.mxu0
  %v373 = vadd.f32 0.0, %v372
  %v374 = vpop.f32.mrf.mxu0
  %v375 = vadd.f32 0.0, %v374
  %376 = vmatprep.mubr.f32.mxu0 0.0
  %377 = vmatmul.mubr.f32.gmra.mxu0 %v187
  %v378 = vpop.f32.mrf.mxu0
  %v379 = vadd.f32 0.0, %v378
  %v380 = vpop.f32.mrf.mxu0
  %v381 = vadd.f32 0.0, %v380
  %382 = vmatprep.mubr.f32.mxu0 0.0
  %383 = vmatmul.mubr.f32.gmra.mxu0 %v190
  %v384 = vpop.f32.mrf.mxu0
  %v385 = vadd.f32 0.0, %v384
  %v386 = vpop.f32.mrf.mxu0
  %v387 = vadd.f32 0.0, %v386
  %388 = vmatprep.mubr.f32.mxu0 0.0
  %389 = vmatmul.mubr.f32.gmra.mxu0 %v193
  %v390 = vpop.f32.mrf.mxu0
  %v391 = vadd.f32 0.0, %v390
  %v392 = vpop.f32.mrf.mxu0
  %v393 = vadd.f32 0.0, %v392
  %394 = vmatprep.mubr.f32.mxu0 0.0
  %395 = vmatmul.mubr.f32.gmra.mxu0 %v196
  %v396 = vpop.f32.mrf.mxu0
  %v397 = vadd.f32 0.0, %v396
  %v398 = vpop.f32.mrf.mxu0
  %v399 = vadd.f32 0.0, %v398
  %400 = vmatprep.mubr.f32.mxu0 0.0
  %401 = vmatmul.mubr.f32.gmra.mxu0 %v199
  %v402 = vpop.f32.mrf.mxu0
  %v403 = vadd.f32 0.0, %v402
  %v404 = vpop.f32.mrf.mxu0
  %v405 = vadd.f32 0.0, %v404
  %406 = vmatprep.mubr.f32.mxu0 0.0
  %407 = vmatmul.mubr.f32.gmra.mxu0 %v202
  %v408 = vpop.f32.mrf.mxu0
  %v409 = vadd.f32 0.0, %v408
  %v410 = vpop.f32.mrf.mxu0
  %v411 = vadd.f32 0.0, %v410
  %412 = vmatprep.mubr.f32.mxu0 0.0
  %413 = vmatmul.mubr.f32.gmra.mxu0 %v205
  %v414 = vpop.f32.mrf.mxu0
  %v415 = vadd.f32 0.0, %v414
  %v416 = vpop.f32.mrf.mxu0
  %v417 = vadd.f32 0.0, %v416
  %418 = vmatprep.mubr.f32.mxu0 0.0
  %419 = vmatmul.mubr.f32.gmra.mxu0 %v208
  %v420 = vpop.f32.mrf.mxu0
  %v421 = vadd.f32 0.0, %v420
  %v422 = vpop.f32.mrf.mxu0
  %v423 = vadd.f32 0.0, %v422
  %424 = vmatprep.mubr.f32.mxu0 0.0
  %425 = vmatmul.mubr.f32.gmra.mxu0 %v211
  %v426 = vpop.f32.mrf.mxu0
  %v427 = vadd.f32 0.0, %v426
  %v428 = vpop.f32.mrf.mxu0
  %v429 = vadd.f32 0.0, %v428
  %430 = vmatprep.mubr.f32.mxu0 0.0
  %431 = vmatmul.mubr.f32.gmra.mxu0 %v214
  %v432 = vpop.f32.mrf.mxu0
  %v433 = vadd.f32 0.0, %v432
  %v434 = vpop.f32.mrf.mxu0
  %v435 = vadd.f32 0.0, %v434
  %436 = vmatprep.mubr.f32.mxu0 0.0
  %437 = vmatmul.mubr.f32.gmra.mxu0 %v217
  %v438 = vpop.f32.mrf.mxu0
  %v439 = vadd.f32 0.0, %v438
  %v440 = vpop.f32.mrf.mxu0
  %v441 = vadd.f32 0.0, %v440
  %442 = vmatprep.mubr.f32.mxu0 0.0
  %443 = vmatmul.mubr.f32.gmra.mxu0 %v220
  %v444 = vpop.f32.mrf.mxu0
  %v445 = vadd.f32 0.0, %v444
  %v446 = vpop.f32.mrf.mxu0
  %v447 = vadd.f32 0.0, %v446
  %448 = vdwg.mxu0
  %449 = vmatprep.subr.mxu0 0.0
  %450 = vmatpush1.msra.mxu0 0.0
  %451 = vmatprep.subr.mxu0 0.0
  %452 = vmatpush1.msra.mxu0 0.0
  %453 = vmatprep.subr.mxu0 0.0
  %454 = vmatpush1.msra.mxu0 0.0
  %455 = vmatprep.subr.mxu0 0.0
  %456 = vmatpush1.msra.mxu0 0.0
  %457 = vmatprep.subr.mxu0 0.0
  %458 = vmatpush1.msra.mxu0 0.0
  %459 = vmatprep.subr.mxu0 0.0
  %460 = vmatpush1.msra.mxu0 0.0
  %461 = vmatprep.subr.mxu0 0.0
  %462 = vmatpush1.msra.mxu0 0.0
  %463 = vmatprep.subr.mxu0 0.0
  %464 = vmatpush1.msra.mxu0 0.0
  %465 = vmatprep.subr.mxu0 0.0
  %466 = vmatpush1.msra.mxu0 0.0
  %467 = vmatprep.subr.mxu0 0.0
  %468 = vmatpush1.msra.mxu0 0.0
  %469 = vmatprep.subr.mxu0 0.0
  %470 = vmatpush1.msra.mxu0 0.0
  %471 = vmatprep.subr.mxu0 0.0
  %472 = vmatpush1.msra.mxu0 0.0
  %473 = vmatprep.subr.mxu0 0.0
  %474 = vmatpush1.msra.mxu0 0.0
  %475 = vmatprep.subr.mxu0 0.0
  %476 = vmatpush1.msra.mxu0 0.0
  %477 = vmatprep.subr.mxu0 %v110
  %478 = vmatpush1.msra.mxu0 %v109
  %479 = vmatprep.subr.mxu0 %v104
  %480 = vmatpush1.msra.mxu0 %v103
  %481 = vmatprep.subr.mxu0 0.0
  %482 = vmatpush2.msra.mxu0 0.0
  %483 = vmatprep.subr.mxu0 0.0
  %484 = vmatpush2.msra.mxu0 0.0
  %485 = vmatprep.subr.mxu0 0.0
  %486 = vmatpush2.msra.mxu0 0.0
  %487 = vmatprep.subr.mxu0 0.0
  %488 = vmatpush2.msra.mxu0 0.0
  %489 = vmatprep.subr.mxu0 0.0
  %490 = vmatpush2.msra.mxu0 0.0
  %491 = vmatprep.subr.mxu0 0.0
  %492 = vmatpush2.msra.mxu0 0.0
  %493 = vmatprep.subr.mxu0 0.0
  %494 = vmatpush2.msra.mxu0 0.0
  %495 = vmatprep.subr.mxu0 0.0
  %496 = vmatpush2.msra.mxu0 0.0
  %497 = vmatprep.subr.mxu0 0.0
  %498 = vmatpush2.msra.mxu0 0.0
  %499 = vmatprep.subr.mxu0 0.0
  %500 = vmatpush2.msra.mxu0 0.0
  %501 = vmatprep.subr.mxu0 0.0
  %502 = vmatpush2.msra.mxu0 0.0
  %503 = vmatprep.subr.mxu0 0.0
  %504 = vmatpush2.msra.mxu0 0.0
  %505 = vmatprep.subr.mxu0 0.0
  %506 = vmatpush2.msra.mxu0 0.0
  %507 = vmatprep.subr.mxu0 0.0
  %508 = vmatpush2.msra.mxu0 0.0
  %509 = vmatprep.subr.mxu0 0.0
  %510 = vmatpush2.msra.mxu0 0.0
  %511 = vmatprep.subr.mxu0 0.0
  %512 = vmatpush2.msra.mxu0 0.0
  %513 = vmatprep.mubr.f32.mxu0 0.0
  %514 = vmatmul.mubr.f32.gmra.mxu0 %v142
  %v515 = vpop.f32.mrf.mxu0
  %v516 = vadd.f32 0.0, %v515
  %v517 = vpop.f32.mrf.mxu0
  %v518 = vadd.f32 0.0, %v517
  %519 = vmatprep.mubr.f32.mxu0 0.0
  %520 = vmatmul.mubr.f32.gmra.mxu0 %v145
  %v521 = vpop.f32.mrf.mxu0
  %v522 = vadd.f32 0.0, %v521
  %v523 = vpop.f32.mrf.mxu0
  %v524 = vadd.f32 0.0, %v523
  %525 = vmatprep.mubr.f32.mxu0 0.0
  %526 = vmatmul.mubr.f32.gmra.mxu0 %v148
  %v527 = vpop.f32.mrf.mxu0
  %v528 = vadd.f32 0.0, %v527
  %v529 = vpop.f32.mrf.mxu0
  %v530 = vadd.f32 0.0, %v529
  %531 = vmatprep.mubr.f32.mxu0 0.0
  %532 = vmatmul.mubr.f32.gmra.mxu0 %v151
  %v533 = vpop.f32.mrf.mxu0
  %v534 = vadd.f32 0.0, %v533
  %v535 = vpop.f32.mrf.mxu0
  %v536 = vadd.f32 0.0, %v535
  %537 = vmatprep.mubr.f32.mxu0 0.0
  %538 = vmatmul.mubr.f32.gmra.mxu0 %v154
  %v539 = vpop.f32.mrf.mxu0
  %v540 = vadd.f32 0.0, %v539
  %v541 = vpop.f32.mrf.mxu0
  %v542 = vadd.f32 0.0, %v541
  %543 = vmatprep.mubr.f32.mxu0 0.0
  %544 = vmatmul.mubr.f32.gmra.mxu0 %v157
  %v545 = vpop.f32.mrf.mxu0
  %v546 = vadd.f32 0.0, %v545
  %v547 = vpop.f32.mrf.mxu0
  %v548 = vadd.f32 0.0, %v547
  %549 = vmatprep.mubr.f32.mxu0 0.0
  %550 = vmatmul.mubr.f32.gmra.mxu0 %v160
  %v551 = vpop.f32.mrf.mxu0
  %v552 = vadd.f32 0.0, %v551
  %v553 = vpop.f32.mrf.mxu0
  %v554 = vadd.f32 0.0, %v553
  %555 = vmatprep.mubr.f32.mxu0 0.0
  %556 = vmatmul.mubr.f32.gmra.mxu0 %v163
  %v557 = vpop.f32.mrf.mxu0
  %v558 = vadd.f32 0.0, %v557
  %v559 = vpop.f32.mrf.mxu0
  %v560 = vadd.f32 0.0, %v559
  %561 = vmatprep.mubr.f32.mxu0 0.0
  %562 = vmatmul.mubr.f32.gmra.mxu0 %v166
  %v563 = vpop.f32.mrf.mxu0
  %v564 = vadd.f32 0.0, %v563
  %v565 = vpop.f32.mrf.mxu0
  %v566 = vadd.f32 0.0, %v565
  %567 = vmatprep.mubr.f32.mxu0 0.0
  %568 = vmatmul.mubr.f32.gmra.mxu0 %v169
  %v569 = vpop.f32.mrf.mxu0
  %v570 = vadd.f32 0.0, %v569
  %v571 = vpop.f32.mrf.mxu0
  %v572 = vadd.f32 0.0, %v571
  %573 = vmatprep.mubr.f32.mxu0 0.0
  %574 = vmatmul.mubr.f32.gmra.mxu0 %v172
  %v575 = vpop.f32.mrf.mxu0
  %v576 = vadd.f32 0.0, %v575
  %v577 = vpop.f32.mrf.mxu0
  %v578 = vadd.f32 0.0, %v577
  %579 = vmatprep.mubr.f32.mxu0 0.0
  %580 = vmatmul.mubr.f32.gmra.mxu0 %v175
  %v581 = vpop.f32.mrf.mxu0
  %v582 = vadd.f32 0.0, %v581
  %v583 = vpop.f32.mrf.mxu0
  %v584 = vadd.f32 0.0, %v583
  %585 = vmatprep.mubr.f32.mxu0 0.0
  %586 = vmatmul.mubr.f32.gmra.mxu0 %v178
  %v587 = vpop.f32.mrf.mxu0
  %v588 = vadd.f32 0.0, %v587
  %v589 = vpop.f32.mrf.mxu0
  %v590 = vadd.f32 0.0, %v589
  %591 = vmatprep.mubr.f32.mxu0 0.0
  %592 = vmatmul.mubr.f32.gmra.mxu0 %v181
  %v593 = vpop.f32.mrf.mxu0
  %v594 = vadd.f32 0.0, %v593
  %v595 = vpop.f32.mrf.mxu0
  %v596 = vadd.f32 0.0, %v595
  %597 = vmatprep.mubr.f32.mxu0 0.0
  %598 = vmatmul.mubr.f32.gmra.mxu0 %v184
  %v599 = vpop.f32.mrf.mxu0
  %v600 = vadd.f32 0.0, %v599
  %v601 = vpop.f32.mrf.mxu0
  %v602 = vadd.f32 0.0, %v601
  %603 = vmatprep.mubr.f32.mxu0 0.0
  %604 = vmatmul.mubr.f32.gmra.mxu0 %v187
  %v605 = vpop.f32.mrf.mxu0
  %v606 = vadd.f32 0.0, %v605
  %v607 = vpop.f32.mrf.mxu0
  %v608 = vadd.f32 0.0, %v607
  %609 = vmatprep.mubr.f32.mxu0 0.0
  %610 = vmatmul.mubr.f32.gmra.mxu0 %v190
  %v611 = vpop.f32.mrf.mxu0
  %v612 = vadd.f32 0.0, %v611
  %v613 = vpop.f32.mrf.mxu0
  %v614 = vadd.f32 0.0, %v613
  %615 = vmatprep.mubr.f32.mxu0 0.0
  %616 = vmatmul.mubr.f32.gmra.mxu0 %v193
  %v617 = vpop.f32.mrf.mxu0
  %v618 = vadd.f32 0.0, %v617
  %v619 = vpop.f32.mrf.mxu0
  %v620 = vadd.f32 0.0, %v619
  %621 = vmatprep.mubr.f32.mxu0 0.0
  %622 = vmatmul.mubr.f32.gmra.mxu0 %v196
  %v623 = vpop.f32.mrf.mxu0
  %v624 = vadd.f32 0.0, %v623
  %v625 = vpop.f32.mrf.mxu0
  %v626 = vadd.f32 0.0, %v625
  %627 = vmatprep.mubr.f32.mxu0 0.0
  %628 = vmatmul.mubr.f32.gmra.mxu0 %v199
  %v629 = vpop.f32.mrf.mxu0
  %v630 = vadd.f32 0.0, %v629
  %v631 = vpop.f32.mrf.mxu0
  %v632 = vadd.f32 0.0, %v631
  %633 = vmatprep.mubr.f32.mxu0 0.0
  %634 = vmatmul.mubr.f32.gmra.mxu0 %v202
  %v635 = vpop.f32.mrf.mxu0
  %v636 = vadd.f32 0.0, %v635
  %v637 = vpop.f32.mrf.mxu0
  %v638 = vadd.f32 0.0, %v637
  %639 = vmatprep.mubr.f32.mxu0 0.0
  %640 = vmatmul.mubr.f32.gmra.mxu0 %v205
  %v641 = vpop.f32.mrf.mxu0
  %v642 = vadd.f32 0.0, %v641
  %v643 = vpop.f32.mrf.mxu0
  %v644 = vadd.f32 0.0, %v643
  %645 = vmatprep.mubr.f32.mxu0 0.0
  %646 = vmatmul.mubr.f32.gmra.mxu0 %v208
  %v647 = vpop.f32.mrf.mxu0
  %v648 = vadd.f32 0.0, %v647
  %v649 = vpop.f32.mrf.mxu0
  %v650 = vadd.f32 0.0, %v649
  %651 = vmatprep.mubr.f32.mxu0 0.0
  %652 = vmatmul.mubr.f32.gmra.mxu0 %v211
  %v653 = vpop.f32.mrf.mxu0
  %v654 = vadd.f32 0.0, %v653
  %v655 = vpop.f32.mrf.mxu0
  %v656 = vadd.f32 0.0, %v655
  %657 = vmatprep.mubr.f32.mxu0 0.0
  %658 = vmatmul.mubr.f32.gmra.mxu0 %v214
  %v659 = vpop.f32.mrf.mxu0
  %v660 = vadd.f32 0.0, %v659
  %v661 = vpop.f32.mrf.mxu0
  %v662 = vadd.f32 0.0, %v661
  %663 = vmatprep.mubr.f32.mxu0 0.0
  %664 = vmatmul.mubr.f32.gmra.mxu0 %v217
  %v665 = vpop.f32.mrf.mxu0
  %v666 = vadd.f32 0.0, %v665
  %v667 = vpop.f32.mrf.mxu0
  %v668 = vadd.f32 0.0, %v667
  %669 = vmatprep.mubr.f32.mxu0 0.0
  %670 = vmatmul.mubr.f32.gmra.mxu0 %v220
  %v671 = vpop.f32.mrf.mxu0
  %v672 = vadd.f32 0.0, %v671
  %v673 = vpop.f32.mrf.mxu0
  %v674 = vadd.f32 0.0, %v673
  %675 = vdwg.mxu0
  %676 = vmatprep.subr.mxu0 0.0
  %677 = vmatpush1.msra.mxu0 0.0
  %678 = vmatprep.subr.mxu0 0.0
  %679 = vmatpush1.msra.mxu0 0.0
  %680 = vmatprep.subr.mxu0 0.0
  %681 = vmatpush1.msra.mxu0 0.0
  %682 = vmatprep.subr.mxu0 0.0
  %683 = vmatpush1.msra.mxu0 0.0
  %684 = vmatprep.subr.mxu0 0.0
  %685 = vmatpush1.msra.mxu0 0.0
  %686 = vmatprep.subr.mxu0 0.0
  %687 = vmatpush1.msra.mxu0 0.0
  %688 = vmatprep.subr.mxu0 0.0
  %689 = vmatpush1.msra.mxu0 0.0
  %690 = vmatprep.subr.mxu0 0.0
  %691 = vmatpush1.msra.mxu0 0.0
  %692 = vmatprep.subr.mxu0 0.0
  %693 = vmatpush1.msra.mxu0 0.0
  %694 = vmatprep.subr.mxu0 0.0
  %695 = vmatpush1.msra.mxu0 0.0
  %696 = vmatprep.subr.mxu0 0.0
  %697 = vmatpush1.msra.mxu0 0.0
  %698 = vmatprep.subr.mxu0 0.0
  %699 = vmatpush1.msra.mxu0 0.0
  %700 = vmatprep.subr.mxu0 0.0
  %701 = vmatpush1.msra.mxu0 0.0
  %702 = vmatprep.subr.mxu0 0.0
  %703 = vmatpush1.msra.mxu0 0.0
  %704 = vmatprep.subr.mxu0 %v112
  %705 = vmatpush1.msra.mxu0 %v111
  %706 = vmatprep.subr.mxu0 %v106
  %707 = vmatpush1.msra.mxu0 %v105
  %708 = vmatprep.subr.mxu0 0.0
  %709 = vmatpush2.msra.mxu0 0.0
  %710 = vmatprep.subr.mxu0 0.0
  %711 = vmatpush2.msra.mxu0 0.0
  %712 = vmatprep.subr.mxu0 0.0
  %713 = vmatpush2.msra.mxu0 0.0
  %714 = vmatprep.subr.mxu0 0.0
  %715 = vmatpush2.msra.mxu0 0.0
  %716 = vmatprep.subr.mxu0 0.0
  %717 = vmatpush2.msra.mxu0 0.0
  %718 = vmatprep.subr.mxu0 0.0
  %719 = vmatpush2.msra.mxu0 0.0
  %720 = vmatprep.subr.mxu0 0.0
  %721 = vmatpush2.msra.mxu0 0.0
  %722 = vmatprep.subr.mxu0 0.0
  %723 = vmatpush2.msra.mxu0 0.0
  %724 = vmatprep.subr.mxu0 0.0
  %725 = vmatpush2.msra.mxu0 0.0
  %726 = vmatprep.subr.mxu0 0.0
  %727 = vmatpush2.msra.mxu0 0.0
  %728 = vmatprep.subr.mxu0 0.0
  %729 = vmatpush2.msra.mxu0 0.0
  %730 = vmatprep.subr.mxu0 0.0
  %731 = vmatpush2.msra.mxu0 0.0
  %732 = vmatprep.subr.mxu0 0.0
  %733 = vmatpush2.msra.mxu0 0.0
  %734 = vmatprep.subr.mxu0 0.0
  %735 = vmatpush2.msra.mxu0 0.0
  %736 = vmatprep.subr.mxu0 0.0
  %737 = vmatpush2.msra.mxu0 0.0
  %738 = vmatprep.subr.mxu0 0.0
  %739 = vmatpush2.msra.mxu0 0.0
  %740 = vmatprep.mubr.f32.mxu0 0.0
  %741 = vmatmul.mubr.f32.gmra.mxu0 %v142
  %v742 = vpop.f32.mrf.mxu0
  %v743 = vadd.f32 0.0, %v742
  %v744 = vpop.f32.mrf.mxu0
  %v745 = vadd.f32 0.0, %v744
  %746 = vmatprep.mubr.f32.mxu0 0.0
  %747 = vmatmul.mubr.f32.gmra.mxu0 %v145
  %v748 = vpop.f32.mrf.mxu0
  %v749 = vadd.f32 0.0, %v748
  %v750 = vpop.f32.mrf.mxu0
  %v751 = vadd.f32 0.0, %v750
  %752 = vmatprep.mubr.f32.mxu0 0.0
  %753 = vmatmul.mubr.f32.gmra.mxu0 %v148
  %v754 = vpop.f32.mrf.mxu0
  %v755 = vadd.f32 0.0, %v754
  %v756 = vpop.f32.mrf.mxu0
  %v757 = vadd.f32 0.0, %v756
  %758 = vmatprep.mubr.f32.mxu0 0.0
  %759 = vmatmul.mubr.f32.gmra.mxu0 %v151
  %v760 = vpop.f32.mrf.mxu0
  %v761 = vadd.f32 0.0, %v760
  %v762 = vpop.f32.mrf.mxu0
  %v763 = vadd.f32 0.0, %v762
  %764 = vmatprep.mubr.f32.mxu0 0.0
  %765 = vmatmul.mubr.f32.gmra.mxu0 %v154
  %v766 = vpop.f32.mrf.mxu0
  %v767 = vadd.f32 0.0, %v766
  %v768 = vpop.f32.mrf.mxu0
  %v769 = vadd.f32 0.0, %v768
  %770 = vmatprep.mubr.f32.mxu0 0.0
  %771 = vmatmul.mubr.f32.gmra.mxu0 %v157
  %v772 = vpop.f32.mrf.mxu0
  %v773 = vadd.f32 0.0, %v772
  %v774 = vpop.f32.mrf.mxu0
  %v775 = vadd.f32 0.0, %v774
  %776 = vmatprep.mubr.f32.mxu0 0.0
  %777 = vmatmul.mubr.f32.gmra.mxu0 %v160
  %v778 = vpop.f32.mrf.mxu0
  %v779 = vadd.f32 0.0, %v778
  %v780 = vpop.f32.mrf.mxu0
  %v781 = vadd.f32 0.0, %v780
  %782 = vmatprep.mubr.f32.mxu0 0.0
  %783 = vmatmul.mubr.f32.gmra.mxu0 %v163
  %v784 = vpop.f32.mrf.mxu0
  %v785 = vadd.f32 0.0, %v784
  %v786 = vpop.f32.mrf.mxu0
  %v787 = vadd.f32 0.0, %v786
  %788 = vmatprep.mubr.f32.mxu0 0.0
  %789 = vmatmul.mubr.f32.gmra.mxu0 %v166
  %v790 = vpop.f32.mrf.mxu0
  %v791 = vadd.f32 0.0, %v790
  %v792 = vpop.f32.mrf.mxu0
  %v793 = vadd.f32 0.0, %v792
  %794 = vmatprep.mubr.f32.mxu0 0.0
  %795 = vmatmul.mubr.f32.gmra.mxu0 %v169
  %v796 = vpop.f32.mrf.mxu0
  %v797 = vadd.f32 0.0, %v796
  %v798 = vpop.f32.mrf.mxu0
  %v799 = vadd.f32 0.0, %v798
  %800 = vmatprep.mubr.f32.mxu0 0.0
  %801 = vmatmul.mubr.f32.gmra.mxu0 %v172
  %v802 = vpop.f32.mrf.mxu0
  %v803 = vadd.f32 0.0, %v802
  %v804 = vpop.f32.mrf.mxu0
  %v805 = vadd.f32 0.0, %v804
  %806 = vmatprep.mubr.f32.mxu0 0.0
  %807 = vmatmul.mubr.f32.gmra.mxu0 %v175
  %v808 = vpop.f32.mrf.mxu0
  %v809 = vadd.f32 0.0, %v808
  %v810 = vpop.f32.mrf.mxu0
  %v811 = vadd.f32 0.0, %v810
  %812 = vmatprep.mubr.f32.mxu0 0.0
  %813 = vmatmul.mubr.f32.gmra.mxu0 %v178
  %v814 = vpop.f32.mrf.mxu0
  %v815 = vadd.f32 0.0, %v814
  %v816 = vpop.f32.mrf.mxu0
  %v817 = vadd.f32 0.0, %v816
  %818 = vmatprep.mubr.f32.mxu0 0.0
  %819 = vmatmul.mubr.f32.gmra.mxu0 %v181
  %v820 = vpop.f32.mrf.mxu0
  %v821 = vadd.f32 0.0, %v820
  %v822 = vpop.f32.mrf.mxu0
  %v823 = vadd.f32 0.0, %v822
  %824 = vmatprep.mubr.f32.mxu0 0.0
  %825 = vmatmul.mubr.f32.gmra.mxu0 %v184
  %v826 = vpop.f32.mrf.mxu0
  %v827 = vadd.f32 0.0, %v826
  %v828 = vpop.f32.mrf.mxu0
  %v829 = vadd.f32 0.0, %v828
  %830 = vmatprep.mubr.f32.mxu0 0.0
  %831 = vmatmul.mubr.f32.gmra.mxu0 %v187
  %v832 = vpop.f32.mrf.mxu0
  %v833 = vadd.f32 0.0, %v832
  %v834 = vpop.f32.mrf.mxu0
  %v835 = vadd.f32 0.0, %v834
  %836 = vmatprep.mubr.f32.mxu0 0.0
  %837 = vmatmul.mubr.f32.gmra.mxu0 %v190
  %v838 = vpop.f32.mrf.mxu0
  %v839 = vadd.f32 0.0, %v838
  %v840 = vpop.f32.mrf.mxu0
  %v841 = vadd.f32 0.0, %v840
  %842 = vmatprep.mubr.f32.mxu0 0.0
  %843 = vmatmul.mubr.f32.gmra.mxu0 %v193
  %v844 = vpop.f32.mrf.mxu0
  %v845 = vadd.f32 0.0, %v844
  %v846 = vpop.f32.mrf.mxu0
  %v847 = vadd.f32 0.0, %v846
  %848 = vmatprep.mubr.f32.mxu0 0.0
  %849 = vmatmul.mubr.f32.gmra.mxu0 %v196
  %v850 = vpop.f32.mrf.mxu0
  %v851 = vadd.f32 0.0, %v850
  %v852 = vpop.f32.mrf.mxu0
  %v853 = vadd.f32 0.0, %v852
  %854 = vmatprep.mubr.f32.mxu0 0.0
  %855 = vmatmul.mubr.f32.gmra.mxu0 %v199
  %v856 = vpop.f32.mrf.mxu0
  %v857 = vadd.f32 0.0, %v856
  %v858 = vpop.f32.mrf.mxu0
  %v859 = vadd.f32 0.0, %v858
  %860 = vmatprep.mubr.f32.mxu0 0.0
  %861 = vmatmul.mubr.f32.gmra.mxu0 %v202
  %v862 = vpop.f32.mrf.mxu0
  %v863 = vadd.f32 0.0, %v862
  %v864 = vpop.f32.mrf.mxu0
  %v865 = vadd.f32 0.0, %v864
  %866 = vmatprep.mubr.f32.mxu0 0.0
  %867 = vmatmul.mubr.f32.gmra.mxu0 %v205
  %v868 = vpop.f32.mrf.mxu0
  %v869 = vadd.f32 0.0, %v868
  %v870 = vpop.f32.mrf.mxu0
  %v871 = vadd.f32 0.0, %v870
  %872 = vmatprep.mubr.f32.mxu0 0.0
  %873 = vmatmul.mubr.f32.gmra.mxu0 %v208
  %v874 = vpop.f32.mrf.mxu0
  %v875 = vadd.f32 0.0, %v874
  %v876 = vpop.f32.mrf.mxu0
  %v877 = vadd.f32 0.0, %v876
  %878 = vmatprep.mubr.f32.mxu0 0.0
  %879 = vmatmul.mubr.f32.gmra.mxu0 %v211
  %v880 = vpop.f32.mrf.mxu0
  %v881 = vadd.f32 0.0, %v880
  %v882 = vpop.f32.mrf.mxu0
  %v883 = vadd.f32 0.0, %v882
  %884 = vmatprep.mubr.f32.mxu0 0.0
  %885 = vmatmul.mubr.f32.gmra.mxu0 %v214
  %v886 = vpop.f32.mrf.mxu0
  %v887 = vadd.f32 0.0, %v886
  %v888 = vpop.f32.mrf.mxu0
  %v889 = vadd.f32 0.0, %v888
  %890 = vmatprep.mubr.f32.mxu0 0.0
  %891 = vmatmul.mubr.f32.gmra.mxu0 %v217
  %v892 = vpop.f32.mrf.mxu0
  %v893 = vadd.f32 0.0, %v892
  %v894 = vpop.f32.mrf.mxu0
  %v895 = vadd.f32 0.0, %v894
  %896 = vmatprep.mubr.f32.mxu0 0.0
  %897 = vmatmul.mubr.f32.gmra.mxu0 %v220
  %v898 = vpop.f32.mrf.mxu0
  %v899 = vadd.f32 0.0, %v898
  %v900 = vpop.f32.mrf.mxu0
  %v901 = vadd.f32 0.0, %v900
  %902 = vdwg.mxu0
  %903 = vst [vmem:[%s2] sm:$0xff] %v289
  %904 = vst [vmem:[%s2 + $0x8] sm:$0xff] %v291
  %905 = vst [vmem:[%s2 + $0x10] sm:$0xff] %v516
  %906 = vst [vmem:[%s2 + $0x18] sm:$0xff] %v518
  %907 = vst [vmem:[%s2 + $0x20] sm:$0xff] %v743
  %908 = vst.msk [vmem:[%s2 + $0x28] sm:$0xff] %vm27, %v745
  %909 = vst [vmem:[%s2 + $0x30] sm:$0xff] %v295
  %910 = vst [vmem:[%s2 + $0x38] sm:$0xff] %v297
  %911 = vst [vmem:[%s2 + $0x40] sm:$0xff] %v522
  %912 = vst [vmem:[%s2 + $0x48] sm:$0xff] %v524
  %913 = vst [vmem:[%s2 + $0x50] sm:$0xff] %v749
  %914 = vst.msk [vmem:[%s2 + $0x58] sm:$0xff] %vm27, %v751
  %915 = vst [vmem:[%s2 + $0x60] sm:$0xff] %v301
  %916 = vst [vmem:[%s2 + $0x68] sm:$0xff] %v303
  %917 = vst [vmem:[%s2 + $0x70] sm:$0xff] %v528
  %918 = vst [vmem:[%s2 + $0x78] sm:$0xff] %v530
  %919 = vst [vmem:[%s2 + $0x80] sm:$0xff] %v755
  %920 = vst.msk [vmem:[%s2 + $0x88] sm:$0xff] %vm27, %v757
  %921 = vst [vmem:[%s2 + $0x90] sm:$0xff] %v307
  %922 = vst [vmem:[%s2 + $0x98] sm:$0xff] %v309
  %923 = vst [vmem:[%s2 + $0xa0] sm:$0xff] %v534
  %924 = vst [vmem:[%s2 + $0xa8] sm:$0xff] %v536
  %925 = vst [vmem:[%s2 + $0xb0] sm:$0xff] %v761
  %926 = vst.msk [vmem:[%s2 + $0xb8] sm:$0xff] %vm27, %v763
  %927 = vst [vmem:[%s2 + $0xc0] sm:$0xff] %v313
  %928 = vst [vmem:[%s2 + $0xc8] sm:$0xff] %v315
  %929 = vst [vmem:[%s2 + $0xd0] sm:$0xff] %v540
  %930 = vst [vmem:[%s2 + $0xd8] sm:$0xff] %v542
  %931 = vst [vmem:[%s2 + $0xe0] sm:$0xff] %v767
  %932 = vst.msk [vmem:[%s2 + $0xe8] sm:$0xff] %vm27, %v769
  %933 = vst [vmem:[%s2 + $0xf0] sm:$0xff] %v319
  %934 = vst [vmem:[%s2 + $0xf8] sm:$0xff] %v321
  %935 = vst [vmem:[%s2 + $0x100] sm:$0xff] %v546
  %936 = vst [vmem:[%s2 + $0x108] sm:$0xff] %v548
  %937 = vst [vmem:[%s2 + $0x110] sm:$0xff] %v773
  %938 = vst.msk [vmem:[%s2 + $0x118] sm:$0xff] %vm27, %v775
  %939 = vst [vmem:[%s2 + $0x120] sm:$0xff] %v325
  %940 = vst [vmem:[%s2 + $0x128] sm:$0xff] %v327
  %941 = vst [vmem:[%s2 + $0x130] sm:$0xff] %v552
  %942 = vst [vmem:[%s2 + $0x138] sm:$0xff] %v554
  %943 = vst [vmem:[%s2 + $0x140] sm:$0xff] %v779
  %944 = vst.msk [vmem:[%s2 + $0x148] sm:$0xff] %vm27, %v781
  %945 = vst [vmem:[%s2 + $0x150] sm:$0xff] %v331
  %946 = vst [vmem:[%s2 + $0x158] sm:$0xff] %v333
  %947 = vst [vmem:[%s2 + $0x160] sm:$0xff] %v558
  %948 = vst [vmem:[%s2 + $0x168] sm:$0xff] %v560
  %949 = vst [vmem:[%s2 + $0x170] sm:$0xff] %v785
  %950 = vst.msk [vmem:[%s2 + $0x178] sm:$0xff] %vm27, %v787
  %951 = vst [vmem:[%s2 + $0x180] sm:$0xff] %v337
  %952 = vst [vmem:[%s2 + $0x188] sm:$0xff] %v339
  %953 = vst [vmem:[%s2 + $0x190] sm:$0xff] %v564
  %954 = vst [vmem:[%s2 + $0x198] sm:$0xff] %v566
  %955 = vst [vmem:[%s2 + $0x1a0] sm:$0xff] %v791
  %956 = vst.msk [vmem:[%s2 + $0x1a8] sm:$0xff] %vm27, %v793
  %957 = vst [vmem:[%s2 + $0x1b0] sm:$0xff] %v343
  %958 = vst [vmem:[%s2 + $0x1b8] sm:$0xff] %v345
  %959 = vst [vmem:[%s2 + $0x1c0] sm:$0xff] %v570
  %960 = vst [vmem:[%s2 + $0x1c8] sm:$0xff] %v572
  %961 = vst [vmem:[%s2 + $0x1d0] sm:$0xff] %v797
  %962 = vst.msk [vmem:[%s2 + $0x1d8] sm:$0xff] %vm27, %v799
  %963 = vst [vmem:[%s2 + $0x1e0] sm:$0xff] %v349
  %964 = vst [vmem:[%s2 + $0x1e8] sm:$0xff] %v351
  %965 = vst [vmem:[%s2 + $0x1f0] sm:$0xff] %v576
  %966 = vst [vmem:[%s2 + $0x1f8] sm:$0xff] %v578
  %967 = vst [vmem:[%s2 + $0x200] sm:$0xff] %v803
  %968 = vst.msk [vmem:[%s2 + $0x208] sm:$0xff] %vm27, %v805
  %969 = vst [vmem:[%s2 + $0x210] sm:$0xff] %v355
  %970 = vst [vmem:[%s2 + $0x218] sm:$0xff] %v357
  %971 = vst [vmem:[%s2 + $0x220] sm:$0xff] %v582
  %972 = vst [vmem:[%s2 + $0x228] sm:$0xff] %v584
  %973 = vst [vmem:[%s2 + $0x230] sm:$0xff] %v809
  %974 = vst.msk [vmem:[%s2 + $0x238] sm:$0xff] %vm27, %v811
  %975 = vst [vmem:[%s2 + $0x240] sm:$0xff] %v361
  %976 = vst [vmem:[%s2 + $0x248] sm:$0xff] %v363
  %977 = vst [vmem:[%s2 + $0x250] sm:$0xff] %v588
  %978 = vst [vmem:[%s2 + $0x258] sm:$0xff] %v590
  %979 = vst [vmem:[%s2 + $0x260] sm:$0xff] %v815
  %980 = vst.msk [vmem:[%s2 + $0x268] sm:$0xff] %vm27, %v817
  %981 = vst [vmem:[%s2 + $0x270] sm:$0xff] %v367
  %982 = vst [vmem:[%s2 + $0x278] sm:$0xff] %v369
  %983 = vst [vmem:[%s2 + $0x280] sm:$0xff] %v594
  %984 = vst [vmem:[%s2 + $0x288] sm:$0xff] %v596
  %985 = vst [vmem:[%s2 + $0x290] sm:$0xff] %v821
  %986 = vst.msk [vmem:[%s2 + $0x298] sm:$0xff] %vm27, %v823
  %987 = vst [vmem:[%s2 + $0x2a0] sm:$0xff] %v373
  %988 = vst [vmem:[%s2 + $0x2a8] sm:$0xff] %v375
  %989 = vst [vmem:[%s2 + $0x2b0] sm:$0xff] %v600
  %990 = vst [vmem:[%s2 + $0x2b8] sm:$0xff] %v602
  %991 = vst [vmem:[%s2 + $0x2c0] sm:$0xff] %v827
  %992 = vst.msk [vmem:[%s2 + $0x2c8] sm:$0xff] %vm27, %v829
  %993 = vst [vmem:[%s2 + $0x2d0] sm:$0xff] %v379
  %994 = vst [vmem:[%s2 + $0x2d8] sm:$0xff] %v381
  %995 = vst [vmem:[%s2 + $0x2e0] sm:$0xff] %v606
  %996 = vst [vmem:[%s2 + $0x2e8] sm:$0xff] %v608
  %997 = vst [vmem:[%s2 + $0x2f0] sm:$0xff] %v833
  %998 = vst.msk [vmem:[%s2 + $0x2f8] sm:$0xff] %vm27, %v835
  %999 = vst [vmem:[%s2 + $0x300] sm:$0xff] %v385
  %1000 = vst [vmem:[%s2 + $0x308] sm:$0xff] %v387
  %1001 = vst [vmem:[%s2 + $0x310] sm:$0xff] %v612
  %1002 = vst [vmem:[%s2 + $0x318] sm:$0xff] %v614
  %1003 = vst [vmem:[%s2 + $0x320] sm:$0xff] %v839
  %1004 = vst.msk [vmem:[%s2 + $0x328] sm:$0xff] %vm27, %v841
  %1005 = vst [vmem:[%s2 + $0x330] sm:$0xff] %v391
  %1006 = vst [vmem:[%s2 + $0x338] sm:$0xff] %v393
  %1007 = vst [vmem:[%s2 + $0x340] sm:$0xff] %v618
  %1008 = vst [vmem:[%s2 + $0x348] sm:$0xff] %v620
  %1009 = vst [vmem:[%s2 + $0x350] sm:$0xff] %v845
  %1010 = vst.msk [vmem:[%s2 + $0x358] sm:$0xff] %vm27, %v847
  %1011 = vst [vmem:[%s2 + $0x360] sm:$0xff] %v397
  %1012 = vst [vmem:[%s2 + $0x368] sm:$0xff] %v399
  %1013 = vst [vmem:[%s2 + $0x370] sm:$0xff] %v624
  %1014 = vst [vmem:[%s2 + $0x378] sm:$0xff] %v626
  %1015 = vst [vmem:[%s2 + $0x380] sm:$0xff] %v851
  %1016 = vst.msk [vmem:[%s2 + $0x388] sm:$0xff] %vm27, %v853
  %1017 = vst [vmem:[%s2 + $0x390] sm:$0xff] %v403
  %1018 = vst [vmem:[%s2 + $0x398] sm:$0xff] %v405
  %1019 = vst [vmem:[%s2 + $0x3a0] sm:$0xff] %v630
  %1020 = vst [vmem:[%s2 + $0x3a8] sm:$0xff] %v632
  %1021 = vst [vmem:[%s2 + $0x3b0] sm:$0xff] %v857
  %1022 = vst.msk [vmem:[%s2 + $0x3b8] sm:$0xff] %vm27, %v859
  %1023 = vst [vmem:[%s2 + $0x3c0] sm:$0xff] %v409
  %1024 = vst [vmem:[%s2 + $0x3c8] sm:$0xff] %v411
  %1025 = vst [vmem:[%s2 + $0x3d0] sm:$0xff] %v636
  %1026 = vst [vmem:[%s2 + $0x3d8] sm:$0xff] %v638
  %1027 = vst [vmem:[%s2 + $0x3e0] sm:$0xff] %v863
  %1028 = vst.msk [vmem:[%s2 + $0x3e8] sm:$0xff] %vm27, %v865
  %1029 = vst [vmem:[%s2 + $0x3f0] sm:$0xff] %v415
  %1030 = vst [vmem:[%s2 + $0x3f8] sm:$0xff] %v417
  %1031 = vst [vmem:[%s2 + $0x400] sm:$0xff] %v642
  %1032 = vst [vmem:[%s2 + $0x408] sm:$0xff] %v644
  %1033 = vst [vmem:[%s2 + $0x410] sm:$0xff] %v869
  %1034 = vst.msk [vmem:[%s2 + $0x418] sm:$0xff] %vm27, %v871
  %1035 = vst [vmem:[%s2 + $0x420] sm:$0xff] %v421
  %1036 = vst [vmem:[%s2 + $0x428] sm:$0xff] %v423
  %1037 = vst [vmem:[%s2 + $0x430] sm:$0xff] %v648
  %1038 = vst [vmem:[%s2 + $0x438] sm:$0xff] %v650
  %1039 = vst [vmem:[%s2 + $0x440] sm:$0xff] %v875
  %1040 = vst.msk [vmem:[%s2 + $0x448] sm:$0xff] %vm27, %v877
  %1041 = vst [vmem:[%s2 + $0x450] sm:$0xff] %v427
  %1042 = vst [vmem:[%s2 + $0x458] sm:$0xff] %v429
  %1043 = vst [vmem:[%s2 + $0x460] sm:$0xff] %v654
  %1044 = vst [vmem:[%s2 + $0x468] sm:$0xff] %v656
  %1045 = vst [vmem:[%s2 + $0x470] sm:$0xff] %v881
  %1046 = vst.msk [vmem:[%s2 + $0x478] sm:$0xff] %vm27, %v883
  %1047 = vst [vmem:[%s2 + $0x480] sm:$0xff] %v433
  %1048 = vst [vmem:[%s2 + $0x488] sm:$0xff] %v435
  %1049 = vst [vmem:[%s2 + $0x490] sm:$0xff] %v660
  %1050 = vst [vmem:[%s2 + $0x498] sm:$0xff] %v662
  %1051 = vst [vmem:[%s2 + $0x4a0] sm:$0xff] %v887
  %1052 = vst.msk [vmem:[%s2 + $0x4a8] sm:$0xff] %vm27, %v889
  %1053 = vst [vmem:[%s2 + $0x4b0] sm:$0xff] %v439
  %1054 = vst [vmem:[%s2 + $0x4b8] sm:$0xff] %v441
  %1055 = vst [vmem:[%s2 + $0x4c0] sm:$0xff] %v666
  %1056 = vst [vmem:[%s2 + $0x4c8] sm:$0xff] %v668
  %1057 = vst [vmem:[%s2 + $0x4d0] sm:$0xff] %v893
  %1058 = vst.msk [vmem:[%s2 + $0x4d8] sm:$0xff] %vm27, %v895
  %1059 = vst [vmem:[%s2 + $0x4e0] sm:$0xff] %v445
  %1060 = vst [vmem:[%s2 + $0x4e8] sm:$0xff] %v447
  %1061 = vst [vmem:[%s2 + $0x4f0] sm:$0xff] %v672
  %1062 = vst [vmem:[%s2 + $0x4f8] sm:$0xff] %v674
  %1063 = vst [vmem:[%s2 + $0x500] sm:$0xff] %v899
  %1064 = vst.msk [vmem:[%s2 + $0x508] sm:$0xff] %vm27, %v901
  // Predicated region
  $region10: #{encoder_decoder_forward_pallas.8} parent=0 // pred_check
    _
  $region11: #{encoder_decoder_forward_pallas.8} parent=0 // pred_check_branch
    %1066 = sbr.rel (0) target = $region13
  $region12: #{encoder_decoder_forward_pallas.8} parent=0 // pred_region
    _
  $region13: #{encoder_decoder_forward_pallas.8} parent=0 // pred_fallthru
    _
  // Predicated region
  $region14: #{encoder_decoder_forward_pallas.8} parent=0 // pred_check
    _
  $region15: #{encoder_decoder_forward_pallas.8} parent=0 // pred_check_branch
    %1068 = sbr.rel (0) target = $region17
  $region16: #{encoder_decoder_forward_pallas.8} parent=0 // pred_region
    _
  $region17: #{encoder_decoder_forward_pallas.8} parent=0 // pred_fallthru
    _

// kernel: encoder_decoder_forward_pallas.9
$region0: #{encoder_decoder_forward_pallas.9}
  #allocation0 [shape = 'u32[]', space=smem, size = 0x4, offset = 0x4, fixed_abs, tag = 'smem constant byte address 0x4 - core index']
  #allocation1 [shape = 'u32[144,128]{1,0:T(1,128)}', space=vmem, size = 0x12000, scoped, tag = 'internal scratch']
  %s0 = inlined_call_operand.vmem [shape: f32[8,7168], index: 0, kind: input, shape index: {}]
  %s1 = inlined_call_operand.vmem [shape: f32[27,8], index: 1, kind: input, shape index: {}]
  %s2 = inlined_call_operand.vmem [shape: f32[27,7168], index: 2, kind: output, shape index: {}]
  %s3 = sld [smem:[#allocation0]]
  $region60: #{encoder_decoder_forward_pallas.9} parent=0
    _
  %s5 = ssub.s32 1, %s3
  %s6 = scalar_select 0, %s5, %s3
  $region1: #{encoder_decoder_forward_pallas.9} parent=0
    #allocation2 [shape = 'u8[262144]{0}', space=vmem, size = 0x40000, scoped, tag = 'output window, operand 0']
    loop: start=0, step=1, limit=9
    $region2: #{encoder_decoder_forward_pallas.9} parent=1 // loop_pre_header
      _
    $region3: #{encoder_decoder_forward_pallas.9} parent=1 // loop_header
      %s8 = sphi 0, %s12
      %p9 = scmp.ge.s32.totalorder %s8, 9
      %s18 = sphi 0, %s20
      %s21 = sphi 0, %s18
      %s22 = sphi 0, %s21
      %s38 = sphi 0, %s22
      %s42 = sphi 0, %s42
      %s44 = sphi 0, %s42
      %s45 = sphi 0, %s44
      %s59 = sphi 0, %s45
      %s65 = sphi 0, %s67
      %s68 = sphi 0, %s65
      %s69 = sphi 0, %s68
      %s85 = sphi 0, %s69
    $region4: #{encoder_decoder_forward_pallas.9} parent=1 // loop_header_branch
      %11 = sbr.rel (%p9) target = $region8
    $region5: #{encoder_decoder_forward_pallas.9} parent=1 // loop_body
      %s13 = ssub.s32 %s8, 1
      %s14 = ssub.s32 %s8, 2
      %s15 = sadd.s32 %s8, 1
      %s16 = ssub.s32 %s8, %s15
      %p17 = scmp.eq.s32.totalorder %s16, 0
      %s19 = sadd.s32 %s18, 1
      %s20 = scalar_select %p17, %s18, %s19
      %p23 = pneg %p17
      %p24 = scmp.eq.s32.totalorder %s8, 6
      %p25 = por %p23, %p24
      %p26 = scmp.ne.s32.totalorder %s18, %s21
      %p27 = scmp.eq.s32.totalorder %s8, 0
      %p28 = por %p26, %p27
      %p29 = scmp.ne.s32.totalorder %s18, %s21
      %p30 = scmp.eq.s32.totalorder %s13, 6
      %p31 = por %p29, %p30
      %p32 = scmp.ne.s32.totalorder %s21, %s22
      %p33 = scmp.eq.s32.totalorder %s13, 0
      %p34 = por %p32, %p33
      %p35 = scmp.ne.s32.totalorder %s21, %s22
      %p36 = scmp.eq.s32.totalorder %s14, 6
      %p37 = por %p35, %p36
      %p39 = scmp.ne.s32.totalorder %s22, %s38
      %p40 = scmp.eq.s32.totalorder %s14, 0
      %p41 = por %p39, %p40
      %s43 = sadd.s32 %s42, 1
      %p46 = scmp.eq.s32.totalorder %s8, 6
      %p47 = scmp.ne.s32.totalorder %s42, %s44
      %p48 = scmp.eq.s32.totalorder %s8, 0
      %p49 = por %p47, %p48
      %p50 = scmp.ne.s32.totalorder %s42, %s44
      %p51 = scmp.eq.s32.totalorder %s13, 6
      %p52 = por %p50, %p51
      %p53 = scmp.ne.s32.totalorder %s44, %s45
      %p54 = scmp.eq.s32.totalorder %s13, 0
      %p55 = por %p53, %p54
      %p56 = scmp.ne.s32.totalorder %s44, %s45
      %p57 = scmp.eq.s32.totalorder %s14, 6
      %p58 = por %p56, %p57
      %p60 = scmp.ne.s32.totalorder %s45, %s59
      %p61 = scmp.eq.s32.totalorder %s14, 0
      %p62 = por %p60, %p61
      %s63 = ssub.s32 %s8, %s15
      %p64 = scmp.eq.s32.totalorder %s63, 0
      %s66 = sadd.s32 %s65, 1
      %s67 = scalar_select %p64, %s65, %s66
      %p70 = pneg %p64
      %p71 = scmp.eq.s32.totalorder %s8, 6
      %p72 = por %p70, %p71
      %p73 = scmp.ne.s32.totalorder %s65, %s68
      %p74 = scmp.eq.s32.totalorder %s8, 0
      %p75 = por %p73, %p74
      %p76 = scmp.ne.s32.totalorder %s65, %s68
      %p77 = scmp.eq.s32.totalorder %s13, 6
      %p78 = por %p76, %p77
      %p79 = scmp.ne.s32.totalorder %s68, %s69
      %p80 = scmp.eq.s32.totalorder %s13, 0
      %p81 = por %p79, %p80
      %p82 = scmp.ne.s32.totalorder %s68, %s69
      %p83 = scmp.eq.s32.totalorder %s14, 6
      %p84 = por %p82, %p83
      %p86 = scmp.ne.s32.totalorder %s69, %s85
      %p87 = scmp.eq.s32.totalorder %s14, 0
      %p88 = por %p86, %p87
      %p89 = scmp.le.s32.totalorder 1, %s8
      %p90 = scmp.lt.s32.totalorder %s8, 8
      %p91 = pnand %p89, %p90
      %p92 = pneg %p91
      // Predicated region
      $region9: #{encoder_decoder_forward_pallas.9} parent=5 // pred_check
        _
      $region10: #{encoder_decoder_forward_pallas.9} parent=5 // pred_check_branch
        %94 = sbr.rel (%p91) target = $region12
      $region11: #{encoder_decoder_forward_pallas.9} parent=5 // pred_region
        %s95 = ssub.s32 %s8, 1
        // Predicated region
        $region13: #{encoder_decoder_forward_pallas.9} parent=11 // pred_check
          %p96 = pneg %p55
        $region14: #{encoder_decoder_forward_pallas.9} parent=11 // pred_check_branch
          %98 = sbr.rel (%p96) target = $region16
        $region15: #{encoder_decoder_forward_pallas.9} parent=11 // pred_region
          _
        $region16: #{encoder_decoder_forward_pallas.9} parent=11 // pred_fallthru
          _
      $region12: #{encoder_decoder_forward_pallas.9} parent=5 // pred_fallthru
        _
      %p99 = scmp.lt.s32.totalorder %s8, 7
      // Predicated region
      $region17: #{encoder_decoder_forward_pallas.9} parent=5 // pred_check
        %p100 = pneg %p99
      $region18: #{encoder_decoder_forward_pallas.9} parent=5 // pred_check_branch
        %102 = sbr.rel (%p100) target = $region20
      $region19: #{encoder_decoder_forward_pallas.9} parent=5 // pred_region
        // Predicated region
        $region21: #{encoder_decoder_forward_pallas.9} parent=19 // pred_check
          %p103 = pneg %p28
        $region22: #{encoder_decoder_forward_pallas.9} parent=19 // pred_check_branch
          %105 = sbr.rel (%p103) target = $region24
        $region23: #{encoder_decoder_forward_pallas.9} parent=19 // pred_region
          %s106 = smul.u32 8, %s8
          %p107 = scmp.lt.s32.totalorder %s106, 55
          %s108 = scalar_select %p107, %s106, 55
          %s109 = smul.addr %s108, 8
          %s110 = scalar_lea.vmem %s0, %s109
          %s111 = smul.u32 8, %s8
        $region24: #{encoder_decoder_forward_pallas.9} parent=19 // pred_fallthru
          _
      $region20: #{encoder_decoder_forward_pallas.9} parent=5 // pred_fallthru
        _
      %p112 = scmp.le.s32.totalorder 1, %s8
      %p113 = scmp.lt.s32.totalorder %s8, 8
      %p114 = pnand %p112, %p113
      %p115 = pneg %p114
      // Predicated region
      $region25: #{encoder_decoder_forward_pallas.9} parent=5 // pred_check
        _
      $region26: #{encoder_decoder_forward_pallas.9} parent=5 // pred_check_branch
        %117 = sbr.rel (%p114) target = $region28
      $region27: #{encoder_decoder_forward_pallas.9} parent=5 // pred_region
        %s118 = ssub.s32 %s8, 1
        %s119 = smul.u32 8, %s13
        %p120 = scmp.lt.s32.totalorder %s119, 55
        %s121 = scalar_select %p120, %s119, 55
        %s122 = smul.addr %s121, 8
        %s123 = scalar_lea.vmem %s0, %s122
        %p124 = pneg %p34
        %p125 = pneg %p31
        %p126 = pneg %p55
        %p127 = pneg %p52
        %p128 = pneg %p81
        %p129 = pneg %p78
        %s130 = sand.u32 %s68, 1
        %s131 = sand.u32 %s68, 1
        %s132 = smul.addr %s131, 256
        %s133 = scalar_lea.vmem [#allocation2], %s132
        %s134 = smul.u32 8, %s13
        %p135 = scmp.lt.s32.totalorder %s134, 55
        %s136 = scalar_select %p135, %s134, 55
        %s137 = smul.addr %s136, 8
        %s138 = scalar_lea.vmem %s0, %s137
        %s139 = smul.u32 8, %s13
        %s140 = smul.u32 8, %s13
        %v141 = vld [vmem:[%s138] sm:$0xff]
        %v142 = vld [vmem:[%s138 + $0x8] sm:$0xff]
        %v143 = vld [vmem:[%s138 + $0x10] sm:$0xff]
        %v144 = vld [vmem:[%s138 + $0x18] sm:$0xff]
        %v145 = vld [vmem:[%s138 + $0x20] sm:$0xff]
        %v146 = vld [vmem:[%s138 + $0x28] sm:$0xff]
        %v147 = vld [vmem:[%s138 + $0x30] sm:$0xff]
        %v148 = vld [vmem:[%s138 + $0x38] sm:$0xff]
        %v149 = vmax.f32 %v141, 0.0
        %v150 = vmax.f32 %v142, 0.0
        %v151 = vmax.f32 %v143, 0.0
        %v152 = vmax.f32 %v144, 0.0
        %v153 = vmax.f32 %v145, 0.0
        %v154 = vmax.f32 %v146, 0.0
        %v155 = vmax.f32 %v147, 0.0
        %v156 = vmax.f32 %v148, 0.0
        %v157 = vld [vmem:[%s1] sm:$0xff]
        %v158 = vld [vmem:[%s1 + $0x8] sm:$0xff]
        %v159 = vld [vmem:[%s1 + $0x10] sm:$0xff]
        %v160 = vld [vmem:[%s1 + $0x18] sm:$0x7]
        %vm161 = vcmask 64512
        %v163 = vsel %vm161, %v157, 0
        %v166 = vsel %vm161, %v158, 0
        %v169 = vsel %vm161, %v159, 0
        %v172 = vsel %vm161, %v160, 0
        %174 = vmatprep.subr.mxu0 0.0
        %175 = vmatpush1.msra.mxu0 0.0
        %176 = vmatprep.subr.mxu0 0.0
        %177 = vmatpush1.msra.mxu0 0.0
        %178 = vmatprep.subr.mxu0 0.0
        %179 = vmatpush1.msra.mxu0 0.0
        %180 = vmatprep.subr.mxu0 0.0
        %181 = vmatpush1.msra.mxu0 0.0
        %182 = vmatprep.subr.mxu0 0.0
        %183 = vmatpush1.msra.mxu0 0.0
        %184 = vmatprep.subr.mxu0 0.0
        %185 = vmatpush1.msra.mxu0 0.0
        %186 = vmatprep.subr.mxu0 0.0
        %187 = vmatpush1.msra.mxu0 0.0
        %188 = vmatprep.subr.mxu0 0.0
        %189 = vmatpush1.msra.mxu0 0.0
        %190 = vmatprep.subr.mxu0 0.0
        %191 = vmatpush1.msra.mxu0 0.0
        %192 = vmatprep.subr.mxu0 0.0
        %193 = vmatpush1.msra.mxu0 0.0
        %194 = vmatprep.subr.mxu0 0.0
        %195 = vmatpush1.msra.mxu0 0.0
        %196 = vmatprep.subr.mxu0 0.0
        %197 = vmatpush1.msra.mxu0 0.0
        %198 = vmatprep.subr.mxu0 0.0
        %199 = vmatpush1.msra.mxu0 0.0
        %200 = vmatprep.subr.mxu0 0.0
        %201 = vmatpush1.msra.mxu0 0.0
        %202 = vmatprep.subr.mxu0 0.0
        %203 = vmatpush1.msra.mxu0 0.0
        %204 = vmatprep.subr.mxu0 %v150
        %205 = vmatpush1.msra.mxu0 %v149
        %206 = vmatprep.subr.mxu0 0.0
        %207 = vmatpush2.msra.mxu0 0.0
        %208 = vmatprep.subr.mxu0 0.0
        %209 = vmatpush2.msra.mxu0 0.0
        %210 = vmatprep.subr.mxu0 0.0
        %211 = vmatpush2.msra.mxu0 0.0
        %212 = vmatprep.subr.mxu0 0.0
        %213 = vmatpush2.msra.mxu0 0.0
        %214 = vmatprep.subr.mxu0 0.0
        %215 = vmatpush2.msra.mxu0 0.0
        %216 = vmatprep.subr.mxu0 0.0
        %217 = vmatpush2.msra.mxu0 0.0
        %218 = vmatprep.subr.mxu0 0.0
        %219 = vmatpush2.msra.mxu0 0.0
        %220 = vmatprep.subr.mxu0 0.0
        %221 = vmatpush2.msra.mxu0 0.0
        %222 = vmatprep.subr.mxu0 0.0
        %223 = vmatpush2.msra.mxu0 0.0
        %224 = vmatprep.subr.mxu0 0.0
        %225 = vmatpush2.msra.mxu0 0.0
        %226 = vmatprep.subr.mxu0 0.0
        %227 = vmatpush2.msra.mxu0 0.0
        %228 = vmatprep.subr.mxu0 0.0
        %229 = vmatpush2.msra.mxu0 0.0
        %230 = vmatprep.subr.mxu0 0.0
        %231 = vmatpush2.msra.mxu0 0.0
        %232 = vmatprep.subr.mxu0 0.0
        %233 = vmatpush2.msra.mxu0 0.0
        %234 = vmatprep.subr.mxu0 0.0
        %235 = vmatpush2.msra.mxu0 0.0
        %236 = vmatprep.subr.mxu0 0.0
        %237 = vmatpush2.msra.mxu0 0.0
        %238 = vmatprep.mubr.f32.mxu0 0.0
        %239 = vmatmul.mubr.f32.gmra.mxu0 %v163
        %v240 = vpop.f32.mrf.mxu0
        %v241 = vadd.f32 0.0, %v240
        %v242 = vpop.f32.mrf.mxu0
        %v243 = vadd.f32 0.0, %v242
        %244 = vmatprep.mubr.f32.mxu0 0.0
        %245 = vmatmul.mubr.f32.gmra.mxu0 %v166
        %v246 = vpop.f32.mrf.mxu0
        %v247 = vadd.f32 0.0, %v246
        %v248 = vpop.f32.mrf.mxu0
        %v249 = vadd.f32 0.0, %v248
        %250 = vmatprep.mubr.f32.mxu0 0.0
        %251 = vmatmul.mubr.f32.gmra.mxu0 %v169
        %v252 = vpop.f32.mrf.mxu0
        %v253 = vadd.f32 0.0, %v252
        %v254 = vpop.f32.mrf.mxu0
        %v255 = vadd.f32 0.0, %v254
        %256 = vmatprep.mubr.f32.mxu0 0.0
        %257 = vmatmul.mubr.f32.gmra.mxu0 %v172
        %v258 = vpop.f32.mrf.mxu0
        %v259 = vadd.f32 0.0, %v258
        %v260 = vpop.f32.mrf.mxu0
        %v261 = vadd.f32 0.0, %v260
        %262 = vdwg.mxu0
        %263 = vmatprep.subr.mxu0 0.0
        %264 = vmatpush1.msra.mxu0 0.0
        %265 = vmatprep.subr.mxu0 0.0
        %266 = vmatpush1.msra.mxu0 0.0
        %267 = vmatprep.subr.mxu0 0.0
        %268 = vmatpush1.msra.mxu0 0.0
        %269 = vmatprep.subr.mxu0 0.0
        %270 = vmatpush1.msra.mxu0 0.0
        %271 = vmatprep.subr.mxu0 0.0
        %272 = vmatpush1.msra.mxu0 0.0
        %273 = vmatprep.subr.mxu0 0.0
        %274 = vmatpush1.msra.mxu0 0.0
        %275 = vmatprep.subr.mxu0 0.0
        %276 = vmatpush1.msra.mxu0 0.0
        %277 = vmatprep.subr.mxu0 0.0
        %278 = vmatpush1.msra.mxu0 0.0
        %279 = vmatprep.subr.mxu0 0.0
        %280 = vmatpush1.msra.mxu0 0.0
        %281 = vmatprep.subr.mxu0 0.0
        %282 = vmatpush1.msra.mxu0 0.0
        %283 = vmatprep.subr.mxu0 0.0
        %284 = vmatpush1.msra.mxu0 0.0
        %285 = vmatprep.subr.mxu0 0.0
        %286 = vmatpush1.msra.mxu0 0.0
        %287 = vmatprep.subr.mxu0 0.0
        %288 = vmatpush1.msra.mxu0 0.0
        %289 = vmatprep.subr.mxu0 0.0
        %290 = vmatpush1.msra.mxu0 0.0
        %291 = vmatprep.subr.mxu0 0.0
        %292 = vmatpush1.msra.mxu0 0.0
        %293 = vmatprep.subr.mxu0 %v152
        %294 = vmatpush1.msra.mxu0 %v151
        %295 = vmatprep.subr.mxu0 0.0
        %296 = vmatpush2.msra.mxu0 0.0
        %297 = vmatprep.subr.mxu0 0.0
        %298 = vmatpush2.msra.mxu0 0.0
        %299 = vmatprep.subr.mxu0 0.0
        %300 = vmatpush2.msra.mxu0 0.0
        %301 = vmatprep.subr.mxu0 0.0
        %302 = vmatpush2.msra.mxu0 0.0
        %303 = vmatprep.subr.mxu0 0.0
        %304 = vmatpush2.msra.mxu0 0.0
        %305 = vmatprep.subr.mxu0 0.0
        %306 = vmatpush2.msra.mxu0 0.0
        %307 = vmatprep.subr.mxu0 0.0
        %308 = vmatpush2.msra.mxu0 0.0
        %309 = vmatprep.subr.mxu0 0.0
        %310 = vmatpush2.msra.mxu0 0.0
        %311 = vmatprep.subr.mxu0 0.0
        %312 = vmatpush2.msra.mxu0 0.0
        %313 = vmatprep.subr.mxu0 0.0
        %314 = vmatpush2.msra.mxu0 0.0
        %315 = vmatprep.subr.mxu0 0.0
        %316 = vmatpush2.msra.mxu0 0.0
        %317 = vmatprep.subr.mxu0 0.0
        %318 = vmatpush2.msra.mxu0 0.0
        %319 = vmatprep.subr.mxu0 0.0
        %320 = vmatpush2.msra.mxu0 0.0
        %321 = vmatprep.subr.mxu0 0.0
        %322 = vmatpush2.msra.mxu0 0.0
        %323 = vmatprep.subr.mxu0 0.0
        %324 = vmatpush2.msra.mxu0 0.0
        %325 = vmatprep.subr.mxu0 0.0
        %326 = vmatpush2.msra.mxu0 0.0
        %327 = vmatprep.mubr.f32.mxu0 0.0
        %328 = vmatmul.mubr.f32.gmra.mxu0 %v163
        %v329 = vpop.f32.mrf.mxu0
        %v330 = vadd.f32 0.0, %v329
        %v331 = vpop.f32.mrf.mxu0
        %v332 = vadd.f32 0.0, %v331
        %333 = vmatprep.mubr.f32.mxu0 0.0
        %334 = vmatmul.mubr.f32.gmra.mxu0 %v166
        %v335 = vpop.f32.mrf.mxu0
        %v336 = vadd.f32 0.0, %v335
        %v337 = vpop.f32.mrf.mxu0
        %v338 = vadd.f32 0.0, %v337
        %339 = vmatprep.mubr.f32.mxu0 0.0
        %340 = vmatmul.mubr.f32.gmra.mxu0 %v169
        %v341 = vpop.f32.mrf.mxu0
        %v342 = vadd.f32 0.0, %v341
        %v343 = vpop.f32.mrf.mxu0
        %v344 = vadd.f32 0.0, %v343
        %345 = vmatprep.mubr.f32.mxu0 0.0
        %346 = vmatmul.mubr.f32.gmra.mxu0 %v172
        %v347 = vpop.f32.mrf.mxu0
        %v348 = vadd.f32 0.0, %v347
        %v349 = vpop.f32.mrf.mxu0
        %v350 = vadd.f32 0.0, %v349
        %351 = vdwg.mxu0
        %352 = vmatprep.subr.mxu0 0.0
        %353 = vmatpush1.msra.mxu0 0.0
        %354 = vmatprep.subr.mxu0 0.0
        %355 = vmatpush1.msra.mxu0 0.0
        %356 = vmatprep.subr.mxu0 0.0
        %357 = vmatpush1.msra.mxu0 0.0
        %358 = vmatprep.subr.mxu0 0.0
        %359 = vmatpush1.msra.mxu0 0.0
        %360 = vmatprep.subr.mxu0 0.0
        %361 = vmatpush1.msra.mxu0 0.0
        %362 = vmatprep.subr.mxu0 0.0
        %363 = vmatpush1.msra.mxu0 0.0
        %364 = vmatprep.subr.mxu0 0.0
        %365 = vmatpush1.msra.mxu0 0.0
        %366 = vmatprep.subr.mxu0 0.0
        %367 = vmatpush1.msra.mxu0 0.0
        %368 = vmatprep.subr.mxu0 0.0
        %369 = vmatpush1.msra.mxu0 0.0
        %370 = vmatprep.subr.mxu0 0.0
        %371 = vmatpush1.msra.mxu0 0.0
        %372 = vmatprep.subr.mxu0 0.0
        %373 = vmatpush1.msra.mxu0 0.0
        %374 = vmatprep.subr.mxu0 0.0
        %375 = vmatpush1.msra.mxu0 0.0
        %376 = vmatprep.subr.mxu0 0.0
        %377 = vmatpush1.msra.mxu0 0.0
        %378 = vmatprep.subr.mxu0 0.0
        %379 = vmatpush1.msra.mxu0 0.0
        %380 = vmatprep.subr.mxu0 0.0
        %381 = vmatpush1.msra.mxu0 0.0
        %382 = vmatprep.subr.mxu0 %v154
        %383 = vmatpush1.msra.mxu0 %v153
        %384 = vmatprep.subr.mxu0 0.0
        %385 = vmatpush2.msra.mxu0 0.0
        %386 = vmatprep.subr.mxu0 0.0
        %387 = vmatpush2.msra.mxu0 0.0
        %388 = vmatprep.subr.mxu0 0.0
        %389 = vmatpush2.msra.mxu0 0.0
        %390 = vmatprep.subr.mxu0 0.0
        %391 = vmatpush2.msra.mxu0 0.0
        %392 = vmatprep.subr.mxu0 0.0
        %393 = vmatpush2.msra.mxu0 0.0
        %394 = vmatprep.subr.mxu0 0.0
        %395 = vmatpush2.msra.mxu0 0.0
        %396 = vmatprep.subr.mxu0 0.0
        %397 = vmatpush2.msra.mxu0 0.0
        %398 = vmatprep.subr.mxu0 0.0
        %399 = vmatpush2.msra.mxu0 0.0
        %400 = vmatprep.subr.mxu0 0.0
        %401 = vmatpush2.msra.mxu0 0.0
        %402 = vmatprep.subr.mxu0 0.0
        %403 = vmatpush2.msra.mxu0 0.0
        %404 = vmatprep.subr.mxu0 0.0
        %405 = vmatpush2.msra.mxu0 0.0
        %406 = vmatprep.subr.mxu0 0.0
        %407 = vmatpush2.msra.mxu0 0.0
        %408 = vmatprep.subr.mxu0 0.0
        %409 = vmatpush2.msra.mxu0 0.0
        %410 = vmatprep.subr.mxu0 0.0
        %411 = vmatpush2.msra.mxu0 0.0
        %412 = vmatprep.subr.mxu0 0.0
        %413 = vmatpush2.msra.mxu0 0.0
        %414 = vmatprep.subr.mxu0 0.0
        %415 = vmatpush2.msra.mxu0 0.0
        %416 = vmatprep.mubr.f32.mxu0 0.0
        %417 = vmatmul.mubr.f32.gmra.mxu0 %v163
        %v418 = vpop.f32.mrf.mxu0
        %v419 = vadd.f32 0.0, %v418
        %v420 = vpop.f32.mrf.mxu0
        %v421 = vadd.f32 0.0, %v420
        %422 = vmatprep.mubr.f32.mxu0 0.0
        %423 = vmatmul.mubr.f32.gmra.mxu0 %v166
        %v424 = vpop.f32.mrf.mxu0
        %v425 = vadd.f32 0.0, %v424
        %v426 = vpop.f32.mrf.mxu0
        %v427 = vadd.f32 0.0, %v426
        %428 = vmatprep.mubr.f32.mxu0 0.0
        %429 = vmatmul.mubr.f32.gmra.mxu0 %v169
        %v430 = vpop.f32.mrf.mxu0
        %v431 = vadd.f32 0.0, %v430
        %v432 = vpop.f32.mrf.mxu0
        %v433 = vadd.f32 0.0, %v432
        %434 = vmatprep.mubr.f32.mxu0 0.0
        %435 = vmatmul.mubr.f32.gmra.mxu0 %v172
        %v436 = vpop.f32.mrf.mxu0
        %v437 = vadd.f32 0.0, %v436
        %v438 = vpop.f32.mrf.mxu0
        %v439 = vadd.f32 0.0, %v438
        %440 = vdwg.mxu0
        %441 = vmatprep.subr.mxu0 0.0
        %442 = vmatpush1.msra.mxu0 0.0
        %443 = vmatprep.subr.mxu0 0.0
        %444 = vmatpush1.msra.mxu0 0.0
        %445 = vmatprep.subr.mxu0 0.0
        %446 = vmatpush1.msra.mxu0 0.0
        %447 = vmatprep.subr.mxu0 0.0
        %448 = vmatpush1.msra.mxu0 0.0
        %449 = vmatprep.subr.mxu0 0.0
        %450 = vmatpush1.msra.mxu0 0.0
        %451 = vmatprep.subr.mxu0 0.0
        %452 = vmatpush1.msra.mxu0 0.0
        %453 = vmatprep.subr.mxu0 0.0
        %454 = vmatpush1.msra.mxu0 0.0
        %455 = vmatprep.subr.mxu0 0.0
        %456 = vmatpush1.msra.mxu0 0.0
        %457 = vmatprep.subr.mxu0 0.0
        %458 = vmatpush1.msra.mxu0 0.0
        %459 = vmatprep.subr.mxu0 0.0
        %460 = vmatpush1.msra.mxu0 0.0
        %461 = vmatprep.subr.mxu0 0.0
        %462 = vmatpush1.msra.mxu0 0.0
        %463 = vmatprep.subr.mxu0 0.0
        %464 = vmatpush1.msra.mxu0 0.0
        %465 = vmatprep.subr.mxu0 0.0
        %466 = vmatpush1.msra.mxu0 0.0
        %467 = vmatprep.subr.mxu0 0.0
        %468 = vmatpush1.msra.mxu0 0.0
        %469 = vmatprep.subr.mxu0 0.0
        %470 = vmatpush1.msra.mxu0 0.0
        %471 = vmatprep.subr.mxu0 %v156
        %472 = vmatpush1.msra.mxu0 %v155
        %473 = vmatprep.subr.mxu0 0.0
        %474 = vmatpush2.msra.mxu0 0.0
        %475 = vmatprep.subr.mxu0 0.0
        %476 = vmatpush2.msra.mxu0 0.0
        %477 = vmatprep.subr.mxu0 0.0
        %478 = vmatpush2.msra.mxu0 0.0
        %479 = vmatprep.subr.mxu0 0.0
        %480 = vmatpush2.msra.mxu0 0.0
        %481 = vmatprep.subr.mxu0 0.0
        %482 = vmatpush2.msra.mxu0 0.0
        %483 = vmatprep.subr.mxu0 0.0
        %484 = vmatpush2.msra.mxu0 0.0
        %485 = vmatprep.subr.mxu0 0.0
        %486 = vmatpush2.msra.mxu0 0.0
        %487 = vmatprep.subr.mxu0 0.0
        %488 = vmatpush2.msra.mxu0 0.0
        %489 = vmatprep.subr.mxu0 0.0
        %490 = vmatpush2.msra.mxu0 0.0
        %491 = vmatprep.subr.mxu0 0.0
        %492 = vmatpush2.msra.mxu0 0.0
        %493 = vmatprep.subr.mxu0 0.0
        %494 = vmatpush2.msra.mxu0 0.0
        %495 = vmatprep.subr.mxu0 0.0
        %496 = vmatpush2.msra.mxu0 0.0
        %497 = vmatprep.subr.mxu0 0.0
        %498 = vmatpush2.msra.mxu0 0.0
        %499 = vmatprep.subr.mxu0 0.0
        %500 = vmatpush2.msra.mxu0 0.0
        %501 = vmatprep.subr.mxu0 0.0
        %502 = vmatpush2.msra.mxu0 0.0
        %503 = vmatprep.subr.mxu0 0.0
        %504 = vmatpush2.msra.mxu0 0.0
        %505 = vmatprep.mubr.f32.mxu0 0.0
        %506 = vmatmul.mubr.f32.gmra.mxu0 %v163
        %v507 = vpop.f32.mrf.mxu0
        %v508 = vadd.f32 0.0, %v507
        %v509 = vpop.f32.mrf.mxu0
        %v510 = vadd.f32 0.0, %v509
        %511 = vmatprep.mubr.f32.mxu0 0.0
        %512 = vmatmul.mubr.f32.gmra.mxu0 %v166
        %v513 = vpop.f32.mrf.mxu0
        %v514 = vadd.f32 0.0, %v513
        %v515 = vpop.f32.mrf.mxu0
        %v516 = vadd.f32 0.0, %v515
        %517 = vmatprep.mubr.f32.mxu0 0.0
        %518 = vmatmul.mubr.f32.gmra.mxu0 %v169
        %v519 = vpop.f32.mrf.mxu0
        %v520 = vadd.f32 0.0, %v519
        %v521 = vpop.f32.mrf.mxu0
        %v522 = vadd.f32 0.0, %v521
        %523 = vmatprep.mubr.f32.mxu0 0.0
        %524 = vmatmul.mubr.f32.gmra.mxu0 %v172
        %v525 = vpop.f32.mrf.mxu0
        %v526 = vadd.f32 0.0, %v525
        %v527 = vpop.f32.mrf.mxu0
        %v528 = vadd.f32 0.0, %v527
        %529 = vdwg.mxu0
        %530 = vst [vmem:[%s133] sm:$0xff] %v241
        %531 = vst [vmem:[%s133 + $0x8] sm:$0xff] %v243
        %532 = vst [vmem:[%s133 + $0x10] sm:$0xff] %v330
        %533 = vst [vmem:[%s133 + $0x18] sm:$0xff] %v332
        %534 = vst [vmem:[%s133 + $0x20] sm:$0xff] %v419
        %535 = vst [vmem:[%s133 + $0x28] sm:$0xff] %v421
        %536 = vst [vmem:[%s133 + $0x30] sm:$0xff] %v508
        %537 = vst [vmem:[%s133 + $0x38] sm:$0xff] %v510
        %538 = vst [vmem:[%s133 + $0x40] sm:$0xff] %v247
        %539 = vst [vmem:[%s133 + $0x48] sm:$0xff] %v249
        %540 = vst [vmem:[%s133 + $0x50] sm:$0xff] %v336
        %541 = vst [vmem:[%s133 + $0x58] sm:$0xff] %v338
        %542 = vst [vmem:[%s133 + $0x60] sm:$0xff] %v425
        %543 = vst [vmem:[%s133 + $0x68] sm:$0xff] %v427
        %544 = vst [vmem:[%s133 + $0x70] sm:$0xff] %v514
        %545 = vst [vmem:[%s133 + $0x78] sm:$0xff] %v516
        %546 = vst [vmem:[%s133 + $0x80] sm:$0xff] %v253
        %547 = vst [vmem:[%s133 + $0x88] sm:$0xff] %v255
        %548 = vst [vmem:[%s133 + $0x90] sm:$0xff] %v342
        %549 = vst [vmem:[%s133 + $0x98] sm:$0xff] %v344
        %550 = vst [vmem:[%s133 + $0xa0] sm:$0xff] %v431
        %551 = vst [vmem:[%s133 + $0xa8] sm:$0xff] %v433
        %552 = vst [vmem:[%s133 + $0xb0] sm:$0xff] %v520
        %553 = vst [vmem:[%s133 + $0xb8] sm:$0xff] %v522
        %554 = vst [vmem:[%s133 + $0xc0] sm:$0x7] %v259
        %555 = vst [vmem:[%s133 + $0xc8] sm:$0x7] %v261
        %556 = vst [vmem:[%s133 + $0xd0] sm:$0x7] %v348
        %557 = vst [vmem:[%s133 + $0xd8] sm:$0x7] %v350
        %558 = vst [vmem:[%s133 + $0xe0] sm:$0x7] %v437
        %559 = vst [vmem:[%s133 + $0xe8] sm:$0x7] %v439
        %560 = vst [vmem:[%s133 + $0xf0] sm:$0x7] %v526
        %561 = vst [vmem:[%s133 + $0xf8] sm:$0x7] %v528
        %s562 = sand.u32 %s68, 1
        %s563 = sand.u32 %s68, 1
        %s564 = smul.addr %s563, 256
        %s565 = scalar_lea.vmem [#allocation2], %s564
        // Predicated region
        $region29: #{encoder_decoder_forward_pallas.9} parent=27 // pred_check
          %p566 = pneg %p78
        $region30: #{encoder_decoder_forward_pallas.9} parent=27 // pred_check_branch
          %568 = sbr.rel (%p566) target = $region32
        $region31: #{encoder_decoder_forward_pallas.9} parent=27 // pred_region
          %s569 = smul.u32 8, %s13
          %s570 = smul.addr %s569, 8
          %s571 = scalar_lea.vmem %s2, %s570
          // Predicated region
          $region33: #{encoder_decoder_forward_pallas.9} parent=31 // pred_check
            _
          $region34: #{encoder_decoder_forward_pallas.9} parent=31 // pred_check_branch
            %573 = sbr.rel (0) target = $region36
          $region35: #{encoder_decoder_forward_pallas.9} parent=31 // pred_region
            // Predicated region
            $region37: #{encoder_decoder_forward_pallas.9} parent=35 // pred_check
              _
            $region38: #{encoder_decoder_forward_pallas.9} parent=35 // pred_check_branch
              %575 = sbr.rel (0) target = $region40
            $region39: #{encoder_decoder_forward_pallas.9} parent=35 // pred_region
              loop: start=0, step=1, limit=1
              $region41: #{encoder_decoder_forward_pallas.9} parent=39 // loop_pre_header
                _
              $region42: #{encoder_decoder_forward_pallas.9} parent=39 // loop_header
                %s577 = sphi 0, %s581
                %p578 = scmp.ge.s32.totalorder %s577, 1
                %s582 = sphi %s565, %s565
                %s583 = sphi %s571, %s571
              $region43: #{encoder_decoder_forward_pallas.9} parent=39 // loop_header_branch
                %580 = sbr.rel (%p578) target = $region47
              $region44: #{encoder_decoder_forward_pallas.9} parent=39 // loop_body
                %v584 = vld [vmem:[%s582] sm:$0xff]
                %585 = vst [vmem:[%s583] sm:$0xff] %v584
                %v586 = vld [vmem:[%s582 + $0x8] sm:$0xff]
                %587 = vst [vmem:[%s583 + $0x8] sm:$0xff] %v586
                %v588 = vld [vmem:[%s582 + $0x10] sm:$0xff]
                %589 = vst [vmem:[%s583 + $0x10] sm:$0xff] %v588
                %v590 = vld [vmem:[%s582 + $0x18] sm:$0xff]
                %591 = vst [vmem:[%s583 + $0x18] sm:$0xff] %v590
                %v592 = vld [vmem:[%s582 + $0x20] sm:$0xff]
                %593 = vst [vmem:[%s583 + $0x20] sm:$0xff] %v592
                %v594 = vld [vmem:[%s582 + $0x28] sm:$0xff]
                %595 = vst [vmem:[%s583 + $0x28] sm:$0xff] %v594
                %v596 = vld [vmem:[%s582 + $0x30] sm:$0xff]
                %597 = vst [vmem:[%s583 + $0x30] sm:$0xff] %v596
                %v598 = vld [vmem:[%s582 + $0x38] sm:$0xff]
                %599 = vst [vmem:[%s583 + $0x38] sm:$0xff] %v598
                %v600 = vld [vmem:[%s582 + $0x40] sm:$0xff]
                %601 = vst [vmem:[%s583 + $0x1c0] sm:$0xff] %v600
                %v602 = vld [vmem:[%s582 + $0x48] sm:$0xff]
                %603 = vst [vmem:[%s583 + $0x1c8] sm:$0xff] %v602
                %v604 = vld [vmem:[%s582 + $0x50] sm:$0xff]
                %605 = vst [vmem:[%s583 + $0x1d0] sm:$0xff] %v604
                %v606 = vld [vmem:[%s582 + $0x58] sm:$0xff]
                %607 = vst [vmem:[%s583 + $0x1d8] sm:$0xff] %v606
                %v608 = vld [vmem:[%s582 + $0x60] sm:$0xff]
                %609 = vst [vmem:[%s583 + $0x1e0] sm:$0xff] %v608
                %v610 = vld [vmem:[%s582 + $0x68] sm:$0xff]
                %611 = vst [vmem:[%s583 + $0x1e8] sm:$0xff] %v610
                %v612 = vld [vmem:[%s582 + $0x70] sm:$0xff]
                %613 = vst [vmem:[%s583 + $0x1f0] sm:$0xff] %v612
                %v614 = vld [vmem:[%s582 + $0x78] sm:$0xff]
                %615 = vst [vmem:[%s583 + $0x1f8] sm:$0xff] %v614
                %v616 = vld [vmem:[%s582 + $0x80] sm:$0xff]
                %617 = vst [vmem:[%s583 + $0x380] sm:$0xff] %v616
                %v618 = vld [vmem:[%s582 + $0x88] sm:$0xff]
                %619 = vst [vmem:[%s583 + $0x388] sm:$0xff] %v618
                %v620 = vld [vmem:[%s582 + $0x90] sm:$0xff]
                %621 = vst [vmem:[%s583 + $0x390] sm:$0xff] %v620
                %v622 = vld [vmem:[%s582 + $0x98] sm:$0xff]
                %623 = vst [vmem:[%s583 + $0x398] sm:$0xff] %v622
                %v624 = vld [vmem:[%s582 + $0xa0] sm:$0xff]
                %625 = vst [vmem:[%s583 + $0x3a0] sm:$0xff] %v624
                %v626 = vld [vmem:[%s582 + $0xa8] sm:$0xff]
                %627 = vst [vmem:[%s583 + $0x3a8] sm:$0xff] %v626
                %v628 = vld [vmem:[%s582 + $0xb0] sm:$0xff]
                %629 = vst [vmem:[%s583 + $0x3b0] sm:$0xff] %v628
                %v630 = vld [vmem:[%s582 + $0xb8] sm:$0xff]
                %631 = vst [vmem:[%s583 + $0x3b8] sm:$0xff] %v630
                %v632 = vld [vmem:[%s582 + $0xc0] sm:$0xff]
                %633 = vst [vmem:[%s583 + $0x540] sm:$0xff] %v632
                %v634 = vld [vmem:[%s582 + $0xc8] sm:$0xff]
                %635 = vst [vmem:[%s583 + $0x548] sm:$0xff] %v634
                %v636 = vld [vmem:[%s582 + $0xd0] sm:$0xff]
                %637 = vst [vmem:[%s583 + $0x550] sm:$0xff] %v636
                %v638 = vld [vmem:[%s582 + $0xd8] sm:$0xff]
                %639 = vst [vmem:[%s583 + $0x558] sm:$0xff] %v638
                %v640 = vld [vmem:[%s582 + $0xe0] sm:$0xff]
                %641 = vst [vmem:[%s583 + $0x560] sm:$0xff] %v640
                %v642 = vld [vmem:[%s582 + $0xe8] sm:$0xff]
                %643 = vst [vmem:[%s583 + $0x568] sm:$0xff] %v642
                %v644 = vld [vmem:[%s582 + $0xf0] sm:$0xff]
                %645 = vst [vmem:[%s583 + $0x570] sm:$0xff] %v644
                %v646 = vld [vmem:[%s582 + $0xf8] sm:$0xff]
                %647 = vst [vmem:[%s583 + $0x578] sm:$0xff] %v646
              $region45: #{encoder_decoder_forward_pallas.9} parent=39 // loop_footer
                %s581 = sadd.s32 1, %s577
              $region46: #{encoder_decoder_forward_pallas.9} parent=39 // loop_footer_branch
                %576 = sbr.rel target = $region42
              $region47: #{encoder_decoder_forward_pallas.9} parent=39 // loop_exit
                _
            $region40: #{encoder_decoder_forward_pallas.9} parent=35 // pred_fallthru
              _
            // Predicated region
            $region48: #{encoder_decoder_forward_pallas.9} parent=35 // pred_check
              _
            $region49: #{encoder_decoder_forward_pallas.9} parent=35 // pred_check_branch
              %649 = sbr.rel target = $region51
            $region50: #{encoder_decoder_forward_pallas.9} parent=35 // pred_region
              _
            $region51: #{encoder_decoder_forward_pallas.9} parent=35 // pred_fallthru
              _
          $region36: #{encoder_decoder_forward_pallas.9} parent=31 // pred_fallthru
            _
          %650 = vnop
        $region32: #{encoder_decoder_forward_pallas.9} parent=27 // pred_fallthru
          _
      $region28: #{encoder_decoder_forward_pallas.9} parent=5 // pred_fallthru
        _
      %p651 = scmp.le.s32.totalorder 2, %s8
      // Predicated region
      $region52: #{encoder_decoder_forward_pallas.9} parent=5 // pred_check
        %p652 = pneg %p651
      $region53: #{encoder_decoder_forward_pallas.9} parent=5 // pred_check_branch
        %654 = sbr.rel (%p652) target = $region55
      $region54: #{encoder_decoder_forward_pallas.9} parent=5 // pred_region
        %s655 = ssub.s32 %s8, 2
        // Predicated region
        $region56: #{encoder_decoder_forward_pallas.9} parent=54 // pred_check
          %p656 = pneg %p84
        $region57: #{encoder_decoder_forward_pallas.9} parent=54 // pred_check_branch
          %658 = sbr.rel (%p656) target = $region59
        $region58: #{encoder_decoder_forward_pallas.9} parent=54 // pred_region
          %s659 = sand.u32 %s69, 1
          %s660 = sand.u32 %s69, 1
          %s661 = smul.addr %s660, 256
          %s662 = scalar_lea.vmem [#allocation2], %s661
        $region59: #{encoder_decoder_forward_pallas.9} parent=54 // pred_fallthru
          _
      $region55: #{encoder_decoder_forward_pallas.9} parent=5 // pred_fallthru
        _
    $region6: #{encoder_decoder_forward_pallas.9} parent=1 // loop_footer
      %s12 = sadd.s32 1, %s8
    $region7: #{encoder_decoder_forward_pallas.9} parent=1 // loop_footer_branch
      %7 = sbr.rel target = $region3
    $region8: #{encoder_decoder_forward_pallas.9} parent=1 // loop_exit
      _

</llo_original>
